<compile_context>
chip_gen: v6e
topology: v6e:2x2x1
jax: 0.10.0
libtpu: 0.0.40
codegen_flags: <defaults>
</compile_context>

<pallas_src>
import functools
import math

import jax
import jax.numpy as jnp
from jax import lax
from jax.experimental import pallas as pl
from jax.experimental.pallas import tpu as pltpu

# ----------------------------- model dimensions ------------------------------
D_MODEL = 32
EMBD_SCALE = 1
MLP_SCALE = 4
D_IN = D_MODEL * EMBD_SCALE            # 32  (block input/output dim)
HIDDEN = MLP_SCALE * D_MODEL           # 128 (GatedMLP hidden dim)
EXPAND = 2
D_INNER = EXPAND * D_IN                # 64
D_STATE = 16
D_CONV = 4
DT_RANK = math.ceil(D_IN / 16)         # 2
RMS_EPS = 1e-5

S_TILE = 8                             # sequence chunk per grid step


def _silu(x):
    # reciprocal lands on the EUP slot
    return x * (1.0 / (1.0 + jnp.exp(-x)))


def _softplus(x):
    # numerically stable softplus
    return jnp.maximum(x, 0.0) + jnp.log1p(jnp.exp(-jnp.abs(x)))


# ------------------------------ fused Pallas kernel ----------------------------
def mamba_block_kernel(x_ref, w_in_ref, conv_w_ref, conv_b_ref, w_x_ref,
                       b_dt_ref, a_ref, d_ref, w_out_ref,
                       g_ref, w1_ref, w2_ref, o_ref,
                       h_carry, conv_buf, da_scr, dbx_scr, c_scr, y_scr):
    """One time-major (T, B, D) sequence chunk of: x + mamba(x); then x + MLP(RMSNorm(x))."""
    T, B, D = x_ref.shape
    d_state, d_inner = a_ref.shape
    d_conv = conv_w_ref.shape[0]
    hid = w2_ref.shape[0]
    R = T * B
    chunk = pl.program_id(0)

    # ---- carried state: reset on the first chunk, else roll the conv history ----
    @pl.when(chunk == 0)
    def _():
        h_carry[...] = jnp.zeros_like(h_carry)
        conv_buf[:d_conv - 1] = jnp.zeros((d_conv - 1, B, d_inner), jnp.float32)

    @pl.when(chunk > 0)
    def _():
        # last d_conv-1 timesteps of the previous chunk become this chunk's history
        conv_buf[:d_conv - 1] = conv_buf[T:]

    # ---- Mamba input projection: one bf16 MXU pass (f32 accumulate) ----
    x2 = x_ref[...].reshape(R, D)                                   # time-major rows
    xz = jnp.dot(x2.astype(jnp.bfloat16), w_in_ref[...],
                 preferred_element_type=jnp.float32)                # (R, 2*d_inner)
    xin = xz[:, :d_inner]
    z = xz[:, d_inner:]

    # ---- causal depthwise conv1d via history buffer (no concatenates) + SiLU ----
    conv_buf[d_conv - 1:] = xin.reshape(T, B, d_inner)
    acc = conv_buf[0:T] * conv_w_ref[0:1, :]                        # init with first tap
    for k in range(1, d_conv):                                      # static, d_conv = 4
        acc = acc + conv_buf[k:k + T] * conv_w_ref[k:k + 1, :]
    xc = _silu(acc + conv_b_ref[...])                               # (T, B, d_inner)
    xc2 = xc.reshape(R, d_inner)

    # ---- dt / B / C projection (dt low-rank already folded into w_x on host) ----
    dbc = jnp.dot(xc2.astype(jnp.bfloat16), w_x_ref[...],
                  preferred_element_type=jnp.float32)               # (R, d_inner+2*d_state)
    dt = _softplus(dbc[:, :d_inner] + b_dt_ref[...])                # (R, d_inner)
    dt3 = dt.reshape(T, B, d_inner)
    Bm = dbc[:, d_inner:d_inner + d_state].reshape(T, B, d_state)
    Cm = dbc[:, d_inner + d_state:].reshape(T, B, d_state)

    # ---- hoist exp / outer products out of the recurrence (one vectorized pass) ----
    da_scr[...] = jnp.exp(dt3[:, :, None, :] * a_ref[...])          # (T, B, d_state, d_inner)
    dbx_scr[...] = Bm[:, :, :, None] * (dt3 * xc)[:, :, None, :]    # (T, B, d_state, d_inner)
    c_scr[...] = Cm                                                 # (T, B, d_state)

    # ---- selective scan: ONE serial chain over t, all batches vectorized; C.h fused ----
    def step(t, h):
        h = da_scr[t] * h + dbx_scr[t]                              # (B, d_state, d_inner) FMA
        y_scr[t] = jnp.sum(c_scr[t][:, :, None] * h, axis=1)        # fused C_t . h_t (XLU)
        return h

    h_carry[...] = lax.fori_loop(0, T, step, h_carry[...], unroll=min(T, 8))

    # ---- D-skip, gate, output projection, residual 1 ----
    y = y_scr[...].reshape(R, d_inner)
    y = (y + xc2 * d_ref[...]) * _silu(z)
    x_mid = x2 + jnp.dot(y.astype(jnp.bfloat16), w_out_ref[...],
                         preferred_element_type=jnp.float32)        # (R, D)

    # ---- RMSNorm + GatedMLP + residual 2 (dropout p=0 -> identity) ----
    ms = jnp.mean(x_mid * x_mid, axis=-1, keepdims=True)
    xn = x_mid * lax.rsqrt(ms + RMS_EPS) * g_ref[...]
    y12 = jnp.dot(xn.astype(jnp.bfloat16), w1_ref[...],
                  preferred_element_type=jnp.float32)               # (R, 2*hid)
    yh = y12[:, :hid] * _silu(y12[:, hid:])
    out = x_mid + jnp.dot(yh.astype(jnp.bfloat16), w2_ref[...],
                          preferred_element_type=jnp.float32)       # (R, D)
    o_ref[...] = out.reshape(T, B, D)


# ------------------------------ pallas wrapper --------------------------------
def _full_spec(arr):
    zeros = (0,) * arr.ndim
    return pl.BlockSpec(arr.shape, lambda c, _z=zeros: _z)


@functools.partial(jax.jit, static_argnames=("s_tile",))
def mamba_block(x, mamba_p, mlp_p, s_tile=S_TILE):
    """x: (B, S, D) f32 -> (B, S, D) f32."""
    B, S, D = x.shape
    assert S % s_tile == 0, "sequence length must be a multiple of the chunk size"

    # host-side weight prep: fold dt projection into w_x, precompute A, bf16-cast matmul weights
    a_neg = -jnp.exp(mamba_p['a_log_t'])                                   # (d_state, d_inner)
    w_x = mamba_p['w_x']
    w_x_fold = jnp.concatenate([w_x[:, :DT_RANK] @ mamba_p['w_dt'],
                                w_x[:, DT_RANK:]], axis=1)                 # (d_inner, d_inner+2*d_state)
    bf16 = lambda w: w.astype(jnp.bfloat16)

    x_t = jnp.transpose(x, (1, 0, 2))                                      # time-major (S, B, D)
    args = (x_t,
            bf16(mamba_p['w_in']), mamba_p['conv_w'], mamba_p['conv_b'],
            bf16(w_x_fold), mamba_p['b_dt'], a_neg, mamba_p['d'],
            bf16(mamba_p['w_out']),
            mlp_p['g'], bf16(mlp_p['w1']), bf16(mlp_p['w2']))

    in_specs = [pl.BlockSpec((s_tile, B, D), lambda c: (c, 0, 0))]
    in_specs += [_full_spec(a) for a in args[1:]]

    out_t = pl.pallas_call(
        mamba_block_kernel,
        out_shape=jax.ShapeDtypeStruct((S, B, D), jnp.float32),
        grid=(S // s_tile,),
        in_specs=in_specs,
        out_specs=pl.BlockSpec((s_tile, B, D), lambda c: (c, 0, 0)),
        scratch_shapes=[
            pltpu.VMEM((B, D_STATE, D_INNER), jnp.float32),                 # carried scan state h
            pltpu.VMEM((s_tile + D_CONV - 1, B, D_INNER), jnp.float32),     # conv history + chunk
            pltpu.VMEM((s_tile, B, D_STATE, D_INNER), jnp.float32),         # exp(dt * A)
            pltpu.VMEM((s_tile, B, D_STATE, D_INNER), jnp.float32),         # B_t (x) dt*u_t
            pltpu.VMEM((s_tile, B, D_STATE), jnp.float32),                  # C_t
            pltpu.VMEM((s_tile, B, D_INNER), jnp.float32),                  # per-step scan output
        ],
        compiler_params=pltpu.CompilerParams(
            # serial scan dependency across sequence chunks
            dimension_semantics=("arbitrary",),
            # plenty for these tiles; raise toward 64-100 MiB on v5e/v6e for larger s_tile,
            # keep <= ~48 MiB on v7x.
            vmem_limit_bytes=32 * 1024 * 1024),
    )(*args)
    return jnp.transpose(out_t, (1, 0, 2))


# ------------------------------ parameter init --------------------------------
def init_params(key):
    ks = jax.random.split(key, 8)

    def lin(k, fan_in, shape):
        return (jax.random.normal(k, shape, jnp.float32) /
                jnp.sqrt(jnp.float32(fan_in))).astype(jnp.float32)

    mamba = {
        'w_in':   lin(ks[0], D_IN, (D_IN, 2 * D_INNER)),
        'conv_w': lin(ks[1], D_CONV, (D_CONV, D_INNER)),
        'conv_b': jnp.zeros((1, D_INNER), jnp.float32),
        'w_x':    lin(ks[2], D_INNER, (D_INNER, DT_RANK + 2 * D_STATE)),
        'w_dt':   lin(ks[3], DT_RANK, (DT_RANK, D_INNER)),
        'b_dt':   jnp.full((1, D_INNER), math.log(math.expm1(0.01)), jnp.float32),
        'a_log_t': (jnp.log(jnp.arange(1, D_STATE + 1, dtype=jnp.float32))[:, None]
                    * jnp.ones((1, D_INNER), jnp.float32)),
        'd':      jnp.ones((1, D_INNER), jnp.float32),
        'w_out':  lin(ks[4], D_INNER, (D_INNER, D_IN)),
    }
    mlp = {
        'g':  jnp.ones((1, D_IN), jnp.float32),
        'w1': lin(ks[5], D_IN, (D_IN, 2 * HIDDEN)),
        'w2': lin(ks[6], HIDDEN, (HIDDEN, D_IN)),
    }
    return mamba, mlp


# ------------------------------ pure-JAX references -----------------------------
def _mm_bf16(a, w):
    return jnp.dot(a.astype(jnp.bfloat16), w.astype(jnp.bfloat16),
                   preferred_element_type=jnp.float32)


def ref_block(x, mamba_p, mlp_p, *, mm, softplus, silu, fold_dt):
    """Pure-JAX reference.  `mm` selects matmul precision; `fold_dt` selects whether the
    dt low-rank projection is folded into w_x (mathematically equivalent)."""
    B, S, _ = x.shape
    A = -jnp.exp(mamba_p['a_log_t'])                                 # (d_state, d_inner)
    w_x = mamba_p['w_x']
    if fold_dt:
        w_xf = jnp.concatenate([w_x[:, :DT_RANK] @ mamba_p['w_dt'],
                                w_x[:, DT_RANK:]], axis=1)
    outs = []
    for b in range(B):
        xb = x[b]                                                    # (S, D)
        xz = mm(xb, mamba_p['w_in'])
        xin, z = xz[:, :D_INNER], xz[:, D_INNER:]
        pad = jnp.concatenate(
            [jnp.zeros((D_CONV - 1, D_INNER), jnp.float32), xin], axis=0)
        xc = jnp.stack([(pad[t:t + D_CONV] * mamba_p['conv_w']).sum(0) for t in range(S)], 0)
        xc = silu(xc + mamba_p['conv_b'])
        if fold_dt:
            dbc = mm(xc, w_xf)
            dt_pre = dbc[:, :D_INNER]
            Bm = dbc[:, D_INNER:D_INNER + D_STATE]
            Cm = dbc[:, D_INNER + D_STATE:]
        else:
            dbc = mm(xc, w_x)
            dt_pre = dbc[:, :DT_RANK] @ mamba_p['w_dt']
            Bm = dbc[:, DT_RANK:DT_RANK + D_STATE]
            Cm = dbc[:, DT_RANK + D_STATE:]
        dt = softplus(dt_pre + mamba_p['b_dt'])
        h = jnp.zeros((D_STATE, D_INNER), jnp.float32)
        ys = []
        for t in range(S):
            h = jnp.exp(dt[t][None, :] * A) * h + Bm[t][:, None] * (dt[t] * xc[t])[None, :]
            ys.append(Cm[t] @ h)
        y = jnp.stack(ys, 0) + xc * mamba_p['d']
        y = y * silu(z)
        outs.append(xb + mm(y, mamba_p['w_out']))
    x_mid = jnp.stack(outs, 0)
    ms = jnp.mean(x_mid * x_mid, axis=-1, keepdims=True)
    xn = x_mid * lax.rsqrt(ms + RMS_EPS) * mlp_p['g']
    y12 = mm(xn, mlp_p['w1'])
    yh = y12[..., :HIDDEN] * silu(y12[..., HIDDEN:])
    return x_mid + mm(yh, mlp_p['w2'])


# ----------------------------------- main --------------------------------------
if __name__ == "__main__":
    key = jax.random.PRNGKey(0)
    kx, kp = jax.random.split(key)
    B, S = 2, 16                        # two chunks of S_TILE=8 -> exercises the carried state
    x = jax.random.normal(kx, (B, S, D_IN), jnp.float32)
    mamba_p, mlp_p = init_params(kp)

    y = jax.block_until_ready(mamba_block(x, mamba_p, mlp_p))
    assert y.shape == (B, S, D_IN)

    # Tight check vs a reference that mirrors the kernel's numerics (bf16 MXU operands,
    # folded dt projection, identical softplus/silu formulations).
    y_mirror = ref_block(x, mamba_p, mlp_p, mm=_mm_bf16,
                         softplus=_softplus, silu=_silu, fold_dt=True)
    err_m = float(jnp.max(jnp.abs(y - y_mirror)))
    assert jnp.allclose(y, y_mirror, atol=1e-3, rtol=1e-3), f"mirror max abs err {err_m}"

    # Looser check vs the full-f32, spec-shaped reference (difference is only the
    # intentional bf16 matmul operands inside the kernel).
    y_spec = ref_block(x, mamba_p, mlp_p, mm=lambda a, w: jnp.dot(a, w),
                       softplus=jax.nn.softplus, silu=lambda v: v * jax.nn.sigmoid(v),
                       fold_dt=False)
    err_s = float(jnp.max(jnp.abs(y - y_spec)))
    assert jnp.allclose(y, y_spec, atol=5e-2, rtol=5e-2), f"spec max abs err {err_s}"

    print("KERNEL_OK")
</pallas_src>

<mosaic_0001>
module attributes {stable_mosaic.version = 11 : i64} {
  func.func @mamba_block_kernel(%arg0: i32, %arg1: memref<8x2x32xf32, #tpu.memory_space<vmem>>, %arg2: memref<32x128xbf16, #tpu.memory_space<vmem>>, %arg3: memref<4x64xf32, #tpu.memory_space<vmem>>, %arg4: memref<1x64xf32, #tpu.memory_space<vmem>>, %arg5: memref<64x96xbf16, #tpu.memory_space<vmem>>, %arg6: memref<1x64xf32, #tpu.memory_space<vmem>>, %arg7: memref<16x64xf32, #tpu.memory_space<vmem>>, %arg8: memref<1x64xf32, #tpu.memory_space<vmem>>, %arg9: memref<64x32xbf16, #tpu.memory_space<vmem>>, %arg10: memref<1x32xf32, #tpu.memory_space<vmem>>, %arg11: memref<32x256xbf16, #tpu.memory_space<vmem>>, %arg12: memref<128x32xbf16, #tpu.memory_space<vmem>>, %arg13: memref<8x2x32xf32, #tpu.memory_space<vmem>>, %arg14: memref<2x16x64xf32, #tpu.memory_space<vmem>>, %arg15: memref<11x2x64xf32, #tpu.memory_space<vmem>>, %arg16: memref<8x2x16x64xf32, #tpu.memory_space<vmem>>, %arg17: memref<8x2x16x64xf32, #tpu.memory_space<vmem>>, %arg18: memref<8x2x16xf32, #tpu.memory_space<vmem>>, %arg19: memref<8x2x64xf32, #tpu.memory_space<vmem>>) attributes {dimension_semantics = [#tpu.dimension_semantics<arbitrary>], iteration_bounds = array<i64: 2>, scalar_prefetch = 0 : i64, scratch_operands = 6 : i64, tpu.core_type = #tpu.core_type<tc>, window_params = [{transform_indices = @transform_0, window_bounds = array<i64: 8, 2, 32>}, {pipeline_mode = #tpu.pipeline_mode<synchronous>, transform_indices = @transform_1, window_bounds = array<i64: 32, 128>}, {pipeline_mode = #tpu.pipeline_mode<synchronous>, transform_indices = @transform_2, window_bounds = array<i64: 4, 64>}, {pipeline_mode = #tpu.pipeline_mode<synchronous>, transform_indices = @transform_3, window_bounds = array<i64: 1, 64>}, {pipeline_mode = #tpu.pipeline_mode<synchronous>, transform_indices = @transform_4, window_bounds = array<i64: 64, 96>}, {pipeline_mode = #tpu.pipeline_mode<synchronous>, transform_indices = @transform_5, window_bounds = array<i64: 1, 64>}, {pipeline_mode = #tpu.pipeline_mode<synchronous>, transform_indices = @transform_6, window_bounds = array<i64: 16, 64>}, {pipeline_mode = #tpu.pipeline_mode<synchronous>, transform_indices = @transform_7, window_bounds = array<i64: 1, 64>}, {pipeline_mode = #tpu.pipeline_mode<synchronous>, transform_indices = @transform_8, window_bounds = array<i64: 64, 32>}, {pipeline_mode = #tpu.pipeline_mode<synchronous>, transform_indices = @transform_9, window_bounds = array<i64: 1, 32>}, {pipeline_mode = #tpu.pipeline_mode<synchronous>, transform_indices = @transform_10, window_bounds = array<i64: 32, 256>}, {pipeline_mode = #tpu.pipeline_mode<synchronous>, transform_indices = @transform_11, window_bounds = array<i64: 128, 32>}, {transform_indices = @transform_12, window_bounds = array<i64: 8, 2, 32>}]} {
    %c0_i32 = arith.constant 0 : i32
    %0 = arith.cmpi eq, %arg0, %c0_i32 : i32
    %1 = arith.extui %0 : i1 to i32
    %c0_i32_0 = arith.constant 0 : i32
    %2 = arith.cmpi ne, %1, %c0_i32_0 : i32
    scf.if %2 {
      %cst_175 = arith.constant 0.000000e+00 : f32
      %293 = vector.broadcast %cst_175 : f32 to vector<2x16x64xf32>
      %c0_176 = arith.constant 0 : index
      %c0_177 = arith.constant 0 : index
      %c0_178 = arith.constant 0 : index
      %294 = vector.load %arg14[%c0_176, %c0_177, %c0_178] : memref<2x16x64xf32, #tpu.memory_space<vmem>>, vector<2x16x64xf32>
      tpu.vector_store %arg14[%c0_176, %c0_177, %c0_178], %293 {strides = array<i32>} : memref<2x16x64xf32, #tpu.memory_space<vmem>>, vector<2x16x64xf32>,
      %cst_179 = arith.constant 0.000000e+00 : f32
      %295 = vector.broadcast %cst_179 : f32 to vector<3x2x64xf32>
      %c0_180 = arith.constant 0 : index
      %c0_181 = arith.constant 0 : index
      %c0_182 = arith.constant 0 : index
      %296 = vector.load %arg15[%c0_180, %c0_181, %c0_182] : memref<11x2x64xf32, #tpu.memory_space<vmem>>, vector<3x2x64xf32>
      tpu.vector_store %arg15[%c0_180, %c0_181, %c0_182], %295 {strides = array<i32>} : memref<11x2x64xf32, #tpu.memory_space<vmem>>, vector<3x2x64xf32>,
    } else {
    }
    %c0_i32_1 = arith.constant 0 : i32
    %3 = arith.cmpi sgt, %arg0, %c0_i32_1 : i32
    %4 = arith.extui %3 : i1 to i32
    %c0_i32_2 = arith.constant 0 : i32
    %5 = arith.cmpi ne, %4, %c0_i32_2 : i32
    scf.if %5 {
      %c8 = arith.constant 8 : index
      %c0_175 = arith.constant 0 : index
      %c0_176 = arith.constant 0 : index
      %293 = vector.load %arg15[%c8, %c0_175, %c0_176] : memref<11x2x64xf32, #tpu.memory_space<vmem>>, vector<3x2x64xf32>
      %c0_177 = arith.constant 0 : index
      %c0_178 = arith.constant 0 : index
      %c0_179 = arith.constant 0 : index
      %294 = vector.load %arg15[%c0_177, %c0_178, %c0_179] : memref<11x2x64xf32, #tpu.memory_space<vmem>>, vector<3x2x64xf32>
      tpu.vector_store %arg15[%c0_177, %c0_178, %c0_179], %293 {strides = array<i32>} : memref<11x2x64xf32, #tpu.memory_space<vmem>>, vector<3x2x64xf32>,
    } else {
    }
    %c0 = arith.constant 0 : index
    %c0_3 = arith.constant 0 : index
    %c0_4 = arith.constant 0 : index
    %6 = vector.load %arg1[%c0, %c0_3, %c0_4] : memref<8x2x32xf32, #tpu.memory_space<vmem>>, vector<8x2x32xf32>
    %7 = vector.shape_cast %6 : vector<8x2x32xf32> to vector<16x32xf32>
    %8 = arith.truncf %7 : vector<16x32xf32> to vector<16x32xbf16>
    %c0_5 = arith.constant 0 : index
    %c0_6 = arith.constant 0 : index
    %9 = vector.load %arg2[%c0_5, %c0_6] : memref<32x128xbf16, #tpu.memory_space<vmem>>, vector<32x128xbf16>
    %cst = arith.constant dense<0.000000e+00> : vector<16x128xf32>
    %10 = tpu.matmul %8, %9, %cst {dimension_numbers = #tpu.dot_dimension_numbers<[1], [0], [0], [1], [0, 0, 1, 1], [], []>} : vector<16x32xbf16>, vector<32x128xbf16>, vector<16x128xf32> -> vector<16x128xf32>
    %11 = vector.extract_strided_slice %10 {offsets = [0, 0], sizes = [16, 64], strides = [1, 1]} : vector<16x128xf32> to vector<16x64xf32>
    %12 = vector.extract_strided_slice %10 {offsets = [0, 64], sizes = [16, 64], strides = [1, 1]} : vector<16x128xf32> to vector<16x64xf32>
    %13 = vector.shape_cast %11 : vector<16x64xf32> to vector<8x2x64xf32>
    %c3 = arith.constant 3 : index
    %c0_7 = arith.constant 0 : index
    %c0_8 = arith.constant 0 : index
    %14 = vector.load %arg15[%c3, %c0_7, %c0_8] : memref<11x2x64xf32, #tpu.memory_space<vmem>>, vector<8x2x64xf32>
    tpu.vector_store %arg15[%c3, %c0_7, %c0_8], %13 {strides = array<i32>} : memref<11x2x64xf32, #tpu.memory_space<vmem>>, vector<8x2x64xf32>,
    %c0_9 = arith.constant 0 : index
    %c0_10 = arith.constant 0 : index
    %c0_11 = arith.constant 0 : index
    %15 = vector.load %arg15[%c0_9, %c0_10, %c0_11] : memref<11x2x64xf32, #tpu.memory_space<vmem>>, vector<8x2x64xf32>
    %c0_12 = arith.constant 0 : index
    %c0_13 = arith.constant 0 : index
    %16 = vector.load %arg3[%c0_12, %c0_13] : memref<4x64xf32, #tpu.memory_space<vmem>>, vector<1x64xf32>
    %17 = vector.shape_cast %16 : vector<1x64xf32> to vector<1x1x64xf32>
    %18 = vector.broadcast %17 : vector<1x1x64xf32> to vector<8x2x64xf32>
    %19 = arith.mulf %15, %18 : vector<8x2x64xf32>
    %c1 = arith.constant 1 : index
    %c0_14 = arith.constant 0 : index
    %c0_15 = arith.constant 0 : index
    %20 = vector.load %arg15[%c1, %c0_14, %c0_15] : memref<11x2x64xf32, #tpu.memory_space<vmem>>, vector<8x2x64xf32>
    %c1_16 = arith.constant 1 : index
    %c0_17 = arith.constant 0 : index
    %21 = vector.load %arg3[%c1_16, %c0_17] : memref<4x64xf32, #tpu.memory_space<vmem>>, vector<1x64xf32>
    %22 = vector.shape_cast %21 : vector<1x64xf32> to vector<1x1x64xf32>
    %23 = vector.broadcast %22 : vector<1x1x64xf32> to vector<8x2x64xf32>
    %24 = arith.mulf %20, %23 : vector<8x2x64xf32>
    %25 = arith.addf %19, %24 : vector<8x2x64xf32>
    %c2 = arith.constant 2 : index
    %c0_18 = arith.constant 0 : index
    %c0_19 = arith.constant 0 : index
    %26 = vector.load %arg15[%c2, %c0_18, %c0_19] : memref<11x2x64xf32, #tpu.memory_space<vmem>>, vector<8x2x64xf32>
    %c2_20 = arith.constant 2 : index
    %c0_21 = arith.constant 0 : index
    %27 = vector.load %arg3[%c2_20, %c0_21] : memref<4x64xf32, #tpu.memory_space<vmem>>, vector<1x64xf32>
    %28 = vector.shape_cast %27 : vector<1x64xf32> to vector<1x1x64xf32>
    %29 = vector.broadcast %28 : vector<1x1x64xf32> to vector<8x2x64xf32>
    %30 = arith.mulf %26, %29 : vector<8x2x64xf32>
    %31 = arith.addf %25, %30 : vector<8x2x64xf32>
    %c3_22 = arith.constant 3 : index
    %c0_23 = arith.constant 0 : index
    %c0_24 = arith.constant 0 : index
    %32 = vector.load %arg15[%c3_22, %c0_23, %c0_24] : memref<11x2x64xf32, #tpu.memory_space<vmem>>, vector<8x2x64xf32>
    %c3_25 = arith.constant 3 : index
    %c0_26 = arith.constant 0 : index
    %33 = vector.load %arg3[%c3_25, %c0_26] : memref<4x64xf32, #tpu.memory_space<vmem>>, vector<1x64xf32>
    %34 = vector.shape_cast %33 : vector<1x64xf32> to vector<1x1x64xf32>
    %35 = vector.broadcast %34 : vector<1x1x64xf32> to vector<8x2x64xf32>
    %36 = arith.mulf %32, %35 : vector<8x2x64xf32>
    %37 = arith.addf %31, %36 : vector<8x2x64xf32>
    %c0_27 = arith.constant 0 : index
    %c0_28 = arith.constant 0 : index
    %38 = vector.load %arg4[%c0_27, %c0_28] : memref<1x64xf32, #tpu.memory_space<vmem>>, vector<1x64xf32>
    %39 = vector.shape_cast %38 : vector<1x64xf32> to vector<1x1x64xf32>
    %40 = vector.broadcast %39 : vector<1x1x64xf32> to vector<8x2x64xf32>
    %41 = arith.addf %37, %40 : vector<8x2x64xf32>
    %cst_29 = arith.constant 0.000000e+00 : f32
    %42 = vector.broadcast %cst_29 : f32 to vector<8x2x64xf32>
    %43 = arith.subf %42, %41 : vector<8x2x64xf32>
    %44 = math.exp %43 : vector<8x2x64xf32>
    %cst_30 = arith.constant 1.000000e+00 : f32
    %45 = vector.broadcast %cst_30 : f32 to vector<8x2x64xf32>
    %46 = arith.addf %45, %44 : vector<8x2x64xf32>
    %cst_31 = arith.constant 1.000000e+00 : f32
    %47 = vector.broadcast %cst_31 : f32 to vector<8x2x64xf32>
    %48 = arith.divf %47, %46 : vector<8x2x64xf32>
    %49 = arith.mulf %41, %48 : vector<8x2x64xf32>
    %50 = vector.shape_cast %49 : vector<8x2x64xf32> to vector<16x64xf32>
    %51 = arith.truncf %50 : vector<16x64xf32> to vector<16x64xbf16>
    %c0_32 = arith.constant 0 : index
    %c0_33 = arith.constant 0 : index
    %52 = vector.load %arg5[%c0_32, %c0_33] : memref<64x96xbf16, #tpu.memory_space<vmem>>, vector<64x96xbf16>
    %cst_34 = arith.constant dense<0.000000e+00> : vector<16x96xf32>
    %53 = tpu.matmul %51, %52, %cst_34 {dimension_numbers = #tpu.dot_dimension_numbers<[1], [0], [0], [1], [0, 0, 1, 1], [], []>} : vector<16x64xbf16>, vector<64x96xbf16>, vector<16x96xf32> -> vector<16x96xf32>
    %54 = vector.extract_strided_slice %53 {offsets = [0, 0], sizes = [16, 64], strides = [1, 1]} : vector<16x96xf32> to vector<16x64xf32>
    %c0_35 = arith.constant 0 : index
    %c0_36 = arith.constant 0 : index
    %55 = vector.load %arg6[%c0_35, %c0_36] : memref<1x64xf32, #tpu.memory_space<vmem>>, vector<1x64xf32>
    %56 = vector.broadcast %55 : vector<1x64xf32> to vector<16x64xf32>
    %57 = arith.addf %54, %56 : vector<16x64xf32>
    %cst_37 = arith.constant 0.000000e+00 : f32
    %58 = vector.broadcast %cst_37 : f32 to vector<16x64xf32>
    %59 = arith.maximumf %57, %58 : vector<16x64xf32>
    %60 = math.absf %57 : vector<16x64xf32>
    %cst_38 = arith.constant 0.000000e+00 : f32
    %61 = vector.broadcast %cst_38 : f32 to vector<16x64xf32>
    %62 = arith.subf %61, %60 : vector<16x64xf32>
    %63 = math.exp %62 : vector<16x64xf32>
    %64 = math.log1p %63 : vector<16x64xf32>
    %65 = arith.addf %59, %64 : vector<16x64xf32>
    %66 = vector.shape_cast %65 : vector<16x64xf32> to vector<8x2x64xf32>
    %67 = vector.extract_strided_slice %53 {offsets = [0, 64], sizes = [16, 16], strides = [1, 1]} : vector<16x96xf32> to vector<16x16xf32>
    %68 = vector.shape_cast %67 : vector<16x16xf32> to vector<8x2x16xf32>
    %69 = vector.extract_strided_slice %53 {offsets = [0, 80], sizes = [16, 16], strides = [1, 1]} : vector<16x96xf32> to vector<16x16xf32>
    %70 = vector.shape_cast %69 : vector<16x16xf32> to vector<8x2x16xf32>
    %71 = vector.shape_cast %66 : vector<8x2x64xf32> to vector<8x2x1x64xf32>
    %c0_39 = arith.constant 0 : index
    %c0_40 = arith.constant 0 : index
    %72 = vector.load %arg7[%c0_39, %c0_40] : memref<16x64xf32, #tpu.memory_space<vmem>>, vector<16x64xf32>
    %73 = vector.shape_cast %72 : vector<16x64xf32> to vector<1x1x16x64xf32>
    %74 = vector.broadcast %71 : vector<8x2x1x64xf32> to vector<8x2x16x64xf32>
    %75 = vector.broadcast %73 : vector<1x1x16x64xf32> to vector<8x2x16x64xf32>
    %76 = arith.mulf %74, %75 : vector<8x2x16x64xf32>
    %77 = math.exp %76 : vector<8x2x16x64xf32>
    %c0_41 = arith.constant 0 : index
    %c0_42 = arith.constant 0 : index
    %c0_43 = arith.constant 0 : index
    %c0_44 = arith.constant 0 : index
    %78 = vector.load %arg16[%c0_41, %c0_42, %c0_43, %c0_44] : memref<8x2x16x64xf32, #tpu.memory_space<vmem>>, vector<8x2x16x64xf32>
    tpu.vector_store %arg16[%c0_41, %c0_42, %c0_43, %c0_44], %77 {strides = array<i32>} : memref<8x2x16x64xf32, #tpu.memory_space<vmem>>, vector<8x2x16x64xf32>,
    %79 = vector.shape_cast %68 : vector<8x2x16xf32> to vector<8x2x16x1xf32>
    %80 = arith.mulf %66, %49 : vector<8x2x64xf32>
    %81 = vector.shape_cast %80 : vector<8x2x64xf32> to vector<8x2x1x64xf32>
    %82 = vector.broadcast %79 : vector<8x2x16x1xf32> to vector<8x2x16x64xf32>
    %83 = vector.broadcast %81 : vector<8x2x1x64xf32> to vector<8x2x16x64xf32>
    %84 = arith.mulf %82, %83 : vector<8x2x16x64xf32>
    %c0_45 = arith.constant 0 : index
    %c0_46 = arith.constant 0 : index
    %c0_47 = arith.constant 0 : index
    %c0_48 = arith.constant 0 : index
    %85 = vector.load %arg17[%c0_45, %c0_46, %c0_47, %c0_48] : memref<8x2x16x64xf32, #tpu.memory_space<vmem>>, vector<8x2x16x64xf32>
    tpu.vector_store %arg17[%c0_45, %c0_46, %c0_47, %c0_48], %84 {strides = array<i32>} : memref<8x2x16x64xf32, #tpu.memory_space<vmem>>, vector<8x2x16x64xf32>,
    %c0_49 = arith.constant 0 : index
    %c0_50 = arith.constant 0 : index
    %c0_51 = arith.constant 0 : index
    %86 = vector.load %arg18[%c0_49, %c0_50, %c0_51] : memref<8x2x16xf32, #tpu.memory_space<vmem>>, vector<8x2x16xf32>
    tpu.vector_store %arg18[%c0_49, %c0_50, %c0_51], %70 {strides = array<i32>} : memref<8x2x16xf32, #tpu.memory_space<vmem>>, vector<8x2x16xf32>,
    %c0_52 = arith.constant 0 : index
    %c0_53 = arith.constant 0 : index
    %c0_54 = arith.constant 0 : index
    %87 = vector.load %arg14[%c0_52, %c0_53, %c0_54] : memref<2x16x64xf32, #tpu.memory_space<vmem>>, vector<2x16x64xf32>
    %c0_i32_55 = arith.constant 0 : i32
    %88 = arith.index_cast %c0_i32_55 : i32 to index
    %c0_56 = arith.constant 0 : index
    %c0_57 = arith.constant 0 : index
    %c0_58 = arith.constant 0 : index
    %89 = vector.load %arg16[%88, %c0_56, %c0_57, %c0_58] : memref<8x2x16x64xf32, #tpu.memory_space<vmem>>, vector<1x2x16x64xf32>
    %90 = vector.shape_cast %89 : vector<1x2x16x64xf32> to vector<2x16x64xf32>
    %91 = arith.mulf %90, %87 : vector<2x16x64xf32>
    %92 = arith.index_cast %c0_i32_55 : i32 to index
    %c0_59 = arith.constant 0 : index
    %c0_60 = arith.constant 0 : index
    %c0_61 = arith.constant 0 : index
    %93 = vector.load %arg17[%92, %c0_59, %c0_60, %c0_61] : memref<8x2x16x64xf32, #tpu.memory_space<vmem>>, vector<1x2x16x64xf32>
    %94 = vector.shape_cast %93 : vector<1x2x16x64xf32> to vector<2x16x64xf32>
    %95 = arith.addf %91, %94 : vector<2x16x64xf32>
    %96 = arith.index_cast %c0_i32_55 : i32 to index
    %c0_62 = arith.constant 0 : index
    %c0_63 = arith.constant 0 : index
    %97 = vector.load %arg18[%96, %c0_62, %c0_63] : memref<8x2x16xf32, #tpu.memory_space<vmem>>, vector<1x2x16xf32>
    %98 = vector.shape_cast %97 : vector<1x2x16xf32> to vector<2x16xf32>
    %99 = vector.shape_cast %98 : vector<2x16xf32> to vector<2x16x1xf32>
    %100 = vector.broadcast %99 : vector<2x16x1xf32> to vector<2x16x64xf32>
    %101 = arith.mulf %100, %95 : vector<2x16x64xf32>
    %cst_64 = arith.constant dense<0.000000e+00> : vector<2x64xf32>
    %102 = vector.multi_reduction <add>, %101, %cst_64 [1] : vector<2x16x64xf32> to vector<2x64xf32>
    %103 = arith.index_cast %c0_i32_55 : i32 to index
    %c0_65 = arith.constant 0 : index
    %c0_66 = arith.constant 0 : index
    %104 = vector.load %arg19[%103, %c0_65, %c0_66] : memref<8x2x64xf32, #tpu.memory_space<vmem>>, vector<1x2x64xf32>
    %105 = vector.shape_cast %104 : vector<1x2x64xf32> to vector<2x64xf32>
    %106 = vector.shape_cast %102 : vector<2x64xf32> to vector<1x2x64xf32>
    tpu.vector_store %arg19[%103, %c0_65, %c0_66], %106 {strides = array<i32>} : memref<8x2x64xf32, #tpu.memory_space<vmem>>, vector<1x2x64xf32>,
    %c1_i32 = arith.constant 1 : i32
    %107 = arith.index_cast %c1_i32 : i32 to index
    %c0_67 = arith.constant 0 : index
    %c0_68 = arith.constant 0 : index
    %c0_69 = arith.constant 0 : index
    %108 = vector.load %arg16[%107, %c0_67, %c0_68, %c0_69] : memref<8x2x16x64xf32, #tpu.memory_space<vmem>>, vector<1x2x16x64xf32>
    %109 = vector.shape_cast %108 : vector<1x2x16x64xf32> to vector<2x16x64xf32>
    %110 = arith.mulf %109, %95 : vector<2x16x64xf32>
    %111 = arith.index_cast %c1_i32 : i32 to index
    %c0_70 = arith.constant 0 : index
    %c0_71 = arith.constant 0 : index
    %c0_72 = arith.constant 0 : index
    %112 = vector.load %arg17[%111, %c0_70, %c0_71, %c0_72] : memref<8x2x16x64xf32, #tpu.memory_space<vmem>>, vector<1x2x16x64xf32>
    %113 = vector.shape_cast %112 : vector<1x2x16x64xf32> to vector<2x16x64xf32>
    %114 = arith.addf %110, %113 : vector<2x16x64xf32>
    %115 = arith.index_cast %c1_i32 : i32 to index
    %c0_73 = arith.constant 0 : index
    %c0_74 = arith.constant 0 : index
    %116 = vector.load %arg18[%115, %c0_73, %c0_74] : memref<8x2x16xf32, #tpu.memory_space<vmem>>, vector<1x2x16xf32>
    %117 = vector.shape_cast %116 : vector<1x2x16xf32> to vector<2x16xf32>
    %118 = vector.shape_cast %117 : vector<2x16xf32> to vector<2x16x1xf32>
    %119 = vector.broadcast %118 : vector<2x16x1xf32> to vector<2x16x64xf32>
    %120 = arith.mulf %119, %114 : vector<2x16x64xf32>
    %cst_75 = arith.constant dense<0.000000e+00> : vector<2x64xf32>
    %121 = vector.multi_reduction <add>, %120, %cst_75 [1] : vector<2x16x64xf32> to vector<2x64xf32>
    %122 = arith.index_cast %c1_i32 : i32 to index
    %c0_76 = arith.constant 0 : index
    %c0_77 = arith.constant 0 : index
    %123 = vector.load %arg19[%122, %c0_76, %c0_77] : memref<8x2x64xf32, #tpu.memory_space<vmem>>, vector<1x2x64xf32>
    %124 = vector.shape_cast %123 : vector<1x2x64xf32> to vector<2x64xf32>
    %125 = vector.shape_cast %121 : vector<2x64xf32> to vector<1x2x64xf32>
    tpu.vector_store %arg19[%122, %c0_76, %c0_77], %125 {strides = array<i32>} : memref<8x2x64xf32, #tpu.memory_space<vmem>>, vector<1x2x64xf32>,
    %c2_i32 = arith.constant 2 : i32
    %126 = arith.index_cast %c2_i32 : i32 to index
    %c0_78 = arith.constant 0 : index
    %c0_79 = arith.constant 0 : index
    %c0_80 = arith.constant 0 : index
    %127 = vector.load %arg16[%126, %c0_78, %c0_79, %c0_80] : memref<8x2x16x64xf32, #tpu.memory_space<vmem>>, vector<1x2x16x64xf32>
    %128 = vector.shape_cast %127 : vector<1x2x16x64xf32> to vector<2x16x64xf32>
    %129 = arith.mulf %128, %114 : vector<2x16x64xf32>
    %130 = arith.index_cast %c2_i32 : i32 to index
    %c0_81 = arith.constant 0 : index
    %c0_82 = arith.constant 0 : index
    %c0_83 = arith.constant 0 : index
    %131 = vector.load %arg17[%130, %c0_81, %c0_82, %c0_83] : memref<8x2x16x64xf32, #tpu.memory_space<vmem>>, vector<1x2x16x64xf32>
    %132 = vector.shape_cast %131 : vector<1x2x16x64xf32> to vector<2x16x64xf32>
    %133 = arith.addf %129, %132 : vector<2x16x64xf32>
    %134 = arith.index_cast %c2_i32 : i32 to index
    %c0_84 = arith.constant 0 : index
    %c0_85 = arith.constant 0 : index
    %135 = vector.load %arg18[%134, %c0_84, %c0_85] : memref<8x2x16xf32, #tpu.memory_space<vmem>>, vector<1x2x16xf32>
    %136 = vector.shape_cast %135 : vector<1x2x16xf32> to vector<2x16xf32>
    %137 = vector.shape_cast %136 : vector<2x16xf32> to vector<2x16x1xf32>
    %138 = vector.broadcast %137 : vector<2x16x1xf32> to vector<2x16x64xf32>
    %139 = arith.mulf %138, %133 : vector<2x16x64xf32>
    %cst_86 = arith.constant dense<0.000000e+00> : vector<2x64xf32>
    %140 = vector.multi_reduction <add>, %139, %cst_86 [1] : vector<2x16x64xf32> to vector<2x64xf32>
    %141 = arith.index_cast %c2_i32 : i32 to index
    %c0_87 = arith.constant 0 : index
    %c0_88 = arith.constant 0 : index
    %142 = vector.load %arg19[%141, %c0_87, %c0_88] : memref<8x2x64xf32, #tpu.memory_space<vmem>>, vector<1x2x64xf32>
    %143 = vector.shape_cast %142 : vector<1x2x64xf32> to vector<2x64xf32>
    %144 = vector.shape_cast %140 : vector<2x64xf32> to vector<1x2x64xf32>
    tpu.vector_store %arg19[%141, %c0_87, %c0_88], %144 {strides = array<i32>} : memref<8x2x64xf32, #tpu.memory_space<vmem>>, vector<1x2x64xf32>,
    %c3_i32 = arith.constant 3 : i32
    %145 = arith.index_cast %c3_i32 : i32 to index
    %c0_89 = arith.constant 0 : index
    %c0_90 = arith.constant 0 : index
    %c0_91 = arith.constant 0 : index
    %146 = vector.load %arg16[%145, %c0_89, %c0_90, %c0_91] : memref<8x2x16x64xf32, #tpu.memory_space<vmem>>, vector<1x2x16x64xf32>
    %147 = vector.shape_cast %146 : vector<1x2x16x64xf32> to vector<2x16x64xf32>
    %148 = arith.mulf %147, %133 : vector<2x16x64xf32>
    %149 = arith.index_cast %c3_i32 : i32 to index
    %c0_92 = arith.constant 0 : index
    %c0_93 = arith.constant 0 : index
    %c0_94 = arith.constant 0 : index
    %150 = vector.load %arg17[%149, %c0_92, %c0_93, %c0_94] : memref<8x2x16x64xf32, #tpu.memory_space<vmem>>, vector<1x2x16x64xf32>
    %151 = vector.shape_cast %150 : vector<1x2x16x64xf32> to vector<2x16x64xf32>
    %152 = arith.addf %148, %151 : vector<2x16x64xf32>
    %153 = arith.index_cast %c3_i32 : i32 to index
    %c0_95 = arith.constant 0 : index
    %c0_96 = arith.constant 0 : index
    %154 = vector.load %arg18[%153, %c0_95, %c0_96] : memref<8x2x16xf32, #tpu.memory_space<vmem>>, vector<1x2x16xf32>
    %155 = vector.shape_cast %154 : vector<1x2x16xf32> to vector<2x16xf32>
    %156 = vector.shape_cast %155 : vector<2x16xf32> to vector<2x16x1xf32>
    %157 = vector.broadcast %156 : vector<2x16x1xf32> to vector<2x16x64xf32>
    %158 = arith.mulf %157, %152 : vector<2x16x64xf32>
    %cst_97 = arith.constant dense<0.000000e+00> : vector<2x64xf32>
    %159 = vector.multi_reduction <add>, %158, %cst_97 [1] : vector<2x16x64xf32> to vector<2x64xf32>
    %160 = arith.index_cast %c3_i32 : i32 to index
    %c0_98 = arith.constant 0 : index
    %c0_99 = arith.constant 0 : index
    %161 = vector.load %arg19[%160, %c0_98, %c0_99] : memref<8x2x64xf32, #tpu.memory_space<vmem>>, vector<1x2x64xf32>
    %162 = vector.shape_cast %161 : vector<1x2x64xf32> to vector<2x64xf32>
    %163 = vector.shape_cast %159 : vector<2x64xf32> to vector<1x2x64xf32>
    tpu.vector_store %arg19[%160, %c0_98, %c0_99], %163 {strides = array<i32>} : memref<8x2x64xf32, #tpu.memory_space<vmem>>, vector<1x2x64xf32>,
    %c4_i32 = arith.constant 4 : i32
    %164 = arith.index_cast %c4_i32 : i32 to index
    %c0_100 = arith.constant 0 : index
    %c0_101 = arith.constant 0 : index
    %c0_102 = arith.constant 0 : index
    %165 = vector.load %arg16[%164, %c0_100, %c0_101, %c0_102] : memref<8x2x16x64xf32, #tpu.memory_space<vmem>>, vector<1x2x16x64xf32>
    %166 = vector.shape_cast %165 : vector<1x2x16x64xf32> to vector<2x16x64xf32>
    %167 = arith.mulf %166, %152 : vector<2x16x64xf32>
    %168 = arith.index_cast %c4_i32 : i32 to index
    %c0_103 = arith.constant 0 : index
    %c0_104 = arith.constant 0 : index
    %c0_105 = arith.constant 0 : index
    %169 = vector.load %arg17[%168, %c0_103, %c0_104, %c0_105] : memref<8x2x16x64xf32, #tpu.memory_space<vmem>>, vector<1x2x16x64xf32>
    %170 = vector.shape_cast %169 : vector<1x2x16x64xf32> to vector<2x16x64xf32>
    %171 = arith.addf %167, %170 : vector<2x16x64xf32>
    %172 = arith.index_cast %c4_i32 : i32 to index
    %c0_106 = arith.constant 0 : index
    %c0_107 = arith.constant 0 : index
    %173 = vector.load %arg18[%172, %c0_106, %c0_107] : memref<8x2x16xf32, #tpu.memory_space<vmem>>, vector<1x2x16xf32>
    %174 = vector.shape_cast %173 : vector<1x2x16xf32> to vector<2x16xf32>
    %175 = vector.shape_cast %174 : vector<2x16xf32> to vector<2x16x1xf32>
    %176 = vector.broadcast %175 : vector<2x16x1xf32> to vector<2x16x64xf32>
    %177 = arith.mulf %176, %171 : vector<2x16x64xf32>
    %cst_108 = arith.constant dense<0.000000e+00> : vector<2x64xf32>
    %178 = vector.multi_reduction <add>, %177, %cst_108 [1] : vector<2x16x64xf32> to vector<2x64xf32>
    %179 = arith.index_cast %c4_i32 : i32 to index
    %c0_109 = arith.constant 0 : index
    %c0_110 = arith.constant 0 : index
    %180 = vector.load %arg19[%179, %c0_109, %c0_110] : memref<8x2x64xf32, #tpu.memory_space<vmem>>, vector<1x2x64xf32>
    %181 = vector.shape_cast %180 : vector<1x2x64xf32> to vector<2x64xf32>
    %182 = vector.shape_cast %178 : vector<2x64xf32> to vector<1x2x64xf32>
    tpu.vector_store %arg19[%179, %c0_109, %c0_110], %182 {strides = array<i32>} : memref<8x2x64xf32, #tpu.memory_space<vmem>>, vector<1x2x64xf32>,
    %c5_i32 = arith.constant 5 : i32
    %183 = arith.index_cast %c5_i32 : i32 to index
    %c0_111 = arith.constant 0 : index
    %c0_112 = arith.constant 0 : index
    %c0_113 = arith.constant 0 : index
    %184 = vector.load %arg16[%183, %c0_111, %c0_112, %c0_113] : memref<8x2x16x64xf32, #tpu.memory_space<vmem>>, vector<1x2x16x64xf32>
    %185 = vector.shape_cast %184 : vector<1x2x16x64xf32> to vector<2x16x64xf32>
    %186 = arith.mulf %185, %171 : vector<2x16x64xf32>
    %187 = arith.index_cast %c5_i32 : i32 to index
    %c0_114 = arith.constant 0 : index
    %c0_115 = arith.constant 0 : index
    %c0_116 = arith.constant 0 : index
    %188 = vector.load %arg17[%187, %c0_114, %c0_115, %c0_116] : memref<8x2x16x64xf32, #tpu.memory_space<vmem>>, vector<1x2x16x64xf32>
    %189 = vector.shape_cast %188 : vector<1x2x16x64xf32> to vector<2x16x64xf32>
    %190 = arith.addf %186, %189 : vector<2x16x64xf32>
    %191 = arith.index_cast %c5_i32 : i32 to index
    %c0_117 = arith.constant 0 : index
    %c0_118 = arith.constant 0 : index
    %192 = vector.load %arg18[%191, %c0_117, %c0_118] : memref<8x2x16xf32, #tpu.memory_space<vmem>>, vector<1x2x16xf32>
    %193 = vector.shape_cast %192 : vector<1x2x16xf32> to vector<2x16xf32>
    %194 = vector.shape_cast %193 : vector<2x16xf32> to vector<2x16x1xf32>
    %195 = vector.broadcast %194 : vector<2x16x1xf32> to vector<2x16x64xf32>
    %196 = arith.mulf %195, %190 : vector<2x16x64xf32>
    %cst_119 = arith.constant dense<0.000000e+00> : vector<2x64xf32>
    %197 = vector.multi_reduction <add>, %196, %cst_119 [1] : vector<2x16x64xf32> to vector<2x64xf32>
    %198 = arith.index_cast %c5_i32 : i32 to index
    %c0_120 = arith.constant 0 : index
    %c0_121 = arith.constant 0 : index
    %199 = vector.load %arg19[%198, %c0_120, %c0_121] : memref<8x2x64xf32, #tpu.memory_space<vmem>>, vector<1x2x64xf32>
    %200 = vector.shape_cast %199 : vector<1x2x64xf32> to vector<2x64xf32>
    %201 = vector.shape_cast %197 : vector<2x64xf32> to vector<1x2x64xf32>
    tpu.vector_store %arg19[%198, %c0_120, %c0_121], %201 {strides = array<i32>} : memref<8x2x64xf32, #tpu.memory_space<vmem>>, vector<1x2x64xf32>,
    %c6_i32 = arith.constant 6 : i32
    %202 = arith.index_cast %c6_i32 : i32 to index
    %c0_122 = arith.constant 0 : index
    %c0_123 = arith.constant 0 : index
    %c0_124 = arith.constant 0 : index
    %203 = vector.load %arg16[%202, %c0_122, %c0_123, %c0_124] : memref<8x2x16x64xf32, #tpu.memory_space<vmem>>, vector<1x2x16x64xf32>
    %204 = vector.shape_cast %203 : vector<1x2x16x64xf32> to vector<2x16x64xf32>
    %205 = arith.mulf %204, %190 : vector<2x16x64xf32>
    %206 = arith.index_cast %c6_i32 : i32 to index
    %c0_125 = arith.constant 0 : index
    %c0_126 = arith.constant 0 : index
    %c0_127 = arith.constant 0 : index
    %207 = vector.load %arg17[%206, %c0_125, %c0_126, %c0_127] : memref<8x2x16x64xf32, #tpu.memory_space<vmem>>, vector<1x2x16x64xf32>
    %208 = vector.shape_cast %207 : vector<1x2x16x64xf32> to vector<2x16x64xf32>
    %209 = arith.addf %205, %208 : vector<2x16x64xf32>
    %210 = arith.index_cast %c6_i32 : i32 to index
    %c0_128 = arith.constant 0 : index
    %c0_129 = arith.constant 0 : index
    %211 = vector.load %arg18[%210, %c0_128, %c0_129] : memref<8x2x16xf32, #tpu.memory_space<vmem>>, vector<1x2x16xf32>
    %212 = vector.shape_cast %211 : vector<1x2x16xf32> to vector<2x16xf32>
    %213 = vector.shape_cast %212 : vector<2x16xf32> to vector<2x16x1xf32>
    %214 = vector.broadcast %213 : vector<2x16x1xf32> to vector<2x16x64xf32>
    %215 = arith.mulf %214, %209 : vector<2x16x64xf32>
    %cst_130 = arith.constant dense<0.000000e+00> : vector<2x64xf32>
    %216 = vector.multi_reduction <add>, %215, %cst_130 [1] : vector<2x16x64xf32> to vector<2x64xf32>
    %217 = arith.index_cast %c6_i32 : i32 to index
    %c0_131 = arith.constant 0 : index
    %c0_132 = arith.constant 0 : index
    %218 = vector.load %arg19[%217, %c0_131, %c0_132] : memref<8x2x64xf32, #tpu.memory_space<vmem>>, vector<1x2x64xf32>
    %219 = vector.shape_cast %218 : vector<1x2x64xf32> to vector<2x64xf32>
    %220 = vector.shape_cast %216 : vector<2x64xf32> to vector<1x2x64xf32>
    tpu.vector_store %arg19[%217, %c0_131, %c0_132], %220 {strides = array<i32>} : memref<8x2x64xf32, #tpu.memory_space<vmem>>, vector<1x2x64xf32>,
    %c7_i32 = arith.constant 7 : i32
    %221 = arith.index_cast %c7_i32 : i32 to index
    %c0_133 = arith.constant 0 : index
    %c0_134 = arith.constant 0 : index
    %c0_135 = arith.constant 0 : index
    %222 = vector.load %arg16[%221, %c0_133, %c0_134, %c0_135] : memref<8x2x16x64xf32, #tpu.memory_space<vmem>>, vector<1x2x16x64xf32>
    %223 = vector.shape_cast %222 : vector<1x2x16x64xf32> to vector<2x16x64xf32>
    %224 = arith.mulf %223, %209 : vector<2x16x64xf32>
    %225 = arith.index_cast %c7_i32 : i32 to index
    %c0_136 = arith.constant 0 : index
    %c0_137 = arith.constant 0 : index
    %c0_138 = arith.constant 0 : index
    %226 = vector.load %arg17[%225, %c0_136, %c0_137, %c0_138] : memref<8x2x16x64xf32, #tpu.memory_space<vmem>>, vector<1x2x16x64xf32>
    %227 = vector.shape_cast %226 : vector<1x2x16x64xf32> to vector<2x16x64xf32>
    %228 = arith.addf %224, %227 : vector<2x16x64xf32>
    %229 = arith.index_cast %c7_i32 : i32 to index
    %c0_139 = arith.constant 0 : index
    %c0_140 = arith.constant 0 : index
    %230 = vector.load %arg18[%229, %c0_139, %c0_140] : memref<8x2x16xf32, #tpu.memory_space<vmem>>, vector<1x2x16xf32>
    %231 = vector.shape_cast %230 : vector<1x2x16xf32> to vector<2x16xf32>
    %232 = vector.shape_cast %231 : vector<2x16xf32> to vector<2x16x1xf32>
    %233 = vector.broadcast %232 : vector<2x16x1xf32> to vector<2x16x64xf32>
    %234 = arith.mulf %233, %228 : vector<2x16x64xf32>
    %cst_141 = arith.constant dense<0.000000e+00> : vector<2x64xf32>
    %235 = vector.multi_reduction <add>, %234, %cst_141 [1] : vector<2x16x64xf32> to vector<2x64xf32>
    %236 = arith.index_cast %c7_i32 : i32 to index
    %c0_142 = arith.constant 0 : index
    %c0_143 = arith.constant 0 : index
    %237 = vector.load %arg19[%236, %c0_142, %c0_143] : memref<8x2x64xf32, #tpu.memory_space<vmem>>, vector<1x2x64xf32>
    %238 = vector.shape_cast %237 : vector<1x2x64xf32> to vector<2x64xf32>
    %239 = vector.shape_cast %235 : vector<2x64xf32> to vector<1x2x64xf32>
    tpu.vector_store %arg19[%236, %c0_142, %c0_143], %239 {strides = array<i32>} : memref<8x2x64xf32, #tpu.memory_space<vmem>>, vector<1x2x64xf32>,
    %c8_i32 = arith.constant 8 : i32
    %c0_144 = arith.constant 0 : index
    %c0_145 = arith.constant 0 : index
    %c0_146 = arith.constant 0 : index
    %240 = vector.load %arg14[%c0_144, %c0_145, %c0_146] : memref<2x16x64xf32, #tpu.memory_space<vmem>>, vector<2x16x64xf32>
    tpu.vector_store %arg14[%c0_144, %c0_145, %c0_146], %228 {strides = array<i32>} : memref<2x16x64xf32, #tpu.memory_space<vmem>>, vector<2x16x64xf32>,
    %c0_147 = arith.constant 0 : index
    %c0_148 = arith.constant 0 : index
    %c0_149 = arith.constant 0 : index
    %241 = vector.load %arg19[%c0_147, %c0_148, %c0_149] : memref<8x2x64xf32, #tpu.memory_space<vmem>>, vector<8x2x64xf32>
    %242 = vector.shape_cast %241 : vector<8x2x64xf32> to vector<16x64xf32>
    %c0_150 = arith.constant 0 : index
    %c0_151 = arith.constant 0 : index
    %243 = vector.load %arg8[%c0_150, %c0_151] : memref<1x64xf32, #tpu.memory_space<vmem>>, vector<1x64xf32>
    %244 = vector.broadcast %243 : vector<1x64xf32> to vector<16x64xf32>
    %245 = arith.mulf %50, %244 : vector<16x64xf32>
    %246 = arith.addf %242, %245 : vector<16x64xf32>
    %cst_152 = arith.constant 0.000000e+00 : f32
    %247 = vector.broadcast %cst_152 : f32 to vector<16x64xf32>
    %248 = arith.subf %247, %12 : vector<16x64xf32>
    %249 = math.exp %248 : vector<16x64xf32>
    %cst_153 = arith.constant 1.000000e+00 : f32
    %250 = vector.broadcast %cst_153 : f32 to vector<16x64xf32>
    %251 = arith.addf %250, %249 : vector<16x64xf32>
    %cst_154 = arith.constant 1.000000e+00 : f32
    %252 = vector.broadcast %cst_154 : f32 to vector<16x64xf32>
    %253 = arith.divf %252, %251 : vector<16x64xf32>
    %254 = arith.mulf %12, %253 : vector<16x64xf32>
    %255 = arith.mulf %246, %254 : vector<16x64xf32>
    %256 = arith.truncf %255 : vector<16x64xf32> to vector<16x64xbf16>
    %c0_155 = arith.constant 0 : index
    %c0_156 = arith.constant 0 : index
    %257 = vector.load %arg9[%c0_155, %c0_156] : memref<64x32xbf16, #tpu.memory_space<vmem>>, vector<64x32xbf16>
    %cst_157 = arith.constant dense<0.000000e+00> : vector<16x32xf32>
    %258 = tpu.matmul %256, %257, %cst_157 {dimension_numbers = #tpu.dot_dimension_numbers<[1], [0], [0], [1], [0, 0, 1, 1], [], []>} : vector<16x64xbf16>, vector<64x32xbf16>, vector<16x32xf32> -> vector<16x32xf32>
    %259 = arith.addf %7, %258 : vector<16x32xf32>
    %260 = arith.mulf %259, %259 : vector<16x32xf32>
    %cst_158 = arith.constant dense<0.000000e+00> : vector<16xf32>
    %261 = vector.multi_reduction <add>, %260, %cst_158 [1] : vector<16x32xf32> to vector<16xf32>
    %262 = vector.shape_cast %261 : vector<16xf32> to vector<16x1xf32>
    %cst_159 = arith.constant 3.200000e+01 : f32
    %263 = vector.broadcast %cst_159 : f32 to vector<16x1xf32>
    %264 = arith.divf %262, %263 : vector<16x1xf32>
    %cst_160 = arith.constant 9.99999974E-6 : f32
    %265 = vector.broadcast %cst_160 : f32 to vector<16x1xf32>
    %266 = arith.addf %264, %265 : vector<16x1xf32>
    %267 = math.rsqrt %266 : vector<16x1xf32>
    %268 = vector.broadcast %267 : vector<16x1xf32> to vector<16x32xf32>
    %269 = arith.mulf %259, %268 : vector<16x32xf32>
    %c0_161 = arith.constant 0 : index
    %c0_162 = arith.constant 0 : index
    %270 = vector.load %arg10[%c0_161, %c0_162] : memref<1x32xf32, #tpu.memory_space<vmem>>, vector<1x32xf32>
    %271 = vector.broadcast %270 : vector<1x32xf32> to vector<16x32xf32>
    %272 = arith.mulf %269, %271 : vector<16x32xf32>
    %273 = arith.truncf %272 : vector<16x32xf32> to vector<16x32xbf16>
    %c0_163 = arith.constant 0 : index
    %c0_164 = arith.constant 0 : index
    %274 = vector.load %arg11[%c0_163, %c0_164] : memref<32x256xbf16, #tpu.memory_space<vmem>>, vector<32x256xbf16>
    %cst_165 = arith.constant dense<0.000000e+00> : vector<16x256xf32>
    %275 = tpu.matmul %273, %274, %cst_165 {dimension_numbers = #tpu.dot_dimension_numbers<[1], [0], [0], [1], [0, 0, 1, 1], [], []>} : vector<16x32xbf16>, vector<32x256xbf16>, vector<16x256xf32> -> vector<16x256xf32>
    %276 = vector.extract_strided_slice %275 {offsets = [0, 0], sizes = [16, 128], strides = [1, 1]} : vector<16x256xf32> to vector<16x128xf32>
    %277 = vector.extract_strided_slice %275 {offsets = [0, 128], sizes = [16, 128], strides = [1, 1]} : vector<16x256xf32> to vector<16x128xf32>
    %cst_166 = arith.constant 0.000000e+00 : f32
    %278 = vector.broadcast %cst_166 : f32 to vector<16x128xf32>
    %279 = arith.subf %278, %277 : vector<16x128xf32>
    %280 = math.exp %279 : vector<16x128xf32>
    %cst_167 = arith.constant 1.000000e+00 : f32
    %281 = vector.broadcast %cst_167 : f32 to vector<16x128xf32>
    %282 = arith.addf %281, %280 : vector<16x128xf32>
    %cst_168 = arith.constant 1.000000e+00 : f32
    %283 = vector.broadcast %cst_168 : f32 to vector<16x128xf32>
    %284 = arith.divf %283, %282 : vector<16x128xf32>
    %285 = arith.mulf %277, %284 : vector<16x128xf32>
    %286 = arith.mulf %276, %285 : vector<16x128xf32>
    %287 = arith.truncf %286 : vector<16x128xf32> to vector<16x128xbf16>
    %c0_169 = arith.constant 0 : index
    %c0_170 = arith.constant 0 : index
    %288 = vector.load %arg12[%c0_169, %c0_170] : memref<128x32xbf16, #tpu.memory_space<vmem>>, vector<128x32xbf16>
    %cst_171 = arith.constant dense<0.000000e+00> : vector<16x32xf32>
    %289 = tpu.matmul %287, %288, %cst_171 {dimension_numbers = #tpu.dot_dimension_numbers<[1], [0], [0], [1], [0, 0, 1, 1], [], []>} : vector<16x128xbf16>, vector<128x32xbf16>, vector<16x32xf32> -> vector<16x32xf32>
    %290 = arith.addf %259, %289 : vector<16x32xf32>
    %291 = vector.shape_cast %290 : vector<16x32xf32> to vector<8x2x32xf32>
    %c0_172 = arith.constant 0 : index
    %c0_173 = arith.constant 0 : index
    %c0_174 = arith.constant 0 : index
    %292 = vector.load %arg13[%c0_172, %c0_173, %c0_174] : memref<8x2x32xf32, #tpu.memory_space<vmem>>, vector<8x2x32xf32>
    tpu.vector_store %arg13[%c0_172, %c0_173, %c0_174], %291 {strides = array<i32>} : memref<8x2x32xf32, #tpu.memory_space<vmem>>, vector<8x2x32xf32>,
    return
  }
  func.func @transform_0(%arg0: i32) -> (i32, i32, i32) {
    %c0_i32 = arith.constant 0 : i32
    %c0_i32_0 = arith.constant 0 : i32
    %c0_i32_1 = arith.constant 0 : i32
    return %arg0, %c0_i32, %c0_i32_0 : i32, i32, i32
  }
  func.func @transform_1(%arg0: i32) -> (i32, i32) {
    %c0_i32 = arith.constant 0 : i32
    %c0_i32_0 = arith.constant 0 : i32
    %c0_i32_1 = arith.constant 0 : i32
    return %c0_i32, %c0_i32_0 : i32, i32
  }
  func.func @transform_2(%arg0: i32) -> (i32, i32) {
    %c0_i32 = arith.constant 0 : i32
    %c0_i32_0 = arith.constant 0 : i32
    %c0_i32_1 = arith.constant 0 : i32
    return %c0_i32, %c0_i32_0 : i32, i32
  }
  func.func @transform_3(%arg0: i32) -> (i32, i32) {
    %c0_i32 = arith.constant 0 : i32
    %c0_i32_0 = arith.constant 0 : i32
    %c0_i32_1 = arith.constant 0 : i32
    return %c0_i32, %c0_i32_0 : i32, i32
  }
  func.func @transform_4(%arg0: i32) -> (i32, i32) {
    %c0_i32 = arith.constant 0 : i32
    %c0_i32_0 = arith.constant 0 : i32
    %c0_i32_1 = arith.constant 0 : i32
    return %c0_i32, %c0_i32_0 : i32, i32
  }
  func.func @transform_5(%arg0: i32) -> (i32, i32) {
    %c0_i32 = arith.constant 0 : i32
    %c0_i32_0 = arith.constant 0 : i32
    %c0_i32_1 = arith.constant 0 : i32
    return %c0_i32, %c0_i32_0 : i32, i32
  }
  func.func @transform_6(%arg0: i32) -> (i32, i32) {
    %c0_i32 = arith.constant 0 : i32
    %c0_i32_0 = arith.constant 0 : i32
    %c0_i32_1 = arith.constant 0 : i32
    return %c0_i32, %c0_i32_0 : i32, i32
  }
  func.func @transform_7(%arg0: i32) -> (i32, i32) {
    %c0_i32 = arith.constant 0 : i32
    %c0_i32_0 = arith.constant 0 : i32
    %c0_i32_1 = arith.constant 0 : i32
    return %c0_i32, %c0_i32_0 : i32, i32
  }
  func.func @transform_8(%arg0: i32) -> (i32, i32) {
    %c0_i32 = arith.constant 0 : i32
    %c0_i32_0 = arith.constant 0 : i32
    %c0_i32_1 = arith.constant 0 : i32
    return %c0_i32, %c0_i32_0 : i32, i32
  }
  func.func @transform_9(%arg0: i32) -> (i32, i32) {
    %c0_i32 = arith.constant 0 : i32
    %c0_i32_0 = arith.constant 0 : i32
    %c0_i32_1 = arith.constant 0 : i32
    return %c0_i32, %c0_i32_0 : i32, i32
  }
  func.func @transform_10(%arg0: i32) -> (i32, i32) {
    %c0_i32 = arith.constant 0 : i32
    %c0_i32_0 = arith.constant 0 : i32
    %c0_i32_1 = arith.constant 0 : i32
    return %c0_i32, %c0_i32_0 : i32, i32
  }
  func.func @transform_11(%arg0: i32) -> (i32, i32) {
    %c0_i32 = arith.constant 0 : i32
    %c0_i32_0 = arith.constant 0 : i32
    %c0_i32_1 = arith.constant 0 : i32
    return %c0_i32, %c0_i32_0 : i32, i32
  }
  func.func @transform_12(%arg0: i32) -> (i32, i32, i32) {
    %c0_i32 = arith.constant 0 : i32
    %c0_i32_0 = arith.constant 0 : i32
    %c0_i32_1 = arith.constant 0 : i32
    return %arg0, %c0_i32, %c0_i32_0 : i32, i32, i32
  }
}

</mosaic_0001>

<llo_original>
// kernel: mamba_block.1
$region0: #{mamba_block.1}
  #allocation0 [shape = 'u32[]', space=smem, size = 0x4, offset = 0x4, fixed_abs, tag = 'smem constant byte address 0x4 - core index']
  #allocation1 [shape = 'u32[144,128]{1,0:T(1,128)}', space=vmem, size = 0x12000, scoped, tag = 'internal scratch']
  #allocation2 [shape = 'f32[2,16,64]{2,1,0:T(8,128)}', space=vmem, size = 0x4000, scoped, tag = 'scratch operand']
  #allocation3 [shape = 'f32[11,2,64]{2,1,0:T(2,128)}', space=vmem, size = 0x2c00, scoped, tag = 'scratch operand']
  #allocation4 [shape = 'f32[8,2,16,64]{3,2,1,0:T(8,128)}', space=vmem, size = 0x20000, scoped, tag = 'scratch operand']
  #allocation5 [shape = 'f32[8,2,16,64]{3,2,1,0:T(8,128)}', space=vmem, size = 0x20000, scoped, tag = 'scratch operand']
  #allocation6 [shape = 'f32[8,2,16]{2,1,0:T(2,128)}', space=vmem, size = 0x2000, scoped, tag = 'scratch operand']
  #allocation7 [shape = 'f32[8,2,64]{2,1,0:T(2,128)}', space=vmem, size = 0x2000, scoped, tag = 'scratch operand']
  %s0 = inlined_call_operand.vmem [shape: f32[16,2,32], index: 0, kind: input, shape index: {}]
  %s1 = inlined_call_operand.vmem [shape: bf16[32,128], index: 1, kind: input, shape index: {}]
  %s2 = inlined_call_operand.vmem [shape: f32[4,64], index: 2, kind: input, shape index: {}]
  %s3 = inlined_call_operand.vmem [shape: f32[1,64], index: 3, kind: input, shape index: {}]
  %s4 = inlined_call_operand.vmem [shape: bf16[64,96], index: 4, kind: input, shape index: {}]
  %s5 = inlined_call_operand.vmem [shape: f32[1,64], index: 5, kind: input, shape index: {}]
  %s6 = inlined_call_operand.vmem [shape: f32[16,64], index: 6, kind: input, shape index: {}]
  %s7 = inlined_call_operand.vmem [shape: f32[1,64], index: 7, kind: input, shape index: {}]
  %s8 = inlined_call_operand.vmem [shape: bf16[64,32], index: 8, kind: input, shape index: {}]
  %s9 = inlined_call_operand.vmem [shape: f32[1,32], index: 9, kind: input, shape index: {}]
  %s10 = inlined_call_operand.vmem [shape: bf16[32,256], index: 10, kind: input, shape index: {}]
  %s11 = inlined_call_operand.vmem [shape: bf16[128,32], index: 11, kind: input, shape index: {}]
  %s12 = inlined_call_operand.vmem [shape: f32[16,2,32], index: 12, kind: output, shape index: {}]
  %s13 = sld [smem:[#allocation0]]
  $region89: #{mamba_block.1} parent=0
    _
  %s15 = ssub.s32 1, %s13
  %s16 = scalar_select 0, %s15, %s13
  loop: start=0, step=1, limit=4
  $region2: #{mamba_block.1} parent=0 // loop_pre_header
    _
  $region3: #{mamba_block.1} parent=0 // loop_header
    %s18 = sphi 0, %s22
    %p19 = scmp.ge.s32.totalorder %s18, 4
    %s28 = sphi 0, %s30
    %s31 = sphi 0, %s28
    %s32 = sphi 0, %s31
    %s48 = sphi 0, %s32
    %s52 = sphi 0, %s52
    %s54 = sphi 0, %s52
    %s55 = sphi 0, %s54
    %s69 = sphi 0, %s55
    %s73 = sphi 0, %s73
    %s75 = sphi 0, %s73
    %s76 = sphi 0, %s75
    %s90 = sphi 0, %s76
    %s94 = sphi 0, %s94
    %s96 = sphi 0, %s94
    %s97 = sphi 0, %s96
    %s111 = sphi 0, %s97
    %s115 = sphi 0, %s115
    %s117 = sphi 0, %s115
    %s118 = sphi 0, %s117
    %s132 = sphi 0, %s118
    %s136 = sphi 0, %s136
    %s138 = sphi 0, %s136
    %s139 = sphi 0, %s138
    %s153 = sphi 0, %s139
    %s157 = sphi 0, %s157
    %s159 = sphi 0, %s157
    %s160 = sphi 0, %s159
    %s174 = sphi 0, %s160
    %s178 = sphi 0, %s178
    %s180 = sphi 0, %s178
    %s181 = sphi 0, %s180
    %s195 = sphi 0, %s181
    %s199 = sphi 0, %s199
    %s201 = sphi 0, %s199
    %s202 = sphi 0, %s201
    %s216 = sphi 0, %s202
    %s220 = sphi 0, %s220
    %s222 = sphi 0, %s220
    %s223 = sphi 0, %s222
    %s237 = sphi 0, %s223
    %s241 = sphi 0, %s241
    %s243 = sphi 0, %s241
    %s244 = sphi 0, %s243
    %s258 = sphi 0, %s244
    %s262 = sphi 0, %s262
    %s264 = sphi 0, %s262
    %s265 = sphi 0, %s264
    %s279 = sphi 0, %s265
    %s285 = sphi 0, %s287
    %s288 = sphi 0, %s285
    %s289 = sphi 0, %s288
    %s305 = sphi 0, %s289
  $region4: #{mamba_block.1} parent=0 // loop_header_branch
    %21 = sbr.rel (%p19) target = $region8
  $region5: #{mamba_block.1} parent=0 // loop_body
    %s23 = ssub.s32 %s18, 1
    %s24 = ssub.s32 %s18, 2
    %s25 = sadd.s32 %s18, 1
    %s26 = ssub.s32 %s18, %s25
    %p27 = scmp.eq.s32.totalorder %s26, 0
    %s29 = sadd.s32 %s28, 1
    %s30 = scalar_select %p27, %s28, %s29
    %p33 = pneg %p27
    %p34 = scmp.eq.s32.totalorder %s18, 1
    %p35 = por %p33, %p34
    %p36 = scmp.ne.s32.totalorder %s28, %s31
    %p37 = scmp.eq.s32.totalorder %s18, 0
    %p38 = por %p36, %p37
    %p39 = scmp.ne.s32.totalorder %s28, %s31
    %p40 = scmp.eq.s32.totalorder %s23, 1
    %p41 = por %p39, %p40
    %p42 = scmp.ne.s32.totalorder %s31, %s32
    %p43 = scmp.eq.s32.totalorder %s23, 0
    %p44 = por %p42, %p43
    %p45 = scmp.ne.s32.totalorder %s31, %s32
    %p46 = scmp.eq.s32.totalorder %s24, 1
    %p47 = por %p45, %p46
    %p49 = scmp.ne.s32.totalorder %s32, %s48
    %p50 = scmp.eq.s32.totalorder %s24, 0
    %p51 = por %p49, %p50
    %s53 = sadd.s32 %s52, 1
    %p56 = scmp.eq.s32.totalorder %s18, 1
    %p57 = scmp.ne.s32.totalorder %s52, %s54
    %p58 = scmp.eq.s32.totalorder %s18, 0
    %p59 = por %p57, %p58
    %p60 = scmp.ne.s32.totalorder %s52, %s54
    %p61 = scmp.eq.s32.totalorder %s23, 1
    %p62 = por %p60, %p61
    %p63 = scmp.ne.s32.totalorder %s54, %s55
    %p64 = scmp.eq.s32.totalorder %s23, 0
    %p65 = por %p63, %p64
    %p66 = scmp.ne.s32.totalorder %s54, %s55
    %p67 = scmp.eq.s32.totalorder %s24, 1
    %p68 = por %p66, %p67
    %p70 = scmp.ne.s32.totalorder %s55, %s69
    %p71 = scmp.eq.s32.totalorder %s24, 0
    %p72 = por %p70, %p71
    %s74 = sadd.s32 %s73, 1
    %p77 = scmp.eq.s32.totalorder %s18, 1
    %p78 = scmp.ne.s32.totalorder %s73, %s75
    %p79 = scmp.eq.s32.totalorder %s18, 0
    %p80 = por %p78, %p79
    %p81 = scmp.ne.s32.totalorder %s73, %s75
    %p82 = scmp.eq.s32.totalorder %s23, 1
    %p83 = por %p81, %p82
    %p84 = scmp.ne.s32.totalorder %s75, %s76
    %p85 = scmp.eq.s32.totalorder %s23, 0
    %p86 = por %p84, %p85
    %p87 = scmp.ne.s32.totalorder %s75, %s76
    %p88 = scmp.eq.s32.totalorder %s24, 1
    %p89 = por %p87, %p88
    %p91 = scmp.ne.s32.totalorder %s76, %s90
    %p92 = scmp.eq.s32.totalorder %s24, 0
    %p93 = por %p91, %p92
    %s95 = sadd.s32 %s94, 1
    %p98 = scmp.eq.s32.totalorder %s18, 1
    %p99 = scmp.ne.s32.totalorder %s94, %s96
    %p100 = scmp.eq.s32.totalorder %s18, 0
    %p101 = por %p99, %p100
    %p102 = scmp.ne.s32.totalorder %s94, %s96
    %p103 = scmp.eq.s32.totalorder %s23, 1
    %p104 = por %p102, %p103
    %p105 = scmp.ne.s32.totalorder %s96, %s97
    %p106 = scmp.eq.s32.totalorder %s23, 0
    %p107 = por %p105, %p106
    %p108 = scmp.ne.s32.totalorder %s96, %s97
    %p109 = scmp.eq.s32.totalorder %s24, 1
    %p110 = por %p108, %p109
    %p112 = scmp.ne.s32.totalorder %s97, %s111
    %p113 = scmp.eq.s32.totalorder %s24, 0
    %p114 = por %p112, %p113
    %s116 = sadd.s32 %s115, 1
    %p119 = scmp.eq.s32.totalorder %s18, 1
    %p120 = scmp.ne.s32.totalorder %s115, %s117
    %p121 = scmp.eq.s32.totalorder %s18, 0
    %p122 = por %p120, %p121
    %p123 = scmp.ne.s32.totalorder %s115, %s117
    %p124 = scmp.eq.s32.totalorder %s23, 1
    %p125 = por %p123, %p124
    %p126 = scmp.ne.s32.totalorder %s117, %s118
    %p127 = scmp.eq.s32.totalorder %s23, 0
    %p128 = por %p126, %p127
    %p129 = scmp.ne.s32.totalorder %s117, %s118
    %p130 = scmp.eq.s32.totalorder %s24, 1
    %p131 = por %p129, %p130
    %p133 = scmp.ne.s32.totalorder %s118, %s132
    %p134 = scmp.eq.s32.totalorder %s24, 0
    %p135 = por %p133, %p134
    %s137 = sadd.s32 %s136, 1
    %p140 = scmp.eq.s32.totalorder %s18, 1
    %p141 = scmp.ne.s32.totalorder %s136, %s138
    %p142 = scmp.eq.s32.totalorder %s18, 0
    %p143 = por %p141, %p142
    %p144 = scmp.ne.s32.totalorder %s136, %s138
    %p145 = scmp.eq.s32.totalorder %s23, 1
    %p146 = por %p144, %p145
    %p147 = scmp.ne.s32.totalorder %s138, %s139
    %p148 = scmp.eq.s32.totalorder %s23, 0
    %p149 = por %p147, %p148
    %p150 = scmp.ne.s32.totalorder %s138, %s139
    %p151 = scmp.eq.s32.totalorder %s24, 1
    %p152 = por %p150, %p151
    %p154 = scmp.ne.s32.totalorder %s139, %s153
    %p155 = scmp.eq.s32.totalorder %s24, 0
    %p156 = por %p154, %p155
    %s158 = sadd.s32 %s157, 1
    %p161 = scmp.eq.s32.totalorder %s18, 1
    %p162 = scmp.ne.s32.totalorder %s157, %s159
    %p163 = scmp.eq.s32.totalorder %s18, 0
    %p164 = por %p162, %p163
    %p165 = scmp.ne.s32.totalorder %s157, %s159
    %p166 = scmp.eq.s32.totalorder %s23, 1
    %p167 = por %p165, %p166
    %p168 = scmp.ne.s32.totalorder %s159, %s160
    %p169 = scmp.eq.s32.totalorder %s23, 0
    %p170 = por %p168, %p169
    %p171 = scmp.ne.s32.totalorder %s159, %s160
    %p172 = scmp.eq.s32.totalorder %s24, 1
    %p173 = por %p171, %p172
    %p175 = scmp.ne.s32.totalorder %s160, %s174
    %p176 = scmp.eq.s32.totalorder %s24, 0
    %p177 = por %p175, %p176
    %s179 = sadd.s32 %s178, 1
    %p182 = scmp.eq.s32.totalorder %s18, 1
    %p183 = scmp.ne.s32.totalorder %s178, %s180
    %p184 = scmp.eq.s32.totalorder %s18, 0
    %p185 = por %p183, %p184
    %p186 = scmp.ne.s32.totalorder %s178, %s180
    %p187 = scmp.eq.s32.totalorder %s23, 1
    %p188 = por %p186, %p187
    %p189 = scmp.ne.s32.totalorder %s180, %s181
    %p190 = scmp.eq.s32.totalorder %s23, 0
    %p191 = por %p189, %p190
    %p192 = scmp.ne.s32.totalorder %s180, %s181
    %p193 = scmp.eq.s32.totalorder %s24, 1
    %p194 = por %p192, %p193
    %p196 = scmp.ne.s32.totalorder %s181, %s195
    %p197 = scmp.eq.s32.totalorder %s24, 0
    %p198 = por %p196, %p197
    %s200 = sadd.s32 %s199, 1
    %p203 = scmp.eq.s32.totalorder %s18, 1
    %p204 = scmp.ne.s32.totalorder %s199, %s201
    %p205 = scmp.eq.s32.totalorder %s18, 0
    %p206 = por %p204, %p205
    %p207 = scmp.ne.s32.totalorder %s199, %s201
    %p208 = scmp.eq.s32.totalorder %s23, 1
    %p209 = por %p207, %p208
    %p210 = scmp.ne.s32.totalorder %s201, %s202
    %p211 = scmp.eq.s32.totalorder %s23, 0
    %p212 = por %p210, %p211
    %p213 = scmp.ne.s32.totalorder %s201, %s202
    %p214 = scmp.eq.s32.totalorder %s24, 1
    %p215 = por %p213, %p214
    %p217 = scmp.ne.s32.totalorder %s202, %s216
    %p218 = scmp.eq.s32.totalorder %s24, 0
    %p219 = por %p217, %p218
    %s221 = sadd.s32 %s220, 1
    %p224 = scmp.eq.s32.totalorder %s18, 1
    %p225 = scmp.ne.s32.totalorder %s220, %s222
    %p226 = scmp.eq.s32.totalorder %s18, 0
    %p227 = por %p225, %p226
    %p228 = scmp.ne.s32.totalorder %s220, %s222
    %p229 = scmp.eq.s32.totalorder %s23, 1
    %p230 = por %p228, %p229
    %p231 = scmp.ne.s32.totalorder %s222, %s223
    %p232 = scmp.eq.s32.totalorder %s23, 0
    %p233 = por %p231, %p232
    %p234 = scmp.ne.s32.totalorder %s222, %s223
    %p235 = scmp.eq.s32.totalorder %s24, 1
    %p236 = por %p234, %p235
    %p238 = scmp.ne.s32.totalorder %s223, %s237
    %p239 = scmp.eq.s32.totalorder %s24, 0
    %p240 = por %p238, %p239
    %s242 = sadd.s32 %s241, 1
    %p245 = scmp.eq.s32.totalorder %s18, 1
    %p246 = scmp.ne.s32.totalorder %s241, %s243
    %p247 = scmp.eq.s32.totalorder %s18, 0
    %p248 = por %p246, %p247
    %p249 = scmp.ne.s32.totalorder %s241, %s243
    %p250 = scmp.eq.s32.totalorder %s23, 1
    %p251 = por %p249, %p250
    %p252 = scmp.ne.s32.totalorder %s243, %s244
    %p253 = scmp.eq.s32.totalorder %s23, 0
    %p254 = por %p252, %p253
    %p255 = scmp.ne.s32.totalorder %s243, %s244
    %p256 = scmp.eq.s32.totalorder %s24, 1
    %p257 = por %p255, %p256
    %p259 = scmp.ne.s32.totalorder %s244, %s258
    %p260 = scmp.eq.s32.totalorder %s24, 0
    %p261 = por %p259, %p260
    %s263 = sadd.s32 %s262, 1
    %p266 = scmp.eq.s32.totalorder %s18, 1
    %p267 = scmp.ne.s32.totalorder %s262, %s264
    %p268 = scmp.eq.s32.totalorder %s18, 0
    %p269 = por %p267, %p268
    %p270 = scmp.ne.s32.totalorder %s262, %s264
    %p271 = scmp.eq.s32.totalorder %s23, 1
    %p272 = por %p270, %p271
    %p273 = scmp.ne.s32.totalorder %s264, %s265
    %p274 = scmp.eq.s32.totalorder %s23, 0
    %p275 = por %p273, %p274
    %p276 = scmp.ne.s32.totalorder %s264, %s265
    %p277 = scmp.eq.s32.totalorder %s24, 1
    %p278 = por %p276, %p277
    %p280 = scmp.ne.s32.totalorder %s265, %s279
    %p281 = scmp.eq.s32.totalorder %s24, 0
    %p282 = por %p280, %p281
    %s283 = ssub.s32 %s18, %s25
    %p284 = scmp.eq.s32.totalorder %s283, 0
    %s286 = sadd.s32 %s285, 1
    %s287 = scalar_select %p284, %s285, %s286
    %p290 = pneg %p284
    %p291 = scmp.eq.s32.totalorder %s18, 1
    %p292 = por %p290, %p291
    %p293 = scmp.ne.s32.totalorder %s285, %s288
    %p294 = scmp.eq.s32.totalorder %s18, 0
    %p295 = por %p293, %p294
    %p296 = scmp.ne.s32.totalorder %s285, %s288
    %p297 = scmp.eq.s32.totalorder %s23, 1
    %p298 = por %p296, %p297
    %p299 = scmp.ne.s32.totalorder %s288, %s289
    %p300 = scmp.eq.s32.totalorder %s23, 0
    %p301 = por %p299, %p300
    %p302 = scmp.ne.s32.totalorder %s288, %s289
    %p303 = scmp.eq.s32.totalorder %s24, 1
    %p304 = por %p302, %p303
    %p306 = scmp.ne.s32.totalorder %s289, %s305
    %p307 = scmp.eq.s32.totalorder %s24, 0
    %p308 = por %p306, %p307
    %p309 = scmp.le.s32.totalorder 1, %s18
    %p310 = scmp.lt.s32.totalorder %s18, 3
    %p311 = pnand %p309, %p310
    %p312 = pneg %p311
    // Predicated region
    $region9: #{mamba_block.1} parent=5 // pred_check
      _
    $region10: #{mamba_block.1} parent=5 // pred_check_branch
      %314 = sbr.rel (%p311) target = $region12
    $region11: #{mamba_block.1} parent=5 // pred_region
      %s315 = ssub.s32 %s18, 1
      // Predicated region
      $region13: #{mamba_block.1} parent=11 // pred_check
        %p316 = pneg %p65
      $region14: #{mamba_block.1} parent=11 // pred_check_branch
        %318 = sbr.rel (%p316) target = $region16
      $region15: #{mamba_block.1} parent=11 // pred_region
        _
      $region16: #{mamba_block.1} parent=11 // pred_fallthru
        _
      // Predicated region
      $region17: #{mamba_block.1} parent=11 // pred_check
        %p319 = pneg %p86
      $region18: #{mamba_block.1} parent=11 // pred_check_branch
        %321 = sbr.rel (%p319) target = $region20
      $region19: #{mamba_block.1} parent=11 // pred_region
        _
      $region20: #{mamba_block.1} parent=11 // pred_fallthru
        _
      // Predicated region
      $region21: #{mamba_block.1} parent=11 // pred_check
        %p322 = pneg %p107
      $region22: #{mamba_block.1} parent=11 // pred_check_branch
        %324 = sbr.rel (%p322) target = $region24
      $region23: #{mamba_block.1} parent=11 // pred_region
        _
      $region24: #{mamba_block.1} parent=11 // pred_fallthru
        _
      // Predicated region
      $region25: #{mamba_block.1} parent=11 // pred_check
        %p325 = pneg %p128
      $region26: #{mamba_block.1} parent=11 // pred_check_branch
        %327 = sbr.rel (%p325) target = $region28
      $region27: #{mamba_block.1} parent=11 // pred_region
        _
      $region28: #{mamba_block.1} parent=11 // pred_fallthru
        _
      // Predicated region
      $region29: #{mamba_block.1} parent=11 // pred_check
        %p328 = pneg %p149
      $region30: #{mamba_block.1} parent=11 // pred_check_branch
        %330 = sbr.rel (%p328) target = $region32
      $region31: #{mamba_block.1} parent=11 // pred_region
        _
      $region32: #{mamba_block.1} parent=11 // pred_fallthru
        _
      // Predicated region
      $region33: #{mamba_block.1} parent=11 // pred_check
        %p331 = pneg %p170
      $region34: #{mamba_block.1} parent=11 // pred_check_branch
        %333 = sbr.rel (%p331) target = $region36
      $region35: #{mamba_block.1} parent=11 // pred_region
        _
      $region36: #{mamba_block.1} parent=11 // pred_fallthru
        _
      // Predicated region
      $region37: #{mamba_block.1} parent=11 // pred_check
        %p334 = pneg %p191
      $region38: #{mamba_block.1} parent=11 // pred_check_branch
        %336 = sbr.rel (%p334) target = $region40
      $region39: #{mamba_block.1} parent=11 // pred_region
        _
      $region40: #{mamba_block.1} parent=11 // pred_fallthru
        _
      // Predicated region
      $region41: #{mamba_block.1} parent=11 // pred_check
        %p337 = pneg %p212
      $region42: #{mamba_block.1} parent=11 // pred_check_branch
        %339 = sbr.rel (%p337) target = $region44
      $region43: #{mamba_block.1} parent=11 // pred_region
        _
      $region44: #{mamba_block.1} parent=11 // pred_fallthru
        _
      // Predicated region
      $region45: #{mamba_block.1} parent=11 // pred_check
        %p340 = pneg %p233
      $region46: #{mamba_block.1} parent=11 // pred_check_branch
        %342 = sbr.rel (%p340) target = $region48
      $region47: #{mamba_block.1} parent=11 // pred_region
        _
      $region48: #{mamba_block.1} parent=11 // pred_fallthru
        _
      // Predicated region
      $region49: #{mamba_block.1} parent=11 // pred_check
        %p343 = pneg %p254
      $region50: #{mamba_block.1} parent=11 // pred_check_branch
        %345 = sbr.rel (%p343) target = $region52
      $region51: #{mamba_block.1} parent=11 // pred_region
        _
      $region52: #{mamba_block.1} parent=11 // pred_fallthru
        _
      // Predicated region
      $region53: #{mamba_block.1} parent=11 // pred_check
        %p346 = pneg %p275
      $region54: #{mamba_block.1} parent=11 // pred_check_branch
        %348 = sbr.rel (%p346) target = $region56
      $region55: #{mamba_block.1} parent=11 // pred_region
        _
      $region56: #{mamba_block.1} parent=11 // pred_fallthru
        _
    $region12: #{mamba_block.1} parent=5 // pred_fallthru
      _
    %p349 = scmp.lt.s32.totalorder %s18, 2
    // Predicated region
    $region57: #{mamba_block.1} parent=5 // pred_check
      %p350 = pneg %p349
    $region58: #{mamba_block.1} parent=5 // pred_check_branch
      %352 = sbr.rel (%p350) target = $region60
    $region59: #{mamba_block.1} parent=5 // pred_region
      // Predicated region
      $region61: #{mamba_block.1} parent=59 // pred_check
        %p353 = pneg %p38
      $region62: #{mamba_block.1} parent=59 // pred_check_branch
        %355 = sbr.rel (%p353) target = $region64
      $region63: #{mamba_block.1} parent=59 // pred_region
        %s356 = smul.u32 8, %s18
        %p357 = scmp.lt.s32.totalorder %s356, 15
        %s358 = scalar_select %p357, %s356, 15
        %s359 = smul.addr %s358, 2
        %s360 = scalar_lea.vmem %s0, %s359
        %s361 = smul.u32 8, %s18
      $region64: #{mamba_block.1} parent=59 // pred_fallthru
        _
    $region60: #{mamba_block.1} parent=5 // pred_fallthru
      _
    %p362 = scmp.le.s32.totalorder 1, %s18
    %p363 = scmp.lt.s32.totalorder %s18, 3
    %p364 = pnand %p362, %p363
    %p365 = pneg %p364
    // Predicated region
    $region65: #{mamba_block.1} parent=5 // pred_check
      _
    $region66: #{mamba_block.1} parent=5 // pred_check_branch
      %367 = sbr.rel (%p364) target = $region68
    $region67: #{mamba_block.1} parent=5 // pred_region
      %s368 = ssub.s32 %s18, 1
      %s369 = smul.u32 8, %s23
      %p370 = scmp.lt.s32.totalorder %s369, 15
      %s371 = scalar_select %p370, %s369, 15
      %s372 = smul.addr %s371, 2
      %s373 = scalar_lea.vmem %s0, %s372
      %p374 = pneg %p44
      %p375 = pneg %p41
      %p376 = pneg %p65
      %p377 = pneg %p62
      %p378 = pneg %p86
      %p379 = pneg %p83
      %p380 = pneg %p107
      %p381 = pneg %p104
      %p382 = pneg %p128
      %p383 = pneg %p125
      %p384 = pneg %p149
      %p385 = pneg %p146
      %p386 = pneg %p170
      %p387 = pneg %p167
      %p388 = pneg %p191
      %p389 = pneg %p188
      %p390 = pneg %p212
      %p391 = pneg %p209
      %p392 = pneg %p233
      %p393 = pneg %p230
      %p394 = pneg %p254
      %p395 = pneg %p251
      %p396 = pneg %p275
      %p397 = pneg %p272
      %p398 = pneg %p301
      %p399 = pneg %p298
      %s400 = smul.u32 8, %s23
      %p401 = scmp.lt.s32.totalorder %s400, 15
      %s402 = scalar_select %p401, %s400, 15
      %s403 = smul.addr %s402, 2
      %s404 = scalar_lea.vmem %s12, %s403
      %s405 = smul.u32 8, %s23
      %p406 = scmp.lt.s32.totalorder %s405, 15
      %s407 = scalar_select %p406, %s405, 15
      %s408 = smul.addr %s407, 2
      %s409 = scalar_lea.vmem %s0, %s408
      %s410 = smul.u32 8, %s23
      %s411 = smul.u32 8, %s23
      %p412 = scmp.lt.s32.totalorder %s411, 15
      %s413 = scalar_select %p412, %s411, 15
      %s414 = smul.addr %s413, 2
      %s415 = scalar_lea.vmem %s12, %s414
      %s416 = smul.u32 8, %s23
      %p418 = scmp.eq.s32.totalorder %s23, 0
      // Predicated region
      $region69: #{mamba_block.1} parent=67 // pred_check
        %p419 = pneg %p418
      $region70: #{mamba_block.1} parent=67 // pred_check_branch
        %421 = sbr.rel (%p419) target = $region72
      $region71: #{mamba_block.1} parent=67 // pred_region
        %vm422 = vcmask 523264
        %423 = vst.msk [vmem:[#allocation2] sm:$0xff] %vm422, 0.0
        %424 = vst.msk [vmem:[#allocation2 + $0x8] sm:$0xff] %vm422, 0.0
        %425 = vst.msk [vmem:[#allocation2 + $0x10] sm:$0xff] %vm422, 0.0
        %426 = vst.msk [vmem:[#allocation2 + $0x18] sm:$0xff] %vm422, 0.0
        %vm427 = vcmask 517120
        %428 = vst.msk [vmem:[#allocation3] sm:$0x3] %vm427, 0.0
        %429 = vst.msk [vmem:[#allocation3 + $0x2] sm:$0x3] %vm427, 0.0
        %430 = vst.msk [vmem:[#allocation3 + $0x4] sm:$0x3] %vm427, 0.0
      $region72: #{mamba_block.1} parent=67 // pred_fallthru
        _
      %p431 = scmp.gt.s32.totalorder %s23, 0
      // Predicated region
      $region73: #{mamba_block.1} parent=67 // pred_check
        %p432 = pneg %p431
      $region74: #{mamba_block.1} parent=67 // pred_check_branch
        %434 = sbr.rel (%p432) target = $region76
      $region75: #{mamba_block.1} parent=67 // pred_region
        %s435 = scalar_lea.vmem [#allocation3], 16
        %v436 = vld [vmem:[%s435] sm:$0x3]
        %v437 = vld [vmem:[%s435 + $0x2] sm:$0x3]
        %v438 = vld [vmem:[%s435 + $0x4] sm:$0x3]
        %vm439 = vcmask 517120
        %440 = vst.msk [vmem:[#allocation3] sm:$0x3] %vm439, %v436
        %441 = vst.msk [vmem:[#allocation3 + $0x2] sm:$0x3] %vm439, %v437
        %442 = vst.msk [vmem:[#allocation3 + $0x4] sm:$0x3] %vm439, %v438
      $region76: #{mamba_block.1} parent=67 // pred_fallthru
        _
      %v443 = vld [vmem:[%s409] sm:$0x3]
      %v444 = vld [vmem:[%s409 + $0x2] sm:$0x3]
      %v445 = vld [vmem:[%s409 + $0x4] sm:$0x3]
      %v446 = vld [vmem:[%s409 + $0x6] sm:$0x3]
      %v447 = vld [vmem:[%s409 + $0x8] sm:$0x3]
      %v448 = vld [vmem:[%s409 + $0xa] sm:$0x3]
      %v449 = vld [vmem:[%s409 + $0xc] sm:$0x3]
      %v450 = vld [vmem:[%s409 + $0xe] sm:$0x3]
      %v459 = vcombine.low %v443, %v444
      %v460 = vcombine.low %v445, %v446
      %v462 = vunpack.c.l.s4 1983009808
      %v463 = vunpack.c.0.s8 %v462
      %v464 = vlaneseq
      %v465 = vshrl.u32 %v464, 7
      %v466 = vsub.s32 %v463, %v465
      %v467 = vrot.slane %v459, %v466
      %v469 = vunpack.c.l.s4 1983009808
      %v470 = vunpack.c.0.s8 %v469
      %v471 = vlaneseq
      %v472 = vshrl.u32 %v471, 7
      %v473 = vsub.s32 %v470, %v472
      %v474 = vrot.slane %v460, %v473
      %v475 = vcombine.low %v467, %v474
      %v476 = vcombine.low %v447, %v448
      %v477 = vcombine.low %v449, %v450
      %v479 = vunpack.c.l.s4 1983009808
      %v480 = vunpack.c.0.s8 %v479
      %v481 = vlaneseq
      %v482 = vshrl.u32 %v481, 7
      %v483 = vsub.s32 %v480, %v482
      %v484 = vrot.slane %v476, %v483
      %v486 = vunpack.c.l.s4 1983009808
      %v487 = vunpack.c.0.s8 %v486
      %v488 = vlaneseq
      %v489 = vshrl.u32 %v488, 7
      %v490 = vsub.s32 %v487, %v489
      %v491 = vrot.slane %v477, %v490
      %v492 = vcombine.low %v484, %v491
      %v495 = vpack.c.bf16 %v492, %v475
      %v496 = vld [vmem:[%s1] sm:$0xf]
      %v497 = vld [vmem:[%s1 + $0x4] sm:$0xf]
      %v498 = vld [vmem:[%s1 + $0x8] sm:$0xf]
      %v499 = vld [vmem:[%s1 + $0xc] sm:$0xf]
      %v504 = vunpack.c.l.b16 %v496
      %v505 = vunpack.c.l.b16 %v497
      %v506 = vunpack.c.l.b16 %v498
      %v507 = vunpack.c.l.b16 %v499
      %v508 = vpack.c.b16 %v505, %v504
      %v509 = vpack.c.b16 %v507, %v506
      %vm512 = vcmask 261120
      %v514 = vsel %vm512, %v495, 0
      %516 = vmatprep.subr.bf16.mxu0 0
      %517 = vmatpush1.bf16.msra.mxu0 0
      %518 = vmatprep.subr.bf16.mxu0 0
      %519 = vmatpush1.bf16.msra.mxu0 0
      %520 = vmatprep.subr.bf16.mxu0 0
      %521 = vmatpush1.bf16.msra.mxu0 0
      %522 = vmatprep.subr.bf16.mxu0 0
      %523 = vmatpush1.bf16.msra.mxu0 0
      %524 = vmatprep.subr.bf16.mxu0 0
      %525 = vmatpush1.bf16.msra.mxu0 0
      %526 = vmatprep.subr.bf16.mxu0 0
      %527 = vmatpush1.bf16.msra.mxu0 0
      %528 = vmatprep.subr.bf16.mxu0 0
      %529 = vmatpush1.bf16.msra.mxu0 %v509
      %530 = vmatprep.subr.bf16.mxu0 0
      %531 = vmatpush1.bf16.msra.mxu0 %v508
      %532 = vmatprep.subr.bf16.mxu0 0
      %533 = vmatpush2.bf16.msra.mxu0 0
      %534 = vmatprep.subr.bf16.mxu0 0
      %535 = vmatpush2.bf16.msra.mxu0 0
      %536 = vmatprep.subr.bf16.mxu0 0
      %537 = vmatpush2.bf16.msra.mxu0 0
      %538 = vmatprep.subr.bf16.mxu0 0
      %539 = vmatpush2.bf16.msra.mxu0 0
      %540 = vmatprep.subr.bf16.mxu0 0
      %541 = vmatpush2.bf16.msra.mxu0 0
      %542 = vmatprep.subr.bf16.mxu0 0
      %543 = vmatpush2.bf16.msra.mxu0 0
      %544 = vmatprep.subr.bf16.mxu0 0
      %545 = vmatpush2.bf16.msra.mxu0 0
      %546 = vmatprep.subr.bf16.mxu0 0
      %547 = vmatpush2.bf16.msra.mxu0 0
      %548 = vmatprep.mubr.bf16.mxu0 0
      %549 = vmatmul.mubr.bf16.gmra.mxu0 %v514
      %v550 = vpop.f32.mrf.mxu0
      %v551 = vadd.f32 0.0, %v550
      %v552 = vpop.f32.mrf.mxu0
      %v553 = vpop.f32.mrf.mxu0
      %v554 = vadd.f32 0.0, %v553
      %v555 = vpop.f32.mrf.mxu0
      %556 = vdwg.mxu0
      %v559 = vcombine.high %v551, %v551
      %v561 = vunpack.c.l.s4 1983009808
      %v562 = vunpack.c.0.s8 %v561
      %v563 = vlaneseq
      %v564 = vshrl.u32 %v563, 7
      %v565 = vsub.s32 %v562, %v564
      %v566 = vrot.slane %v551, %v565
      %v568 = vunpack.c.l.s4 1983009808
      %v569 = vunpack.c.0.s8 %v568
      %v570 = vlaneseq
      %v571 = vshrl.u32 %v570, 7
      %v572 = vsub.s32 %v569, %v571
      %v573 = vrot.slane %v559, %v572
      %v574 = vcombine.high %v566, %v566
      %v575 = vcombine.high %v573, %v573
      %v576 = vcombine.high %v554, %v554
      %v578 = vunpack.c.l.s4 1983009808
      %v579 = vunpack.c.0.s8 %v578
      %v580 = vlaneseq
      %v581 = vshrl.u32 %v580, 7
      %v582 = vsub.s32 %v579, %v581
      %v583 = vrot.slane %v554, %v582
      %v585 = vunpack.c.l.s4 1983009808
      %v586 = vunpack.c.0.s8 %v585
      %v587 = vlaneseq
      %v588 = vshrl.u32 %v587, 7
      %v589 = vsub.s32 %v586, %v588
      %v590 = vrot.slane %v576, %v589
      %v591 = vcombine.high %v583, %v583
      %v592 = vcombine.high %v590, %v590
      %s601 = scalar_lea.vmem [#allocation3], 6
      %vm602 = vcmask 517120
      %603 = vst.msk [vmem:[%s601] sm:$0x3] %vm602, %v566
      %604 = vst.msk [vmem:[%s601 + $0x2] sm:$0x3] %vm602, %v574
      %605 = vst.msk [vmem:[%s601 + $0x4] sm:$0x3] %vm602, %v573
      %606 = vst.msk [vmem:[%s601 + $0x6] sm:$0x3] %vm602, %v575
      %607 = vst.msk [vmem:[%s601 + $0x8] sm:$0x3] %vm602, %v583
      %608 = vst.msk [vmem:[%s601 + $0xa] sm:$0x3] %vm602, %v591
      %609 = vst.msk [vmem:[%s601 + $0xc] sm:$0x3] %vm602, %v590
      %610 = vst.msk [vmem:[%s601 + $0xe] sm:$0x3] %vm602, %v592
      %v611 = vld [vmem:[#allocation3] sm:$0x3]
      %v612 = vld [vmem:[#allocation3 + $0x2] sm:$0x3]
      %v613 = vld [vmem:[#allocation3 + $0x4] sm:$0x3]
      %v614 = vld [vmem:[#allocation3 + $0x6] sm:$0x3]
      %v615 = vld [vmem:[#allocation3 + $0x8] sm:$0x3]
      %v616 = vld [vmem:[#allocation3 + $0xa] sm:$0x3]
      %v617 = vld [vmem:[#allocation3 + $0xc] sm:$0x3]
      %v618 = vld [vmem:[#allocation3 + $0xe] sm:$0x3]
      %v619 = vld [vmem:[%s2] sm:$0x1]
      %v620 = vlaneseq
      %v621 = vshrl.u32 %v620, 7
      %v622 = vsub.s32 0, %v621
      %v623 = vrot.slane %v619, %v622
      %v624 = vmul.f32 %v611, %v623
      %v625 = vmul.f32 %v612, %v623
      %v626 = vmul.f32 %v613, %v623
      %v627 = vmul.f32 %v614, %v623
      %v628 = vmul.f32 %v615, %v623
      %v629 = vmul.f32 %v616, %v623
      %v630 = vmul.f32 %v617, %v623
      %v631 = vmul.f32 %v618, %v623
      %s632 = scalar_lea.vmem [#allocation3], 2
      %v633 = vld [vmem:[%s632] sm:$0x3]
      %v634 = vld [vmem:[%s632 + $0x2] sm:$0x3]
      %v635 = vld [vmem:[%s632 + $0x4] sm:$0x3]
      %v636 = vld [vmem:[%s632 + $0x6] sm:$0x3]
      %v637 = vld [vmem:[%s632 + $0x8] sm:$0x3]
      %v638 = vld [vmem:[%s632 + $0xa] sm:$0x3]
      %v639 = vld [vmem:[%s632 + $0xc] sm:$0x3]
      %v640 = vld [vmem:[%s632 + $0xe] sm:$0x3]
      %v641 = vld [vmem:[%s2 + $0x1] sm:$0x1]
      %v642 = vlaneseq
      %v643 = vshrl.u32 %v642, 7
      %v644 = vsub.s32 0, %v643
      %v645 = vrot.slane %v641, %v644
      %v646 = vmul.f32 %v633, %v645
      %v647 = vmul.f32 %v634, %v645
      %v648 = vmul.f32 %v635, %v645
      %v649 = vmul.f32 %v636, %v645
      %v650 = vmul.f32 %v637, %v645
      %v651 = vmul.f32 %v638, %v645
      %v652 = vmul.f32 %v639, %v645
      %v653 = vmul.f32 %v640, %v645
      %v654 = vadd.f32 %v624, %v646
      %v655 = vadd.f32 %v625, %v647
      %v656 = vadd.f32 %v626, %v648
      %v657 = vadd.f32 %v627, %v649
      %v658 = vadd.f32 %v628, %v650
      %v659 = vadd.f32 %v629, %v651
      %v660 = vadd.f32 %v630, %v652
      %v661 = vadd.f32 %v631, %v653
      %s662 = scalar_lea.vmem [#allocation3], 4
      %v663 = vld [vmem:[%s662] sm:$0x3]
      %v664 = vld [vmem:[%s662 + $0x2] sm:$0x3]
      %v665 = vld [vmem:[%s662 + $0x4] sm:$0x3]
      %v666 = vld [vmem:[%s662 + $0x6] sm:$0x3]
      %v667 = vld [vmem:[%s662 + $0x8] sm:$0x3]
      %v668 = vld [vmem:[%s662 + $0xa] sm:$0x3]
      %v669 = vld [vmem:[%s662 + $0xc] sm:$0x3]
      %v670 = vld [vmem:[%s662 + $0xe] sm:$0x3]
      %v671 = vld [vmem:[%s2 + $0x2] sm:$0x1]
      %v672 = vlaneseq
      %v673 = vshrl.u32 %v672, 7
      %v674 = vsub.s32 0, %v673
      %v675 = vrot.slane %v671, %v674
      %v676 = vmul.f32 %v663, %v675
      %v677 = vmul.f32 %v664, %v675
      %v678 = vmul.f32 %v665, %v675
      %v679 = vmul.f32 %v666, %v675
      %v680 = vmul.f32 %v667, %v675
      %v681 = vmul.f32 %v668, %v675
      %v682 = vmul.f32 %v669, %v675
      %v683 = vmul.f32 %v670, %v675
      %v684 = vadd.f32 %v654, %v676
      %v685 = vadd.f32 %v655, %v677
      %v686 = vadd.f32 %v656, %v678
      %v687 = vadd.f32 %v657, %v679
      %v688 = vadd.f32 %v658, %v680
      %v689 = vadd.f32 %v659, %v681
      %v690 = vadd.f32 %v660, %v682
      %v691 = vadd.f32 %v661, %v683
      %v692 = vld [vmem:[%s601] sm:$0x3]
      %v693 = vld [vmem:[%s601 + $0x2] sm:$0x3]
      %v694 = vld [vmem:[%s601 + $0x4] sm:$0x3]
      %v695 = vld [vmem:[%s601 + $0x6] sm:$0x3]
      %v696 = vld [vmem:[%s601 + $0x8] sm:$0x3]
      %v697 = vld [vmem:[%s601 + $0xa] sm:$0x3]
      %v698 = vld [vmem:[%s601 + $0xc] sm:$0x3]
      %v699 = vld [vmem:[%s601 + $0xe] sm:$0x3]
      %v700 = vld [vmem:[%s2 + $0x3] sm:$0x1]
      %v701 = vlaneseq
      %v702 = vshrl.u32 %v701, 7
      %v703 = vsub.s32 0, %v702
      %v704 = vrot.slane %v700, %v703
      %v705 = vmul.f32 %v692, %v704
      %v706 = vmul.f32 %v693, %v704
      %v707 = vmul.f32 %v694, %v704
      %v708 = vmul.f32 %v695, %v704
      %v709 = vmul.f32 %v696, %v704
      %v710 = vmul.f32 %v697, %v704
      %v711 = vmul.f32 %v698, %v704
      %v712 = vmul.f32 %v699, %v704
      %v713 = vadd.f32 %v684, %v705
      %v714 = vadd.f32 %v685, %v706
      %v715 = vadd.f32 %v686, %v707
      %v716 = vadd.f32 %v687, %v708
      %v717 = vadd.f32 %v688, %v709
      %v718 = vadd.f32 %v689, %v710
      %v719 = vadd.f32 %v690, %v711
      %v720 = vadd.f32 %v691, %v712
      %v721 = vld [vmem:[%s3] sm:$0x1]
      %v723 = vlaneseq
      %v724 = vshrl.u32 %v723, 7
      %v725 = vsub.s32 0, %v724
      %v726 = vrot.slane %v721, %v725
      %v728 = vadd.f32 %v713, %v726
      %v729 = vadd.f32 %v714, %v726
      %v730 = vadd.f32 %v715, %v726
      %v731 = vadd.f32 %v716, %v726
      %v732 = vadd.f32 %v717, %v726
      %v733 = vadd.f32 %v718, %v726
      %v734 = vadd.f32 %v719, %v726
      %v735 = vadd.f32 %v720, %v726
      %v736 = vsub.f32 0.0, %v728
      %v737 = vsub.f32 0.0, %v729
      %v738 = vsub.f32 0.0, %v730
      %v739 = vsub.f32 0.0, %v731
      %v740 = vsub.f32 0.0, %v732
      %v741 = vsub.f32 0.0, %v733
      %v742 = vsub.f32 0.0, %v734
      %v743 = vsub.f32 0.0, %v735
      %v744 = vmul.f32 %v736, 1.442695
      %v745 = vpow.pop %v744
      %v746 = vmul.f32 %v737, 1.442695
      %v747 = vpow.pop %v746
      %v748 = vmul.f32 %v738, 1.442695
      %v749 = vpow.pop %v748
      %v750 = vmul.f32 %v739, 1.442695
      %v751 = vpow.pop %v750
      %v752 = vmul.f32 %v740, 1.442695
      %v753 = vpow.pop %v752
      %v754 = vmul.f32 %v741, 1.442695
      %v755 = vpow.pop %v754
      %v756 = vmul.f32 %v742, 1.442695
      %v757 = vpow.pop %v756
      %v758 = vmul.f32 %v743, 1.442695
      %v759 = vpow.pop %v758
      %v760 = vadd.f32 %v745, 1.0
      %v761 = vadd.f32 %v747, 1.0
      %v762 = vadd.f32 %v749, 1.0
      %v763 = vadd.f32 %v751, 1.0
      %v764 = vadd.f32 %v753, 1.0
      %v765 = vadd.f32 %v755, 1.0
      %v766 = vadd.f32 %v757, 1.0
      %v767 = vadd.f32 %v759, 1.0
      %v768 = vrcp.pop %v760
      %v769 = vmul.f32 1.0, %v768
      %v770 = vrcp.pop %v761
      %v771 = vmul.f32 1.0, %v770
      %v772 = vrcp.pop %v762
      %v773 = vmul.f32 1.0, %v772
      %v774 = vrcp.pop %v763
      %v775 = vmul.f32 1.0, %v774
      %v776 = vrcp.pop %v764
      %v777 = vmul.f32 1.0, %v776
      %v778 = vrcp.pop %v765
      %v779 = vmul.f32 1.0, %v778
      %v780 = vrcp.pop %v766
      %v781 = vmul.f32 1.0, %v780
      %v782 = vrcp.pop %v767
      %v783 = vmul.f32 1.0, %v782
      %v784 = vmul.f32 %v728, %v769
      %v785 = vmul.f32 %v729, %v771
      %v786 = vmul.f32 %v730, %v773
      %v787 = vmul.f32 %v731, %v775
      %v788 = vmul.f32 %v732, %v777
      %v789 = vmul.f32 %v733, %v779
      %v790 = vmul.f32 %v734, %v781
      %v791 = vmul.f32 %v735, %v783
      %v800 = vcombine.low %v784, %v785
      %v801 = vcombine.low %v786, %v787
      %v803 = vunpack.c.l.s4 1983009808
      %v804 = vunpack.c.0.s8 %v803
      %v805 = vlaneseq
      %v806 = vshrl.u32 %v805, 7
      %v807 = vsub.s32 %v804, %v806
      %v808 = vrot.slane %v800, %v807
      %v810 = vunpack.c.l.s4 1983009808
      %v811 = vunpack.c.0.s8 %v810
      %v812 = vlaneseq
      %v813 = vshrl.u32 %v812, 7
      %v814 = vsub.s32 %v811, %v813
      %v815 = vrot.slane %v801, %v814
      %v816 = vcombine.low %v808, %v815
      %v817 = vcombine.low %v788, %v789
      %v818 = vcombine.low %v790, %v791
      %v820 = vunpack.c.l.s4 1983009808
      %v821 = vunpack.c.0.s8 %v820
      %v822 = vlaneseq
      %v823 = vshrl.u32 %v822, 7
      %v824 = vsub.s32 %v821, %v823
      %v825 = vrot.slane %v817, %v824
      %v827 = vunpack.c.l.s4 1983009808
      %v828 = vunpack.c.0.s8 %v827
      %v829 = vlaneseq
      %v830 = vshrl.u32 %v829, 7
      %v831 = vsub.s32 %v828, %v830
      %v832 = vrot.slane %v818, %v831
      %v833 = vcombine.low %v825, %v832
      %v836 = vpack.c.bf16 %v833, %v816
      %v837 = vld [vmem:[%s4] sm:$0xf]
      %v838 = vld [vmem:[%s4 + $0x4] sm:$0xf]
      %v839 = vld [vmem:[%s4 + $0x8] sm:$0xf]
      %v840 = vld [vmem:[%s4 + $0xc] sm:$0xf]
      %v841 = vld [vmem:[%s4 + $0x10] sm:$0xf]
      %v842 = vld [vmem:[%s4 + $0x14] sm:$0xf]
      %v843 = vld [vmem:[%s4 + $0x18] sm:$0xf]
      %v844 = vld [vmem:[%s4 + $0x1c] sm:$0xf]
      %v853 = vunpack.c.l.b16 %v837
      %v854 = vunpack.c.l.b16 %v838
      %v855 = vunpack.c.l.b16 %v839
      %v856 = vunpack.c.l.b16 %v840
      %v857 = vunpack.c.l.b16 %v841
      %v858 = vunpack.c.l.b16 %v842
      %v859 = vunpack.c.l.b16 %v843
      %v860 = vunpack.c.l.b16 %v844
      %v861 = vpack.c.b16 %v854, %v853
      %v862 = vpack.c.b16 %v856, %v855
      %v863 = vpack.c.b16 %v858, %v857
      %v864 = vpack.c.b16 %v860, %v859
      %vm869 = vcmask 523264
      %v871 = vsel %vm869, %v836, 0
      %873 = vmatprep.subr.bf16.mxu0 0
      %874 = vmatpush1.bf16.msra.mxu0 0
      %875 = vmatprep.subr.bf16.mxu0 0
      %876 = vmatpush1.bf16.msra.mxu0 0
      %877 = vmatprep.subr.bf16.mxu0 0
      %878 = vmatpush1.bf16.msra.mxu0 0
      %879 = vmatprep.subr.bf16.mxu0 0
      %880 = vmatpush1.bf16.msra.mxu0 0
      %881 = vmatprep.subr.bf16.mxu0 0
      %882 = vmatpush1.bf16.msra.mxu0 %v864
      %883 = vmatprep.subr.bf16.mxu0 0
      %884 = vmatpush1.bf16.msra.mxu0 %v863
      %885 = vmatprep.subr.bf16.mxu0 0
      %886 = vmatpush1.bf16.msra.mxu0 %v862
      %887 = vmatprep.subr.bf16.mxu0 0
      %888 = vmatpush1.bf16.msra.mxu0 %v861
      %889 = vmatprep.subr.bf16.mxu0 0
      %890 = vmatpush2.bf16.msra.mxu0 0
      %891 = vmatprep.subr.bf16.mxu0 0
      %892 = vmatpush2.bf16.msra.mxu0 0
      %893 = vmatprep.subr.bf16.mxu0 0
      %894 = vmatpush2.bf16.msra.mxu0 0
      %895 = vmatprep.subr.bf16.mxu0 0
      %896 = vmatpush2.bf16.msra.mxu0 0
      %897 = vmatprep.subr.bf16.mxu0 0
      %898 = vmatpush2.bf16.msra.mxu0 0
      %899 = vmatprep.subr.bf16.mxu0 0
      %900 = vmatpush2.bf16.msra.mxu0 0
      %901 = vmatprep.subr.bf16.mxu0 0
      %902 = vmatpush2.bf16.msra.mxu0 0
      %903 = vmatprep.subr.bf16.mxu0 0
      %904 = vmatpush2.bf16.msra.mxu0 0
      %905 = vmatprep.mubr.bf16.mxu0 0
      %906 = vmatmul.mubr.bf16.gmra.mxu0 %v871
      %v907 = vpop.f32.mrf.mxu0
      %v908 = vadd.f32 0.0, %v907
      %v909 = vpop.f32.mrf.mxu0
      %v910 = vpop.f32.mrf.mxu0
      %v911 = vadd.f32 0.0, %v910
      %v912 = vpop.f32.mrf.mxu0
      %913 = vdwg.mxu0
      %v914 = vld [vmem:[%s5] sm:$0x1]
      %v916 = vlaneseq
      %v917 = vshrl.u32 %v916, 7
      %v918 = vsub.s32 0, %v917
      %v919 = vrot.slane %v914, %v918
      %v921 = vadd.f32 %v908, %v919
      %v922 = vadd.f32 %v911, %v919
      %v923 = vmax.f32 %v921, 0.0
      %v924 = vmax.f32 %v922, 0.0
      %v925 = vand.u32 2147483647, %v921
      %v926 = vand.u32 2147483647, %v922
      %v927 = vsub.f32 0.0, %v925
      %v928 = vsub.f32 0.0, %v926
      %v929 = vmul.f32 %v927, 1.442695
      %v930 = vpow.pop %v929
      %v931 = vmul.f32 %v928, 1.442695
      %v932 = vpow.pop %v931
      %v933 = vadd.f32 %v930, 1.0
      %v934 = vlog2.pop %v933
      %v935 = vmul.f32 %v934, 0.6931472
      %v936 = vmul.f32 -0.5, %v930
      %v937 = vadd.f32 %v936, 1.0
      %v938 = vmul.f32 %v937, %v930
      %v939 = vand.u32 2147483647, %v930
      %vm940 = vcmp.lt.f32.partialorder %v939, 0.0004427343
      %v941 = vsel %vm940, %v938, %v935
      %v942 = vadd.f32 %v932, 1.0
      %v943 = vlog2.pop %v942
      %v944 = vmul.f32 %v943, 0.6931472
      %v945 = vmul.f32 -0.5, %v932
      %v946 = vadd.f32 %v945, 1.0
      %v947 = vmul.f32 %v946, %v932
      %v948 = vand.u32 2147483647, %v932
      %vm949 = vcmp.lt.f32.partialorder %v948, 0.0004427343
      %v950 = vsel %vm949, %v947, %v944
      %v951 = vadd.f32 %v923, %v941
      %v952 = vadd.f32 %v924, %v950
      %v955 = vcombine.high %v951, %v951
      %v957 = vunpack.c.l.s4 1983009808
      %v958 = vunpack.c.0.s8 %v957
      %v959 = vlaneseq
      %v960 = vshrl.u32 %v959, 7
      %v961 = vsub.s32 %v958, %v960
      %v962 = vrot.slane %v951, %v961
      %v964 = vunpack.c.l.s4 1983009808
      %v965 = vunpack.c.0.s8 %v964
      %v966 = vlaneseq
      %v967 = vshrl.u32 %v966, 7
      %v968 = vsub.s32 %v965, %v967
      %v969 = vrot.slane %v955, %v968
      %v970 = vcombine.high %v962, %v962
      %v971 = vcombine.high %v969, %v969
      %v972 = vcombine.high %v952, %v952
      %v974 = vunpack.c.l.s4 1983009808
      %v975 = vunpack.c.0.s8 %v974
      %v976 = vlaneseq
      %v977 = vshrl.u32 %v976, 7
      %v978 = vsub.s32 %v975, %v977
      %v979 = vrot.slane %v952, %v978
      %v981 = vunpack.c.l.s4 1983009808
      %v982 = vunpack.c.0.s8 %v981
      %v983 = vlaneseq
      %v984 = vshrl.u32 %v983, 7
      %v985 = vsub.s32 %v982, %v984
      %v986 = vrot.slane %v972, %v985
      %v987 = vcombine.high %v979, %v979
      %v988 = vcombine.high %v986, %v986
      %v999 = vcombine.high %v908, %v908
      %v1001 = vunpack.c.l.s4 1983009808
      %v1002 = vunpack.c.0.s8 %v1001
      %v1003 = vlaneseq
      %v1004 = vshrl.u32 %v1003, 7
      %v1005 = vsub.s32 %v1002, %v1004
      %v1006 = vrot.slane %v908, %v1005
      %v1008 = vunpack.c.l.s4 1983009808
      %v1009 = vunpack.c.0.s8 %v1008
      %v1010 = vlaneseq
      %v1011 = vshrl.u32 %v1010, 7
      %v1012 = vsub.s32 %v1009, %v1011
      %v1013 = vrot.slane %v999, %v1012
      %v1014 = vcombine.high %v1006, %v1006
      %v1015 = vcombine.high %v1013, %v1013
      %v1016 = vcombine.high %v911, %v911
      %v1018 = vunpack.c.l.s4 1983009808
      %v1019 = vunpack.c.0.s8 %v1018
      %v1020 = vlaneseq
      %v1021 = vshrl.u32 %v1020, 7
      %v1022 = vsub.s32 %v1019, %v1021
      %v1023 = vrot.slane %v911, %v1022
      %v1025 = vunpack.c.l.s4 1983009808
      %v1026 = vunpack.c.0.s8 %v1025
      %v1027 = vlaneseq
      %v1028 = vshrl.u32 %v1027, 7
      %v1029 = vsub.s32 %v1026, %v1028
      %v1030 = vrot.slane %v1016, %v1029
      %v1031 = vcombine.high %v1023, %v1023
      %v1032 = vcombine.high %v1030, %v1030
      %v1034 = vunpack.c.l.s4 1966171168
      %v1035 = vunpack.c.0.s8 %v1034
      %v1036 = vlaneseq
      %v1037 = vshrl.u32 %v1036, 7
      %v1038 = vsub.s32 %v1035, %v1037
      %v1039 = vrot.slane %v951, %v1038
      %v1041 = vunpack.c.l.s4 1966171168
      %v1042 = vunpack.c.0.s8 %v1041
      %v1043 = vlaneseq
      %v1044 = vshrl.u32 %v1043, 7
      %v1045 = vsub.s32 %v1042, %v1044
      %v1046 = vrot.slane %v955, %v1045
      %v1047 = vcombine.high %v1039, %v1039
      %v1048 = vcombine.high %v1046, %v1046
      %v1050 = vunpack.c.l.s4 1966171168
      %v1051 = vunpack.c.0.s8 %v1050
      %v1052 = vlaneseq
      %v1053 = vshrl.u32 %v1052, 7
      %v1054 = vsub.s32 %v1051, %v1053
      %v1055 = vrot.slane %v1039, %v1054
      %v1057 = vunpack.c.l.s4 1966171168
      %v1058 = vunpack.c.0.s8 %v1057
      %v1059 = vlaneseq
      %v1060 = vshrl.u32 %v1059, 7
      %v1061 = vsub.s32 %v1058, %v1060
      %v1062 = vrot.slane %v1046, %v1061
      %v1064 = vunpack.c.l.s4 1966171168
      %v1065 = vunpack.c.0.s8 %v1064
      %v1066 = vlaneseq
      %v1067 = vshrl.u32 %v1066, 7
      %v1068 = vsub.s32 %v1065, %v1067
      %v1069 = vrot.slane %v1047, %v1068
      %v1071 = vunpack.c.l.s4 1966171168
      %v1072 = vunpack.c.0.s8 %v1071
      %v1073 = vlaneseq
      %v1074 = vshrl.u32 %v1073, 7
      %v1075 = vsub.s32 %v1072, %v1074
      %v1076 = vrot.slane %v1048, %v1075
      %v1077 = vcombine.high %v1055, %v1055
      %v1078 = vcombine.high %v1062, %v1062
      %v1079 = vcombine.high %v1069, %v1069
      %v1080 = vcombine.high %v1076, %v1076
      %v1082 = vunpack.c.l.s4 1966171168
      %v1083 = vunpack.c.0.s8 %v1082
      %v1084 = vlaneseq
      %v1085 = vshrl.u32 %v1084, 7
      %v1086 = vsub.s32 %v1083, %v1085
      %v1087 = vrot.slane %v952, %v1086
      %v1089 = vunpack.c.l.s4 1966171168
      %v1090 = vunpack.c.0.s8 %v1089
      %v1091 = vlaneseq
      %v1092 = vshrl.u32 %v1091, 7
      %v1093 = vsub.s32 %v1090, %v1092
      %v1094 = vrot.slane %v972, %v1093
      %v1095 = vcombine.high %v1087, %v1087
      %v1096 = vcombine.high %v1094, %v1094
      %v1098 = vunpack.c.l.s4 1966171168
      %v1099 = vunpack.c.0.s8 %v1098
      %v1100 = vlaneseq
      %v1101 = vshrl.u32 %v1100, 7
      %v1102 = vsub.s32 %v1099, %v1101
      %v1103 = vrot.slane %v1087, %v1102
      %v1105 = vunpack.c.l.s4 1966171168
      %v1106 = vunpack.c.0.s8 %v1105
      %v1107 = vlaneseq
      %v1108 = vshrl.u32 %v1107, 7
      %v1109 = vsub.s32 %v1106, %v1108
      %v1110 = vrot.slane %v1094, %v1109
      %v1112 = vunpack.c.l.s4 1966171168
      %v1113 = vunpack.c.0.s8 %v1112
      %v1114 = vlaneseq
      %v1115 = vshrl.u32 %v1114, 7
      %v1116 = vsub.s32 %v1113, %v1115
      %v1117 = vrot.slane %v1095, %v1116
      %v1119 = vunpack.c.l.s4 1966171168
      %v1120 = vunpack.c.0.s8 %v1119
      %v1121 = vlaneseq
      %v1122 = vshrl.u32 %v1121, 7
      %v1123 = vsub.s32 %v1120, %v1122
      %v1124 = vrot.slane %v1096, %v1123
      %v1125 = vcombine.high %v1103, %v1103
      %v1126 = vcombine.high %v1110, %v1110
      %v1127 = vcombine.high %v1117, %v1117
      %v1128 = vcombine.high %v1124, %v1124
      %v1129 = vld [vmem:[%s6] sm:$0xff]
      %v1130 = vld [vmem:[%s6 + $0x8] sm:$0xff]
      %v1131 = vlaneseq
      %v1132 = vshrl.u32 %v1131, 7
      %v1133 = vsub.s32 0, %v1132
      %v1134 = vrot.slane %v1055, %v1133
      %v1135 = vlaneseq
      %v1136 = vshrl.u32 %v1135, 7
      %v1137 = vsub.s32 0, %v1136
      %v1138 = vrot.slane %v1069, %v1137
      %v1139 = vlaneseq
      %v1140 = vshrl.u32 %v1139, 7
      %v1141 = vsub.s32 0, %v1140
      %v1142 = vrot.slane %v1077, %v1141
      %v1143 = vlaneseq
      %v1144 = vshrl.u32 %v1143, 7
      %v1145 = vsub.s32 0, %v1144
      %v1146 = vrot.slane %v1079, %v1145
      %v1147 = vlaneseq
      %v1148 = vshrl.u32 %v1147, 7
      %v1149 = vsub.s32 0, %v1148
      %v1150 = vrot.slane %v1062, %v1149
      %v1151 = vlaneseq
      %v1152 = vshrl.u32 %v1151, 7
      %v1153 = vsub.s32 0, %v1152
      %v1154 = vrot.slane %v1076, %v1153
      %v1155 = vlaneseq
      %v1156 = vshrl.u32 %v1155, 7
      %v1157 = vsub.s32 0, %v1156
      %v1158 = vrot.slane %v1078, %v1157
      %v1159 = vlaneseq
      %v1160 = vshrl.u32 %v1159, 7
      %v1161 = vsub.s32 0, %v1160
      %v1162 = vrot.slane %v1080, %v1161
      %v1163 = vlaneseq
      %v1164 = vshrl.u32 %v1163, 7
      %v1165 = vsub.s32 0, %v1164
      %v1166 = vrot.slane %v1103, %v1165
      %v1167 = vlaneseq
      %v1168 = vshrl.u32 %v1167, 7
      %v1169 = vsub.s32 0, %v1168
      %v1170 = vrot.slane %v1117, %v1169
      %v1171 = vlaneseq
      %v1172 = vshrl.u32 %v1171, 7
      %v1173 = vsub.s32 0, %v1172
      %v1174 = vrot.slane %v1125, %v1173
      %v1175 = vlaneseq
      %v1176 = vshrl.u32 %v1175, 7
      %v1177 = vsub.s32 0, %v1176
      %v1178 = vrot.slane %v1127, %v1177
      %v1179 = vlaneseq
      %v1180 = vshrl.u32 %v1179, 7
      %v1181 = vsub.s32 0, %v1180
      %v1182 = vrot.slane %v1110, %v1181
      %v1183 = vlaneseq
      %v1184 = vshrl.u32 %v1183, 7
      %v1185 = vsub.s32 0, %v1184
      %v1186 = vrot.slane %v1124, %v1185
      %v1187 = vlaneseq
      %v1188 = vshrl.u32 %v1187, 7
      %v1189 = vsub.s32 0, %v1188
      %v1190 = vrot.slane %v1126, %v1189
      %v1191 = vlaneseq
      %v1192 = vshrl.u32 %v1191, 7
      %v1193 = vsub.s32 0, %v1192
      %v1194 = vrot.slane %v1128, %v1193
      %v1211 = vmul.f32 %v1134, %v1129
      %v1212 = vmul.f32 %v1134, %v1130
      %v1213 = vmul.f32 %v1138, %v1129
      %v1214 = vmul.f32 %v1138, %v1130
      %v1215 = vmul.f32 %v1142, %v1129
      %v1216 = vmul.f32 %v1142, %v1130
      %v1217 = vmul.f32 %v1146, %v1129
      %v1218 = vmul.f32 %v1146, %v1130
      %v1219 = vmul.f32 %v1150, %v1129
      %v1220 = vmul.f32 %v1150, %v1130
      %v1221 = vmul.f32 %v1154, %v1129
      %v1222 = vmul.f32 %v1154, %v1130
      %v1223 = vmul.f32 %v1158, %v1129
      %v1224 = vmul.f32 %v1158, %v1130
      %v1225 = vmul.f32 %v1162, %v1129
      %v1226 = vmul.f32 %v1162, %v1130
      %v1227 = vmul.f32 %v1166, %v1129
      %v1228 = vmul.f32 %v1166, %v1130
      %v1229 = vmul.f32 %v1170, %v1129
      %v1230 = vmul.f32 %v1170, %v1130
      %v1231 = vmul.f32 %v1174, %v1129
      %v1232 = vmul.f32 %v1174, %v1130
      %v1233 = vmul.f32 %v1178, %v1129
      %v1234 = vmul.f32 %v1178, %v1130
      %v1235 = vmul.f32 %v1182, %v1129
      %v1236 = vmul.f32 %v1182, %v1130
      %v1237 = vmul.f32 %v1186, %v1129
      %v1238 = vmul.f32 %v1186, %v1130
      %v1239 = vmul.f32 %v1190, %v1129
      %v1240 = vmul.f32 %v1190, %v1130
      %v1241 = vmul.f32 %v1194, %v1129
      %v1242 = vmul.f32 %v1194, %v1130
      %v1243 = vmul.f32 %v1211, 1.442695
      %v1244 = vpow.pop %v1243
      %v1245 = vmul.f32 %v1212, 1.442695
      %v1246 = vpow.pop %v1245
      %v1247 = vmul.f32 %v1213, 1.442695
      %v1248 = vpow.pop %v1247
      %v1249 = vmul.f32 %v1214, 1.442695
      %v1250 = vpow.pop %v1249
      %v1251 = vmul.f32 %v1215, 1.442695
      %v1252 = vpow.pop %v1251
      %v1253 = vmul.f32 %v1216, 1.442695
      %v1254 = vpow.pop %v1253
      %v1255 = vmul.f32 %v1217, 1.442695
      %v1256 = vpow.pop %v1255
      %v1257 = vmul.f32 %v1218, 1.442695
      %v1258 = vpow.pop %v1257
      %v1259 = vmul.f32 %v1219, 1.442695
      %v1260 = vpow.pop %v1259
      %v1261 = vmul.f32 %v1220, 1.442695
      %v1262 = vpow.pop %v1261
      %v1263 = vmul.f32 %v1221, 1.442695
      %v1264 = vpow.pop %v1263
      %v1265 = vmul.f32 %v1222, 1.442695
      %v1266 = vpow.pop %v1265
      %v1267 = vmul.f32 %v1223, 1.442695
      %v1268 = vpow.pop %v1267
      %v1269 = vmul.f32 %v1224, 1.442695
      %v1270 = vpow.pop %v1269
      %v1271 = vmul.f32 %v1225, 1.442695
      %v1272 = vpow.pop %v1271
      %v1273 = vmul.f32 %v1226, 1.442695
      %v1274 = vpow.pop %v1273
      %v1275 = vmul.f32 %v1227, 1.442695
      %v1276 = vpow.pop %v1275
      %v1277 = vmul.f32 %v1228, 1.442695
      %v1278 = vpow.pop %v1277
      %v1279 = vmul.f32 %v1229, 1.442695
      %v1280 = vpow.pop %v1279
      %v1281 = vmul.f32 %v1230, 1.442695
      %v1282 = vpow.pop %v1281
      %v1283 = vmul.f32 %v1231, 1.442695
      %v1284 = vpow.pop %v1283
      %v1285 = vmul.f32 %v1232, 1.442695
      %v1286 = vpow.pop %v1285
      %v1287 = vmul.f32 %v1233, 1.442695
      %v1288 = vpow.pop %v1287
      %v1289 = vmul.f32 %v1234, 1.442695
      %v1290 = vpow.pop %v1289
      %v1291 = vmul.f32 %v1235, 1.442695
      %v1292 = vpow.pop %v1291
      %v1293 = vmul.f32 %v1236, 1.442695
      %v1294 = vpow.pop %v1293
      %v1295 = vmul.f32 %v1237, 1.442695
      %v1296 = vpow.pop %v1295
      %v1297 = vmul.f32 %v1238, 1.442695
      %v1298 = vpow.pop %v1297
      %v1299 = vmul.f32 %v1239, 1.442695
      %v1300 = vpow.pop %v1299
      %v1301 = vmul.f32 %v1240, 1.442695
      %v1302 = vpow.pop %v1301
      %v1303 = vmul.f32 %v1241, 1.442695
      %v1304 = vpow.pop %v1303
      %v1305 = vmul.f32 %v1242, 1.442695
      %v1306 = vpow.pop %v1305
      %1307 = vst.msk [vmem:[#allocation4] sm:$0xff] %vm869, %v1244
      %1308 = vst.msk [vmem:[#allocation4 + $0x8] sm:$0xff] %vm869, %v1246
      %1309 = vst.msk [vmem:[#allocation4 + $0x10] sm:$0xff] %vm869, %v1248
      %1310 = vst.msk [vmem:[#allocation4 + $0x18] sm:$0xff] %vm869, %v1250
      %1311 = vst.msk [vmem:[#allocation4 + $0x20] sm:$0xff] %vm869, %v1252
      %1312 = vst.msk [vmem:[#allocation4 + $0x28] sm:$0xff] %vm869, %v1254
      %1313 = vst.msk [vmem:[#allocation4 + $0x30] sm:$0xff] %vm869, %v1256
      %1314 = vst.msk [vmem:[#allocation4 + $0x38] sm:$0xff] %vm869, %v1258
      %1315 = vst.msk [vmem:[#allocation4 + $0x40] sm:$0xff] %vm869, %v1260
      %1316 = vst.msk [vmem:[#allocation4 + $0x48] sm:$0xff] %vm869, %v1262
      %1317 = vst.msk [vmem:[#allocation4 + $0x50] sm:$0xff] %vm869, %v1264
      %1318 = vst.msk [vmem:[#allocation4 + $0x58] sm:$0xff] %vm869, %v1266
      %1319 = vst.msk [vmem:[#allocation4 + $0x60] sm:$0xff] %vm869, %v1268
      %1320 = vst.msk [vmem:[#allocation4 + $0x68] sm:$0xff] %vm869, %v1270
      %1321 = vst.msk [vmem:[#allocation4 + $0x70] sm:$0xff] %vm869, %v1272
      %1322 = vst.msk [vmem:[#allocation4 + $0x78] sm:$0xff] %vm869, %v1274
      %1323 = vst.msk [vmem:[#allocation4 + $0x80] sm:$0xff] %vm869, %v1276
      %1324 = vst.msk [vmem:[#allocation4 + $0x88] sm:$0xff] %vm869, %v1278
      %1325 = vst.msk [vmem:[#allocation4 + $0x90] sm:$0xff] %vm869, %v1280
      %1326 = vst.msk [vmem:[#allocation4 + $0x98] sm:$0xff] %vm869, %v1282
      %1327 = vst.msk [vmem:[#allocation4 + $0xa0] sm:$0xff] %vm869, %v1284
      %1328 = vst.msk [vmem:[#allocation4 + $0xa8] sm:$0xff] %vm869, %v1286
      %1329 = vst.msk [vmem:[#allocation4 + $0xb0] sm:$0xff] %vm869, %v1288
      %1330 = vst.msk [vmem:[#allocation4 + $0xb8] sm:$0xff] %vm869, %v1290
      %1331 = vst.msk [vmem:[#allocation4 + $0xc0] sm:$0xff] %vm869, %v1292
      %1332 = vst.msk [vmem:[#allocation4 + $0xc8] sm:$0xff] %vm869, %v1294
      %1333 = vst.msk [vmem:[#allocation4 + $0xd0] sm:$0xff] %vm869, %v1296
      %1334 = vst.msk [vmem:[#allocation4 + $0xd8] sm:$0xff] %vm869, %v1298
      %1335 = vst.msk [vmem:[#allocation4 + $0xe0] sm:$0xff] %vm869, %v1300
      %1336 = vst.msk [vmem:[#allocation4 + $0xe8] sm:$0xff] %vm869, %v1302
      %1337 = vst.msk [vmem:[#allocation4 + $0xf0] sm:$0xff] %vm869, %v1304
      %1338 = vst.msk [vmem:[#allocation4 + $0xf8] sm:$0xff] %vm869, %v1306
      %v1339 = vlaneseq
      %v1340 = vshrl.u32 %v1339, 7
      %v1341 = vsub.s32 0, %v1340
      %v1342 = vrot.slane %v908, %v1341
      %s1344 = sor.u32 256, 64
      %1345 = vbcast.lane.b32.xlu0 %v1342, %s1344
      %v1346 = vpop.permute.xlu0 %1345
      %s1348 = sor.u32 256, 72
      %1349 = vbcast.lane.b32.xlu0 %v1342, %s1348
      %v1350 = vpop.permute.xlu0 %1349
      %v1351 = vlaneseq
      %v1352 = vshrl.u32 %v1351, 7
      %v1353 = vsub.s32 1, %v1352
      %v1354 = vrot.slane %v908, %v1353
      %s1356 = sor.u32 256, 64
      %1357 = vbcast.lane.b32.xlu0 %v1354, %s1356
      %v1358 = vpop.permute.xlu0 %1357
      %s1360 = sor.u32 256, 72
      %1361 = vbcast.lane.b32.xlu0 %v1354, %s1360
      %v1362 = vpop.permute.xlu0 %1361
      %v1363 = vlaneseq
      %v1364 = vshrl.u32 %v1363, 7
      %v1365 = vsub.s32 2, %v1364
      %v1366 = vrot.slane %v908, %v1365
      %s1368 = sor.u32 256, 64
      %1369 = vbcast.lane.b32.xlu0 %v1366, %s1368
      %v1370 = vpop.permute.xlu0 %1369
      %s1372 = sor.u32 256, 72
      %1373 = vbcast.lane.b32.xlu0 %v1366, %s1372
      %v1374 = vpop.permute.xlu0 %1373
      %v1375 = vlaneseq
      %v1376 = vshrl.u32 %v1375, 7
      %v1377 = vsub.s32 3, %v1376
      %v1378 = vrot.slane %v908, %v1377
      %s1380 = sor.u32 256, 64
      %1381 = vbcast.lane.b32.xlu0 %v1378, %s1380
      %v1382 = vpop.permute.xlu0 %1381
      %s1384 = sor.u32 256, 72
      %1385 = vbcast.lane.b32.xlu0 %v1378, %s1384
      %v1386 = vpop.permute.xlu0 %1385
      %v1387 = vlaneseq
      %v1388 = vshrl.u32 %v1387, 7
      %v1389 = vsub.s32 4, %v1388
      %v1390 = vrot.slane %v908, %v1389
      %s1392 = sor.u32 256, 64
      %1393 = vbcast.lane.b32.xlu0 %v1390, %s1392
      %v1394 = vpop.permute.xlu0 %1393
      %s1396 = sor.u32 256, 72
      %1397 = vbcast.lane.b32.xlu0 %v1390, %s1396
      %v1398 = vpop.permute.xlu0 %1397
      %v1399 = vlaneseq
      %v1400 = vshrl.u32 %v1399, 7
      %v1401 = vsub.s32 5, %v1400
      %v1402 = vrot.slane %v908, %v1401
      %s1404 = sor.u32 256, 64
      %1405 = vbcast.lane.b32.xlu0 %v1402, %s1404
      %v1406 = vpop.permute.xlu0 %1405
      %s1408 = sor.u32 256, 72
      %1409 = vbcast.lane.b32.xlu0 %v1402, %s1408
      %v1410 = vpop.permute.xlu0 %1409
      %v1411 = vlaneseq
      %v1412 = vshrl.u32 %v1411, 7
      %v1413 = vsub.s32 6, %v1412
      %v1414 = vrot.slane %v908, %v1413
      %s1416 = sor.u32 256, 64
      %1417 = vbcast.lane.b32.xlu0 %v1414, %s1416
      %v1418 = vpop.permute.xlu0 %1417
      %s1420 = sor.u32 256, 72
      %1421 = vbcast.lane.b32.xlu0 %v1414, %s1420
      %v1422 = vpop.permute.xlu0 %1421
      %v1423 = vlaneseq
      %v1424 = vshrl.u32 %v1423, 7
      %v1425 = vsub.s32 7, %v1424
      %v1426 = vrot.slane %v908, %v1425
      %s1428 = sor.u32 256, 64
      %1429 = vbcast.lane.b32.xlu0 %v1426, %s1428
      %v1430 = vpop.permute.xlu0 %1429
      %s1432 = sor.u32 256, 72
      %1433 = vbcast.lane.b32.xlu0 %v1426, %s1432
      %v1434 = vpop.permute.xlu0 %1433
      %v1435 = vlaneseq
      %v1436 = vshrl.u32 %v1435, 7
      %v1437 = vsub.s32 0, %v1436
      %v1438 = vrot.slane %v911, %v1437
      %s1440 = sor.u32 256, 64
      %1441 = vbcast.lane.b32.xlu0 %v1438, %s1440
      %v1442 = vpop.permute.xlu0 %1441
      %s1444 = sor.u32 256, 72
      %1445 = vbcast.lane.b32.xlu0 %v1438, %s1444
      %v1446 = vpop.permute.xlu0 %1445
      %v1447 = vlaneseq
      %v1448 = vshrl.u32 %v1447, 7
      %v1449 = vsub.s32 1, %v1448
      %v1450 = vrot.slane %v911, %v1449
      %s1452 = sor.u32 256, 64
      %1453 = vbcast.lane.b32.xlu0 %v1450, %s1452
      %v1454 = vpop.permute.xlu0 %1453
      %s1456 = sor.u32 256, 72
      %1457 = vbcast.lane.b32.xlu0 %v1450, %s1456
      %v1458 = vpop.permute.xlu0 %1457
      %v1459 = vlaneseq
      %v1460 = vshrl.u32 %v1459, 7
      %v1461 = vsub.s32 2, %v1460
      %v1462 = vrot.slane %v911, %v1461
      %s1464 = sor.u32 256, 64
      %1465 = vbcast.lane.b32.xlu0 %v1462, %s1464
      %v1466 = vpop.permute.xlu0 %1465
      %s1468 = sor.u32 256, 72
      %1469 = vbcast.lane.b32.xlu0 %v1462, %s1468
      %v1470 = vpop.permute.xlu0 %1469
      %v1471 = vlaneseq
      %v1472 = vshrl.u32 %v1471, 7
      %v1473 = vsub.s32 3, %v1472
      %v1474 = vrot.slane %v911, %v1473
      %s1476 = sor.u32 256, 64
      %1477 = vbcast.lane.b32.xlu0 %v1474, %s1476
      %v1478 = vpop.permute.xlu0 %1477
      %s1480 = sor.u32 256, 72
      %1481 = vbcast.lane.b32.xlu0 %v1474, %s1480
      %v1482 = vpop.permute.xlu0 %1481
      %v1483 = vlaneseq
      %v1484 = vshrl.u32 %v1483, 7
      %v1485 = vsub.s32 4, %v1484
      %v1486 = vrot.slane %v911, %v1485
      %s1488 = sor.u32 256, 64
      %1489 = vbcast.lane.b32.xlu0 %v1486, %s1488
      %v1490 = vpop.permute.xlu0 %1489
      %s1492 = sor.u32 256, 72
      %1493 = vbcast.lane.b32.xlu0 %v1486, %s1492
      %v1494 = vpop.permute.xlu0 %1493
      %v1495 = vlaneseq
      %v1496 = vshrl.u32 %v1495, 7
      %v1497 = vsub.s32 5, %v1496
      %v1498 = vrot.slane %v911, %v1497
      %s1500 = sor.u32 256, 64
      %1501 = vbcast.lane.b32.xlu0 %v1498, %s1500
      %v1502 = vpop.permute.xlu0 %1501
      %s1504 = sor.u32 256, 72
      %1505 = vbcast.lane.b32.xlu0 %v1498, %s1504
      %v1506 = vpop.permute.xlu0 %1505
      %v1507 = vlaneseq
      %v1508 = vshrl.u32 %v1507, 7
      %v1509 = vsub.s32 6, %v1508
      %v1510 = vrot.slane %v911, %v1509
      %s1512 = sor.u32 256, 64
      %1513 = vbcast.lane.b32.xlu0 %v1510, %s1512
      %v1514 = vpop.permute.xlu0 %1513
      %s1516 = sor.u32 256, 72
      %1517 = vbcast.lane.b32.xlu0 %v1510, %s1516
      %v1518 = vpop.permute.xlu0 %1517
      %v1519 = vlaneseq
      %v1520 = vshrl.u32 %v1519, 7
      %v1521 = vsub.s32 7, %v1520
      %v1522 = vrot.slane %v911, %v1521
      %s1524 = sor.u32 256, 64
      %1525 = vbcast.lane.b32.xlu0 %v1522, %s1524
      %v1526 = vpop.permute.xlu0 %1525
      %s1528 = sor.u32 256, 72
      %1529 = vbcast.lane.b32.xlu0 %v1522, %s1528
      %v1530 = vpop.permute.xlu0 %1529
      %v1531 = vmul.f32 %v962, %v784
      %v1532 = vmul.f32 %v970, %v785
      %v1533 = vmul.f32 %v969, %v786
      %v1534 = vmul.f32 %v971, %v787
      %v1535 = vmul.f32 %v979, %v788
      %v1536 = vmul.f32 %v987, %v789
      %v1537 = vmul.f32 %v986, %v790
      %v1538 = vmul.f32 %v988, %v791
      %v1548 = vunpack.c.l.s4 1966171168
      %v1549 = vunpack.c.0.s8 %v1548
      %v1550 = vlaneseq
      %v1551 = vshrl.u32 %v1550, 7
      %v1552 = vsub.s32 %v1549, %v1551
      %v1553 = vrot.slane %v1531, %v1552
      %v1554 = vcombine.high %v1553, %v1553
      %v1556 = vunpack.c.l.s4 1966171168
      %v1557 = vunpack.c.0.s8 %v1556
      %v1558 = vlaneseq
      %v1559 = vshrl.u32 %v1558, 7
      %v1560 = vsub.s32 %v1557, %v1559
      %v1561 = vrot.slane %v1532, %v1560
      %v1562 = vcombine.high %v1561, %v1561
      %v1564 = vunpack.c.l.s4 1966171168
      %v1565 = vunpack.c.0.s8 %v1564
      %v1566 = vlaneseq
      %v1567 = vshrl.u32 %v1566, 7
      %v1568 = vsub.s32 %v1565, %v1567
      %v1569 = vrot.slane %v1533, %v1568
      %v1570 = vcombine.high %v1569, %v1569
      %v1572 = vunpack.c.l.s4 1966171168
      %v1573 = vunpack.c.0.s8 %v1572
      %v1574 = vlaneseq
      %v1575 = vshrl.u32 %v1574, 7
      %v1576 = vsub.s32 %v1573, %v1575
      %v1577 = vrot.slane %v1534, %v1576
      %v1578 = vcombine.high %v1577, %v1577
      %v1580 = vunpack.c.l.s4 1966171168
      %v1581 = vunpack.c.0.s8 %v1580
      %v1582 = vlaneseq
      %v1583 = vshrl.u32 %v1582, 7
      %v1584 = vsub.s32 %v1581, %v1583
      %v1585 = vrot.slane %v1535, %v1584
      %v1586 = vcombine.high %v1585, %v1585
      %v1588 = vunpack.c.l.s4 1966171168
      %v1589 = vunpack.c.0.s8 %v1588
      %v1590 = vlaneseq
      %v1591 = vshrl.u32 %v1590, 7
      %v1592 = vsub.s32 %v1589, %v1591
      %v1593 = vrot.slane %v1536, %v1592
      %v1594 = vcombine.high %v1593, %v1593
      %v1596 = vunpack.c.l.s4 1966171168
      %v1597 = vunpack.c.0.s8 %v1596
      %v1598 = vlaneseq
      %v1599 = vshrl.u32 %v1598, 7
      %v1600 = vsub.s32 %v1597, %v1599
      %v1601 = vrot.slane %v1537, %v1600
      %v1602 = vcombine.high %v1601, %v1601
      %v1604 = vunpack.c.l.s4 1966171168
      %v1605 = vunpack.c.0.s8 %v1604
      %v1606 = vlaneseq
      %v1607 = vshrl.u32 %v1606, 7
      %v1608 = vsub.s32 %v1605, %v1607
      %v1609 = vrot.slane %v1538, %v1608
      %v1610 = vcombine.high %v1609, %v1609
      %v1611 = vlaneseq
      %v1612 = vshrl.u32 %v1611, 7
      %v1613 = vsub.s32 0, %v1612
      %v1614 = vrot.slane %v1553, %v1613
      %v1615 = vlaneseq
      %v1616 = vshrl.u32 %v1615, 7
      %v1617 = vsub.s32 0, %v1616
      %v1618 = vrot.slane %v1554, %v1617
      %v1619 = vlaneseq
      %v1620 = vshrl.u32 %v1619, 7
      %v1621 = vsub.s32 0, %v1620
      %v1622 = vrot.slane %v1561, %v1621
      %v1623 = vlaneseq
      %v1624 = vshrl.u32 %v1623, 7
      %v1625 = vsub.s32 0, %v1624
      %v1626 = vrot.slane %v1562, %v1625
      %v1627 = vlaneseq
      %v1628 = vshrl.u32 %v1627, 7
      %v1629 = vsub.s32 0, %v1628
      %v1630 = vrot.slane %v1569, %v1629
      %v1631 = vlaneseq
      %v1632 = vshrl.u32 %v1631, 7
      %v1633 = vsub.s32 0, %v1632
      %v1634 = vrot.slane %v1570, %v1633
      %v1635 = vlaneseq
      %v1636 = vshrl.u32 %v1635, 7
      %v1637 = vsub.s32 0, %v1636
      %v1638 = vrot.slane %v1577, %v1637
      %v1639 = vlaneseq
      %v1640 = vshrl.u32 %v1639, 7
      %v1641 = vsub.s32 0, %v1640
      %v1642 = vrot.slane %v1578, %v1641
      %v1643 = vlaneseq
      %v1644 = vshrl.u32 %v1643, 7
      %v1645 = vsub.s32 0, %v1644
      %v1646 = vrot.slane %v1585, %v1645
      %v1647 = vlaneseq
      %v1648 = vshrl.u32 %v1647, 7
      %v1649 = vsub.s32 0, %v1648
      %v1650 = vrot.slane %v1586, %v1649
      %v1651 = vlaneseq
      %v1652 = vshrl.u32 %v1651, 7
      %v1653 = vsub.s32 0, %v1652
      %v1654 = vrot.slane %v1593, %v1653
      %v1655 = vlaneseq
      %v1656 = vshrl.u32 %v1655, 7
      %v1657 = vsub.s32 0, %v1656
      %v1658 = vrot.slane %v1594, %v1657
      %v1659 = vlaneseq
      %v1660 = vshrl.u32 %v1659, 7
      %v1661 = vsub.s32 0, %v1660
      %v1662 = vrot.slane %v1601, %v1661
      %v1663 = vlaneseq
      %v1664 = vshrl.u32 %v1663, 7
      %v1665 = vsub.s32 0, %v1664
      %v1666 = vrot.slane %v1602, %v1665
      %v1667 = vlaneseq
      %v1668 = vshrl.u32 %v1667, 7
      %v1669 = vsub.s32 0, %v1668
      %v1670 = vrot.slane %v1609, %v1669
      %v1671 = vlaneseq
      %v1672 = vshrl.u32 %v1671, 7
      %v1673 = vsub.s32 0, %v1672
      %v1674 = vrot.slane %v1610, %v1673
      %v1691 = vmul.f32 %v1346, %v1614
      %v1692 = vmul.f32 %v1350, %v1614
      %v1693 = vmul.f32 %v1358, %v1618
      %v1694 = vmul.f32 %v1362, %v1618
      %v1695 = vmul.f32 %v1370, %v1622
      %v1696 = vmul.f32 %v1374, %v1622
      %v1697 = vmul.f32 %v1382, %v1626
      %v1698 = vmul.f32 %v1386, %v1626
      %v1699 = vmul.f32 %v1394, %v1630
      %v1700 = vmul.f32 %v1398, %v1630
      %v1701 = vmul.f32 %v1406, %v1634
      %v1702 = vmul.f32 %v1410, %v1634
      %v1703 = vmul.f32 %v1418, %v1638
      %v1704 = vmul.f32 %v1422, %v1638
      %v1705 = vmul.f32 %v1430, %v1642
      %v1706 = vmul.f32 %v1434, %v1642
      %v1707 = vmul.f32 %v1442, %v1646
      %v1708 = vmul.f32 %v1446, %v1646
      %v1709 = vmul.f32 %v1454, %v1650
      %v1710 = vmul.f32 %v1458, %v1650
      %v1711 = vmul.f32 %v1466, %v1654
      %v1712 = vmul.f32 %v1470, %v1654
      %v1713 = vmul.f32 %v1478, %v1658
      %v1714 = vmul.f32 %v1482, %v1658
      %v1715 = vmul.f32 %v1490, %v1662
      %v1716 = vmul.f32 %v1494, %v1662
      %v1717 = vmul.f32 %v1502, %v1666
      %v1718 = vmul.f32 %v1506, %v1666
      %v1719 = vmul.f32 %v1514, %v1670
      %v1720 = vmul.f32 %v1518, %v1670
      %v1721 = vmul.f32 %v1526, %v1674
      %v1722 = vmul.f32 %v1530, %v1674
      %1723 = vst.msk [vmem:[#allocation5] sm:$0xff] %vm869, %v1691
      %1724 = vst.msk [vmem:[#allocation5 + $0x8] sm:$0xff] %vm869, %v1692
      %1725 = vst.msk [vmem:[#allocation5 + $0x10] sm:$0xff] %vm869, %v1693
      %1726 = vst.msk [vmem:[#allocation5 + $0x18] sm:$0xff] %vm869, %v1694
      %1727 = vst.msk [vmem:[#allocation5 + $0x20] sm:$0xff] %vm869, %v1695
      %1728 = vst.msk [vmem:[#allocation5 + $0x28] sm:$0xff] %vm869, %v1696
      %1729 = vst.msk [vmem:[#allocation5 + $0x30] sm:$0xff] %vm869, %v1697
      %1730 = vst.msk [vmem:[#allocation5 + $0x38] sm:$0xff] %vm869, %v1698
      %1731 = vst.msk [vmem:[#allocation5 + $0x40] sm:$0xff] %vm869, %v1699
      %1732 = vst.msk [vmem:[#allocation5 + $0x48] sm:$0xff] %vm869, %v1700
      %1733 = vst.msk [vmem:[#allocation5 + $0x50] sm:$0xff] %vm869, %v1701
      %1734 = vst.msk [vmem:[#allocation5 + $0x58] sm:$0xff] %vm869, %v1702
      %1735 = vst.msk [vmem:[#allocation5 + $0x60] sm:$0xff] %vm869, %v1703
      %1736 = vst.msk [vmem:[#allocation5 + $0x68] sm:$0xff] %vm869, %v1704
      %1737 = vst.msk [vmem:[#allocation5 + $0x70] sm:$0xff] %vm869, %v1705
      %1738 = vst.msk [vmem:[#allocation5 + $0x78] sm:$0xff] %vm869, %v1706
      %1739 = vst.msk [vmem:[#allocation5 + $0x80] sm:$0xff] %vm869, %v1707
      %1740 = vst.msk [vmem:[#allocation5 + $0x88] sm:$0xff] %vm869, %v1708
      %1741 = vst.msk [vmem:[#allocation5 + $0x90] sm:$0xff] %vm869, %v1709
      %1742 = vst.msk [vmem:[#allocation5 + $0x98] sm:$0xff] %vm869, %v1710
      %1743 = vst.msk [vmem:[#allocation5 + $0xa0] sm:$0xff] %vm869, %v1711
      %1744 = vst.msk [vmem:[#allocation5 + $0xa8] sm:$0xff] %vm869, %v1712
      %1745 = vst.msk [vmem:[#allocation5 + $0xb0] sm:$0xff] %vm869, %v1713
      %1746 = vst.msk [vmem:[#allocation5 + $0xb8] sm:$0xff] %vm869, %v1714
      %1747 = vst.msk [vmem:[#allocation5 + $0xc0] sm:$0xff] %vm869, %v1715
      %1748 = vst.msk [vmem:[#allocation5 + $0xc8] sm:$0xff] %vm869, %v1716
      %1749 = vst.msk [vmem:[#allocation5 + $0xd0] sm:$0xff] %vm869, %v1717
      %1750 = vst.msk [vmem:[#allocation5 + $0xd8] sm:$0xff] %vm869, %v1718
      %1751 = vst.msk [vmem:[#allocation5 + $0xe0] sm:$0xff] %vm869, %v1719
      %1752 = vst.msk [vmem:[#allocation5 + $0xe8] sm:$0xff] %vm869, %v1720
      %1753 = vst.msk [vmem:[#allocation5 + $0xf0] sm:$0xff] %vm869, %v1721
      %1754 = vst.msk [vmem:[#allocation5 + $0xf8] sm:$0xff] %vm869, %v1722
      %v1756 = vunpack.c.l.s4 1983009808
      %v1757 = vunpack.c.0.s8 %v1756
      %v1758 = vlaneseq
      %v1759 = vshrl.u32 %v1758, 7
      %v1760 = vsub.s32 %v1757, %v1759
      %v1761 = vrot.slane %v1006, %v1760
      %v1763 = vunpack.c.l.s4 1983009808
      %v1764 = vunpack.c.0.s8 %v1763
      %v1765 = vlaneseq
      %v1766 = vshrl.u32 %v1765, 7
      %v1767 = vsub.s32 %v1764, %v1766
      %v1768 = vrot.slane %v1014, %v1767
      %v1770 = vunpack.c.l.s4 1983009808
      %v1771 = vunpack.c.0.s8 %v1770
      %v1772 = vlaneseq
      %v1773 = vshrl.u32 %v1772, 7
      %v1774 = vsub.s32 %v1771, %v1773
      %v1775 = vrot.slane %v1013, %v1774
      %v1777 = vunpack.c.l.s4 1983009808
      %v1778 = vunpack.c.0.s8 %v1777
      %v1779 = vlaneseq
      %v1780 = vshrl.u32 %v1779, 7
      %v1781 = vsub.s32 %v1778, %v1780
      %v1782 = vrot.slane %v1015, %v1781
      %v1784 = vunpack.c.l.s4 1983009808
      %v1785 = vunpack.c.0.s8 %v1784
      %v1786 = vlaneseq
      %v1787 = vshrl.u32 %v1786, 7
      %v1788 = vsub.s32 %v1785, %v1787
      %v1789 = vrot.slane %v1023, %v1788
      %v1791 = vunpack.c.l.s4 1983009808
      %v1792 = vunpack.c.0.s8 %v1791
      %v1793 = vlaneseq
      %v1794 = vshrl.u32 %v1793, 7
      %v1795 = vsub.s32 %v1792, %v1794
      %v1796 = vrot.slane %v1031, %v1795
      %v1798 = vunpack.c.l.s4 1983009808
      %v1799 = vunpack.c.0.s8 %v1798
      %v1800 = vlaneseq
      %v1801 = vshrl.u32 %v1800, 7
      %v1802 = vsub.s32 %v1799, %v1801
      %v1803 = vrot.slane %v1030, %v1802
      %v1805 = vunpack.c.l.s4 1983009808
      %v1806 = vunpack.c.0.s8 %v1805
      %v1807 = vlaneseq
      %v1808 = vshrl.u32 %v1807, 7
      %v1809 = vsub.s32 %v1806, %v1808
      %v1810 = vrot.slane %v1032, %v1809
      %1811 = vrot.lane.b32.xlu0 %v1761, 48
      %v1812 = vpop.permute.xlu0 %1811
      %1813 = vrot.lane.b32.xlu0 %v1768, 48
      %v1814 = vpop.permute.xlu0 %1813
      %1815 = vrot.lane.b32.xlu0 %v1775, 48
      %v1816 = vpop.permute.xlu0 %1815
      %1817 = vrot.lane.b32.xlu0 %v1782, 48
      %v1818 = vpop.permute.xlu0 %1817
      %1819 = vrot.lane.b32.xlu0 %v1789, 48
      %v1820 = vpop.permute.xlu0 %1819
      %1821 = vrot.lane.b32.xlu0 %v1796, 48
      %v1822 = vpop.permute.xlu0 %1821
      %1823 = vrot.lane.b32.xlu0 %v1803, 48
      %v1824 = vpop.permute.xlu0 %1823
      %1825 = vrot.lane.b32.xlu0 %v1810, 48
      %v1826 = vpop.permute.xlu0 %1825
      %vm1835 = vcmask 123904
      %1836 = vst.msk [vmem:[#allocation6] sm:$0x3] %vm1835, %v1812
      %1837 = vst.msk [vmem:[#allocation6 + $0x2] sm:$0x3] %vm1835, %v1814
      %1838 = vst.msk [vmem:[#allocation6 + $0x4] sm:$0x3] %vm1835, %v1816
      %1839 = vst.msk [vmem:[#allocation6 + $0x6] sm:$0x3] %vm1835, %v1818
      %1840 = vst.msk [vmem:[#allocation6 + $0x8] sm:$0x3] %vm1835, %v1820
      %1841 = vst.msk [vmem:[#allocation6 + $0xa] sm:$0x3] %vm1835, %v1822
      %1842 = vst.msk [vmem:[#allocation6 + $0xc] sm:$0x3] %vm1835, %v1824
      %1843 = vst.msk [vmem:[#allocation6 + $0xe] sm:$0x3] %vm1835, %v1826
      %v1844 = vld [vmem:[#allocation2] sm:$0xff]
      %v1845 = vld [vmem:[#allocation2 + $0x8] sm:$0xff]
      %v1846 = vld [vmem:[#allocation2 + $0x10] sm:$0xff]
      %v1847 = vld [vmem:[#allocation2 + $0x18] sm:$0xff]
      %v1848 = vld [vmem:[#allocation4] sm:$0xff]
      %v1849 = vld [vmem:[#allocation4 + $0x8] sm:$0xff]
      %v1850 = vld [vmem:[#allocation4 + $0x10] sm:$0xff]
      %v1851 = vld [vmem:[#allocation4 + $0x18] sm:$0xff]
      %v1852 = vmul.f32 %v1848, %v1844
      %v1853 = vmul.f32 %v1849, %v1845
      %v1854 = vmul.f32 %v1850, %v1846
      %v1855 = vmul.f32 %v1851, %v1847
      %v1856 = vld [vmem:[#allocation5] sm:$0xff]
      %v1857 = vld [vmem:[#allocation5 + $0x8] sm:$0xff]
      %v1858 = vld [vmem:[#allocation5 + $0x10] sm:$0xff]
      %v1859 = vld [vmem:[#allocation5 + $0x18] sm:$0xff]
      %v1860 = vadd.f32 %v1852, %v1856
      %v1861 = vadd.f32 %v1853, %v1857
      %v1862 = vadd.f32 %v1854, %v1858
      %v1863 = vadd.f32 %v1855, %v1859
      %v1864 = vld [vmem:[#allocation6] sm:$0x3]
      %v1865 = vlaneseq
      %v1866 = vshrl.u32 %v1865, 7
      %v1867 = vsub.s32 0, %v1866
      %v1868 = vrot.slane %v1864, %v1867
      %1870 = vbcast.lane.b32.xlu0 %v1868, 256
      %v1871 = vpop.permute.xlu0 %1870
      %s1873 = sor.u32 256, 8
      %1874 = vbcast.lane.b32.xlu0 %v1868, %s1873
      %v1875 = vpop.permute.xlu0 %1874
      %v1876 = vlaneseq
      %v1877 = vshrl.u32 %v1876, 7
      %v1878 = vsub.s32 1, %v1877
      %v1879 = vrot.slane %v1864, %v1878
      %1881 = vbcast.lane.b32.xlu0 %v1879, 256
      %v1882 = vpop.permute.xlu0 %1881
      %s1884 = sor.u32 256, 8
      %1885 = vbcast.lane.b32.xlu0 %v1879, %s1884
      %v1886 = vpop.permute.xlu0 %1885
      %v1887 = vmul.f32 %v1871, %v1860
      %v1888 = vmul.f32 %v1875, %v1861
      %v1889 = vmul.f32 %v1882, %v1862
      %v1890 = vmul.f32 %v1886, %v1863
      %v1891 = vsel %vm869, %v1887, 0.0
      %v1892 = vsel %vm869, %v1888, 0.0
      %v1893 = vadd.f32 %v1891, %v1892
      %v1894 = vrot.slane %v1893, 4
      %v1895 = vadd.f32 %v1893, %v1894
      %v1896 = vrot.slane %v1895, 2
      %v1897 = vadd.f32 %v1895, %v1896
      %v1898 = vrot.slane %v1897, 1
      %v1899 = vadd.f32 %v1897, %v1898
      %v1900 = vsel %vm869, %v1889, 0.0
      %v1901 = vsel %vm869, %v1890, 0.0
      %v1902 = vadd.f32 %v1900, %v1901
      %v1903 = vrot.slane %v1902, 4
      %v1904 = vadd.f32 %v1902, %v1903
      %v1905 = vrot.slane %v1904, 2
      %v1906 = vadd.f32 %v1904, %v1905
      %v1907 = vrot.slane %v1906, 1
      %v1908 = vadd.f32 %v1906, %v1907
      %vm1911 = vcmask 1041409
      %v1912 = vsel %vm1911, %v1908, %v1899
      %1914 = vst.msk [vmem:[#allocation7] sm:$0x3] %vm602, %v1912
      %s1915 = scalar_lea.vmem [#allocation4], 32
      %v1916 = vld [vmem:[%s1915] sm:$0xff]
      %v1917 = vld [vmem:[%s1915 + $0x8] sm:$0xff]
      %v1918 = vld [vmem:[%s1915 + $0x10] sm:$0xff]
      %v1919 = vld [vmem:[%s1915 + $0x18] sm:$0xff]
      %v1920 = vmul.f32 %v1916, %v1860
      %v1921 = vmul.f32 %v1917, %v1861
      %v1922 = vmul.f32 %v1918, %v1862
      %v1923 = vmul.f32 %v1919, %v1863
      %s1924 = scalar_lea.vmem [#allocation5], 32
      %v1925 = vld [vmem:[%s1924] sm:$0xff]
      %v1926 = vld [vmem:[%s1924 + $0x8] sm:$0xff]
      %v1927 = vld [vmem:[%s1924 + $0x10] sm:$0xff]
      %v1928 = vld [vmem:[%s1924 + $0x18] sm:$0xff]
      %v1929 = vadd.f32 %v1920, %v1925
      %v1930 = vadd.f32 %v1921, %v1926
      %v1931 = vadd.f32 %v1922, %v1927
      %v1932 = vadd.f32 %v1923, %v1928
      %s1933 = scalar_lea.vmem [#allocation6], 2
      %v1934 = vld [vmem:[%s1933] sm:$0x3]
      %v1935 = vlaneseq
      %v1936 = vshrl.u32 %v1935, 7
      %v1937 = vsub.s32 0, %v1936
      %v1938 = vrot.slane %v1934, %v1937
      %1940 = vbcast.lane.b32.xlu0 %v1938, 256
      %v1941 = vpop.permute.xlu0 %1940
      %s1943 = sor.u32 256, 8
      %1944 = vbcast.lane.b32.xlu0 %v1938, %s1943
      %v1945 = vpop.permute.xlu0 %1944
      %v1946 = vlaneseq
      %v1947 = vshrl.u32 %v1946, 7
      %v1948 = vsub.s32 1, %v1947
      %v1949 = vrot.slane %v1934, %v1948
      %1951 = vbcast.lane.b32.xlu0 %v1949, 256
      %v1952 = vpop.permute.xlu0 %1951
      %s1954 = sor.u32 256, 8
      %1955 = vbcast.lane.b32.xlu0 %v1949, %s1954
      %v1956 = vpop.permute.xlu0 %1955
      %v1957 = vmul.f32 %v1941, %v1929
      %v1958 = vmul.f32 %v1945, %v1930
      %v1959 = vmul.f32 %v1952, %v1931
      %v1960 = vmul.f32 %v1956, %v1932
      %v1961 = vsel %vm869, %v1957, 0.0
      %v1962 = vsel %vm869, %v1958, 0.0
      %v1963 = vadd.f32 %v1961, %v1962
      %v1964 = vrot.slane %v1963, 4
      %v1965 = vadd.f32 %v1963, %v1964
      %v1966 = vrot.slane %v1965, 2
      %v1967 = vadd.f32 %v1965, %v1966
      %v1968 = vrot.slane %v1967, 1
      %v1969 = vadd.f32 %v1967, %v1968
      %v1970 = vsel %vm869, %v1959, 0.0
      %v1971 = vsel %vm869, %v1960, 0.0
      %v1972 = vadd.f32 %v1970, %v1971
      %v1973 = vrot.slane %v1972, 4
      %v1974 = vadd.f32 %v1972, %v1973
      %v1975 = vrot.slane %v1974, 2
      %v1976 = vadd.f32 %v1974, %v1975
      %v1977 = vrot.slane %v1976, 1
      %v1978 = vadd.f32 %v1976, %v1977
      %v1981 = vsel %vm1911, %v1978, %v1969
      %s1983 = scalar_lea.vmem [#allocation7], 2
      %1984 = vst.msk [vmem:[%s1983] sm:$0x3] %vm602, %v1981
      %s1985 = scalar_lea.vmem [#allocation4], 64
      %v1986 = vld [vmem:[%s1985] sm:$0xff]
      %v1987 = vld [vmem:[%s1985 + $0x8] sm:$0xff]
      %v1988 = vld [vmem:[%s1985 + $0x10] sm:$0xff]
      %v1989 = vld [vmem:[%s1985 + $0x18] sm:$0xff]
      %v1990 = vmul.f32 %v1986, %v1929
      %v1991 = vmul.f32 %v1987, %v1930
      %v1992 = vmul.f32 %v1988, %v1931
      %v1993 = vmul.f32 %v1989, %v1932
      %s1994 = scalar_lea.vmem [#allocation5], 64
      %v1995 = vld [vmem:[%s1994] sm:$0xff]
      %v1996 = vld [vmem:[%s1994 + $0x8] sm:$0xff]
      %v1997 = vld [vmem:[%s1994 + $0x10] sm:$0xff]
      %v1998 = vld [vmem:[%s1994 + $0x18] sm:$0xff]
      %v1999 = vadd.f32 %v1990, %v1995
      %v2000 = vadd.f32 %v1991, %v1996
      %v2001 = vadd.f32 %v1992, %v1997
      %v2002 = vadd.f32 %v1993, %v1998
      %s2003 = scalar_lea.vmem [#allocation6], 4
      %v2004 = vld [vmem:[%s2003] sm:$0x3]
      %v2005 = vlaneseq
      %v2006 = vshrl.u32 %v2005, 7
      %v2007 = vsub.s32 0, %v2006
      %v2008 = vrot.slane %v2004, %v2007
      %2010 = vbcast.lane.b32.xlu0 %v2008, 256
      %v2011 = vpop.permute.xlu0 %2010
      %s2013 = sor.u32 256, 8
      %2014 = vbcast.lane.b32.xlu0 %v2008, %s2013
      %v2015 = vpop.permute.xlu0 %2014
      %v2016 = vlaneseq
      %v2017 = vshrl.u32 %v2016, 7
      %v2018 = vsub.s32 1, %v2017
      %v2019 = vrot.slane %v2004, %v2018
      %2021 = vbcast.lane.b32.xlu0 %v2019, 256
      %v2022 = vpop.permute.xlu0 %2021
      %s2024 = sor.u32 256, 8
      %2025 = vbcast.lane.b32.xlu0 %v2019, %s2024
      %v2026 = vpop.permute.xlu0 %2025
      %v2027 = vmul.f32 %v2011, %v1999
      %v2028 = vmul.f32 %v2015, %v2000
      %v2029 = vmul.f32 %v2022, %v2001
      %v2030 = vmul.f32 %v2026, %v2002
      %v2031 = vsel %vm869, %v2027, 0.0
      %v2032 = vsel %vm869, %v2028, 0.0
      %v2033 = vadd.f32 %v2031, %v2032
      %v2034 = vrot.slane %v2033, 4
      %v2035 = vadd.f32 %v2033, %v2034
      %v2036 = vrot.slane %v2035, 2
      %v2037 = vadd.f32 %v2035, %v2036
      %v2038 = vrot.slane %v2037, 1
      %v2039 = vadd.f32 %v2037, %v2038
      %v2040 = vsel %vm869, %v2029, 0.0
      %v2041 = vsel %vm869, %v2030, 0.0
      %v2042 = vadd.f32 %v2040, %v2041
      %v2043 = vrot.slane %v2042, 4
      %v2044 = vadd.f32 %v2042, %v2043
      %v2045 = vrot.slane %v2044, 2
      %v2046 = vadd.f32 %v2044, %v2045
      %v2047 = vrot.slane %v2046, 1
      %v2048 = vadd.f32 %v2046, %v2047
      %v2051 = vsel %vm1911, %v2048, %v2039
      %s2053 = scalar_lea.vmem [#allocation7], 4
      %2054 = vst.msk [vmem:[%s2053] sm:$0x3] %vm602, %v2051
      %s2055 = scalar_lea.vmem [#allocation4], 96
      %v2056 = vld [vmem:[%s2055] sm:$0xff]
      %v2057 = vld [vmem:[%s2055 + $0x8] sm:$0xff]
      %v2058 = vld [vmem:[%s2055 + $0x10] sm:$0xff]
      %v2059 = vld [vmem:[%s2055 + $0x18] sm:$0xff]
      %v2060 = vmul.f32 %v2056, %v1999
      %v2061 = vmul.f32 %v2057, %v2000
      %v2062 = vmul.f32 %v2058, %v2001
      %v2063 = vmul.f32 %v2059, %v2002
      %s2064 = scalar_lea.vmem [#allocation5], 96
      %v2065 = vld [vmem:[%s2064] sm:$0xff]
      %v2066 = vld [vmem:[%s2064 + $0x8] sm:$0xff]
      %v2067 = vld [vmem:[%s2064 + $0x10] sm:$0xff]
      %v2068 = vld [vmem:[%s2064 + $0x18] sm:$0xff]
      %v2069 = vadd.f32 %v2060, %v2065
      %v2070 = vadd.f32 %v2061, %v2066
      %v2071 = vadd.f32 %v2062, %v2067
      %v2072 = vadd.f32 %v2063, %v2068
      %s2073 = scalar_lea.vmem [#allocation6], 6
      %v2074 = vld [vmem:[%s2073] sm:$0x3]
      %v2075 = vlaneseq
      %v2076 = vshrl.u32 %v2075, 7
      %v2077 = vsub.s32 0, %v2076
      %v2078 = vrot.slane %v2074, %v2077
      %2080 = vbcast.lane.b32.xlu0 %v2078, 256
      %v2081 = vpop.permute.xlu0 %2080
      %s2083 = sor.u32 256, 8
      %2084 = vbcast.lane.b32.xlu0 %v2078, %s2083
      %v2085 = vpop.permute.xlu0 %2084
      %v2086 = vlaneseq
      %v2087 = vshrl.u32 %v2086, 7
      %v2088 = vsub.s32 1, %v2087
      %v2089 = vrot.slane %v2074, %v2088
      %2091 = vbcast.lane.b32.xlu0 %v2089, 256
      %v2092 = vpop.permute.xlu0 %2091
      %s2094 = sor.u32 256, 8
      %2095 = vbcast.lane.b32.xlu0 %v2089, %s2094
      %v2096 = vpop.permute.xlu0 %2095
      %v2097 = vmul.f32 %v2081, %v2069
      %v2098 = vmul.f32 %v2085, %v2070
      %v2099 = vmul.f32 %v2092, %v2071
      %v2100 = vmul.f32 %v2096, %v2072
      %v2101 = vsel %vm869, %v2097, 0.0
      %v2102 = vsel %vm869, %v2098, 0.0
      %v2103 = vadd.f32 %v2101, %v2102
      %v2104 = vrot.slane %v2103, 4
      %v2105 = vadd.f32 %v2103, %v2104
      %v2106 = vrot.slane %v2105, 2
      %v2107 = vadd.f32 %v2105, %v2106
      %v2108 = vrot.slane %v2107, 1
      %v2109 = vadd.f32 %v2107, %v2108
      %v2110 = vsel %vm869, %v2099, 0.0
      %v2111 = vsel %vm869, %v2100, 0.0
      %v2112 = vadd.f32 %v2110, %v2111
      %v2113 = vrot.slane %v2112, 4
      %v2114 = vadd.f32 %v2112, %v2113
      %v2115 = vrot.slane %v2114, 2
      %v2116 = vadd.f32 %v2114, %v2115
      %v2117 = vrot.slane %v2116, 1
      %v2118 = vadd.f32 %v2116, %v2117
      %v2121 = vsel %vm1911, %v2118, %v2109
      %s2123 = scalar_lea.vmem [#allocation7], 6
      %2124 = vst.msk [vmem:[%s2123] sm:$0x3] %vm602, %v2121
      %s2125 = scalar_lea.vmem [#allocation4], 128
      %v2126 = vld [vmem:[%s2125] sm:$0xff]
      %v2127 = vld [vmem:[%s2125 + $0x8] sm:$0xff]
      %v2128 = vld [vmem:[%s2125 + $0x10] sm:$0xff]
      %v2129 = vld [vmem:[%s2125 + $0x18] sm:$0xff]
      %v2130 = vmul.f32 %v2126, %v2069
      %v2131 = vmul.f32 %v2127, %v2070
      %v2132 = vmul.f32 %v2128, %v2071
      %v2133 = vmul.f32 %v2129, %v2072
      %s2134 = scalar_lea.vmem [#allocation5], 128
      %v2135 = vld [vmem:[%s2134] sm:$0xff]
      %v2136 = vld [vmem:[%s2134 + $0x8] sm:$0xff]
      %v2137 = vld [vmem:[%s2134 + $0x10] sm:$0xff]
      %v2138 = vld [vmem:[%s2134 + $0x18] sm:$0xff]
      %v2139 = vadd.f32 %v2130, %v2135
      %v2140 = vadd.f32 %v2131, %v2136
      %v2141 = vadd.f32 %v2132, %v2137
      %v2142 = vadd.f32 %v2133, %v2138
      %s2143 = scalar_lea.vmem [#allocation6], 8
      %v2144 = vld [vmem:[%s2143] sm:$0x3]
      %v2145 = vlaneseq
      %v2146 = vshrl.u32 %v2145, 7
      %v2147 = vsub.s32 0, %v2146
      %v2148 = vrot.slane %v2144, %v2147
      %2150 = vbcast.lane.b32.xlu0 %v2148, 256
      %v2151 = vpop.permute.xlu0 %2150
      %s2153 = sor.u32 256, 8
      %2154 = vbcast.lane.b32.xlu0 %v2148, %s2153
      %v2155 = vpop.permute.xlu0 %2154
      %v2156 = vlaneseq
      %v2157 = vshrl.u32 %v2156, 7
      %v2158 = vsub.s32 1, %v2157
      %v2159 = vrot.slane %v2144, %v2158
      %2161 = vbcast.lane.b32.xlu0 %v2159, 256
      %v2162 = vpop.permute.xlu0 %2161
      %s2164 = sor.u32 256, 8
      %2165 = vbcast.lane.b32.xlu0 %v2159, %s2164
      %v2166 = vpop.permute.xlu0 %2165
      %v2167 = vmul.f32 %v2151, %v2139
      %v2168 = vmul.f32 %v2155, %v2140
      %v2169 = vmul.f32 %v2162, %v2141
      %v2170 = vmul.f32 %v2166, %v2142
      %v2171 = vsel %vm869, %v2167, 0.0
      %v2172 = vsel %vm869, %v2168, 0.0
      %v2173 = vadd.f32 %v2171, %v2172
      %v2174 = vrot.slane %v2173, 4
      %v2175 = vadd.f32 %v2173, %v2174
      %v2176 = vrot.slane %v2175, 2
      %v2177 = vadd.f32 %v2175, %v2176
      %v2178 = vrot.slane %v2177, 1
      %v2179 = vadd.f32 %v2177, %v2178
      %v2180 = vsel %vm869, %v2169, 0.0
      %v2181 = vsel %vm869, %v2170, 0.0
      %v2182 = vadd.f32 %v2180, %v2181
      %v2183 = vrot.slane %v2182, 4
      %v2184 = vadd.f32 %v2182, %v2183
      %v2185 = vrot.slane %v2184, 2
      %v2186 = vadd.f32 %v2184, %v2185
      %v2187 = vrot.slane %v2186, 1
      %v2188 = vadd.f32 %v2186, %v2187
      %v2191 = vsel %vm1911, %v2188, %v2179
      %s2193 = scalar_lea.vmem [#allocation7], 8
      %2194 = vst.msk [vmem:[%s2193] sm:$0x3] %vm602, %v2191
      %s2195 = scalar_lea.vmem [#allocation4], 160
      %v2196 = vld [vmem:[%s2195] sm:$0xff]
      %v2197 = vld [vmem:[%s2195 + $0x8] sm:$0xff]
      %v2198 = vld [vmem:[%s2195 + $0x10] sm:$0xff]
      %v2199 = vld [vmem:[%s2195 + $0x18] sm:$0xff]
      %v2200 = vmul.f32 %v2196, %v2139
      %v2201 = vmul.f32 %v2197, %v2140
      %v2202 = vmul.f32 %v2198, %v2141
      %v2203 = vmul.f32 %v2199, %v2142
      %s2204 = scalar_lea.vmem [#allocation5], 160
      %v2205 = vld [vmem:[%s2204] sm:$0xff]
      %v2206 = vld [vmem:[%s2204 + $0x8] sm:$0xff]
      %v2207 = vld [vmem:[%s2204 + $0x10] sm:$0xff]
      %v2208 = vld [vmem:[%s2204 + $0x18] sm:$0xff]
      %v2209 = vadd.f32 %v2200, %v2205
      %v2210 = vadd.f32 %v2201, %v2206
      %v2211 = vadd.f32 %v2202, %v2207
      %v2212 = vadd.f32 %v2203, %v2208
      %s2213 = scalar_lea.vmem [#allocation6], 10
      %v2214 = vld [vmem:[%s2213] sm:$0x3]
      %v2215 = vlaneseq
      %v2216 = vshrl.u32 %v2215, 7
      %v2217 = vsub.s32 0, %v2216
      %v2218 = vrot.slane %v2214, %v2217
      %2220 = vbcast.lane.b32.xlu0 %v2218, 256
      %v2221 = vpop.permute.xlu0 %2220
      %s2223 = sor.u32 256, 8
      %2224 = vbcast.lane.b32.xlu0 %v2218, %s2223
      %v2225 = vpop.permute.xlu0 %2224
      %v2226 = vlaneseq
      %v2227 = vshrl.u32 %v2226, 7
      %v2228 = vsub.s32 1, %v2227
      %v2229 = vrot.slane %v2214, %v2228
      %2231 = vbcast.lane.b32.xlu0 %v2229, 256
      %v2232 = vpop.permute.xlu0 %2231
      %s2234 = sor.u32 256, 8
      %2235 = vbcast.lane.b32.xlu0 %v2229, %s2234
      %v2236 = vpop.permute.xlu0 %2235
      %v2237 = vmul.f32 %v2221, %v2209
      %v2238 = vmul.f32 %v2225, %v2210
      %v2239 = vmul.f32 %v2232, %v2211
      %v2240 = vmul.f32 %v2236, %v2212
      %v2241 = vsel %vm869, %v2237, 0.0
      %v2242 = vsel %vm869, %v2238, 0.0
      %v2243 = vadd.f32 %v2241, %v2242
      %v2244 = vrot.slane %v2243, 4
      %v2245 = vadd.f32 %v2243, %v2244
      %v2246 = vrot.slane %v2245, 2
      %v2247 = vadd.f32 %v2245, %v2246
      %v2248 = vrot.slane %v2247, 1
      %v2249 = vadd.f32 %v2247, %v2248
      %v2250 = vsel %vm869, %v2239, 0.0
      %v2251 = vsel %vm869, %v2240, 0.0
      %v2252 = vadd.f32 %v2250, %v2251
      %v2253 = vrot.slane %v2252, 4
      %v2254 = vadd.f32 %v2252, %v2253
      %v2255 = vrot.slane %v2254, 2
      %v2256 = vadd.f32 %v2254, %v2255
      %v2257 = vrot.slane %v2256, 1
      %v2258 = vadd.f32 %v2256, %v2257
      %v2261 = vsel %vm1911, %v2258, %v2249
      %s2263 = scalar_lea.vmem [#allocation7], 10
      %2264 = vst.msk [vmem:[%s2263] sm:$0x3] %vm602, %v2261
      %s2265 = scalar_lea.vmem [#allocation4], 192
      %v2266 = vld [vmem:[%s2265] sm:$0xff]
      %v2267 = vld [vmem:[%s2265 + $0x8] sm:$0xff]
      %v2268 = vld [vmem:[%s2265 + $0x10] sm:$0xff]
      %v2269 = vld [vmem:[%s2265 + $0x18] sm:$0xff]
      %v2270 = vmul.f32 %v2266, %v2209
      %v2271 = vmul.f32 %v2267, %v2210
      %v2272 = vmul.f32 %v2268, %v2211
      %v2273 = vmul.f32 %v2269, %v2212
      %s2274 = scalar_lea.vmem [#allocation5], 192
      %v2275 = vld [vmem:[%s2274] sm:$0xff]
      %v2276 = vld [vmem:[%s2274 + $0x8] sm:$0xff]
      %v2277 = vld [vmem:[%s2274 + $0x10] sm:$0xff]
      %v2278 = vld [vmem:[%s2274 + $0x18] sm:$0xff]
      %v2279 = vadd.f32 %v2270, %v2275
      %v2280 = vadd.f32 %v2271, %v2276
      %v2281 = vadd.f32 %v2272, %v2277
      %v2282 = vadd.f32 %v2273, %v2278
      %s2283 = scalar_lea.vmem [#allocation6], 12
      %v2284 = vld [vmem:[%s2283] sm:$0x3]
      %v2285 = vlaneseq
      %v2286 = vshrl.u32 %v2285, 7
      %v2287 = vsub.s32 0, %v2286
      %v2288 = vrot.slane %v2284, %v2287
      %2290 = vbcast.lane.b32.xlu0 %v2288, 256
      %v2291 = vpop.permute.xlu0 %2290
      %s2293 = sor.u32 256, 8
      %2294 = vbcast.lane.b32.xlu0 %v2288, %s2293
      %v2295 = vpop.permute.xlu0 %2294
      %v2296 = vlaneseq
      %v2297 = vshrl.u32 %v2296, 7
      %v2298 = vsub.s32 1, %v2297
      %v2299 = vrot.slane %v2284, %v2298
      %2301 = vbcast.lane.b32.xlu0 %v2299, 256
      %v2302 = vpop.permute.xlu0 %2301
      %s2304 = sor.u32 256, 8
      %2305 = vbcast.lane.b32.xlu0 %v2299, %s2304
      %v2306 = vpop.permute.xlu0 %2305
      %v2307 = vmul.f32 %v2291, %v2279
      %v2308 = vmul.f32 %v2295, %v2280
      %v2309 = vmul.f32 %v2302, %v2281
      %v2310 = vmul.f32 %v2306, %v2282
      %v2311 = vsel %vm869, %v2307, 0.0
      %v2312 = vsel %vm869, %v2308, 0.0
      %v2313 = vadd.f32 %v2311, %v2312
      %v2314 = vrot.slane %v2313, 4
      %v2315 = vadd.f32 %v2313, %v2314
      %v2316 = vrot.slane %v2315, 2
      %v2317 = vadd.f32 %v2315, %v2316
      %v2318 = vrot.slane %v2317, 1
      %v2319 = vadd.f32 %v2317, %v2318
      %v2320 = vsel %vm869, %v2309, 0.0
      %v2321 = vsel %vm869, %v2310, 0.0
      %v2322 = vadd.f32 %v2320, %v2321
      %v2323 = vrot.slane %v2322, 4
      %v2324 = vadd.f32 %v2322, %v2323
      %v2325 = vrot.slane %v2324, 2
      %v2326 = vadd.f32 %v2324, %v2325
      %v2327 = vrot.slane %v2326, 1
      %v2328 = vadd.f32 %v2326, %v2327
      %v2331 = vsel %vm1911, %v2328, %v2319
      %s2333 = scalar_lea.vmem [#allocation7], 12
      %2334 = vst.msk [vmem:[%s2333] sm:$0x3] %vm602, %v2331
      %s2335 = scalar_lea.vmem [#allocation4], 224
      %v2336 = vld [vmem:[%s2335] sm:$0xff]
      %v2337 = vld [vmem:[%s2335 + $0x8] sm:$0xff]
      %v2338 = vld [vmem:[%s2335 + $0x10] sm:$0xff]
      %v2339 = vld [vmem:[%s2335 + $0x18] sm:$0xff]
      %v2340 = vmul.f32 %v2336, %v2279
      %v2341 = vmul.f32 %v2337, %v2280
      %v2342 = vmul.f32 %v2338, %v2281
      %v2343 = vmul.f32 %v2339, %v2282
      %s2344 = scalar_lea.vmem [#allocation5], 224
      %v2345 = vld [vmem:[%s2344] sm:$0xff]
      %v2346 = vld [vmem:[%s2344 + $0x8] sm:$0xff]
      %v2347 = vld [vmem:[%s2344 + $0x10] sm:$0xff]
      %v2348 = vld [vmem:[%s2344 + $0x18] sm:$0xff]
      %v2349 = vadd.f32 %v2340, %v2345
      %v2350 = vadd.f32 %v2341, %v2346
      %v2351 = vadd.f32 %v2342, %v2347
      %v2352 = vadd.f32 %v2343, %v2348
      %s2353 = scalar_lea.vmem [#allocation6], 14
      %v2354 = vld [vmem:[%s2353] sm:$0x3]
      %v2355 = vlaneseq
      %v2356 = vshrl.u32 %v2355, 7
      %v2357 = vsub.s32 0, %v2356
      %v2358 = vrot.slane %v2354, %v2357
      %2360 = vbcast.lane.b32.xlu0 %v2358, 256
      %v2361 = vpop.permute.xlu0 %2360
      %s2363 = sor.u32 256, 8
      %2364 = vbcast.lane.b32.xlu0 %v2358, %s2363
      %v2365 = vpop.permute.xlu0 %2364
      %v2366 = vlaneseq
      %v2367 = vshrl.u32 %v2366, 7
      %v2368 = vsub.s32 1, %v2367
      %v2369 = vrot.slane %v2354, %v2368
      %2371 = vbcast.lane.b32.xlu0 %v2369, 256
      %v2372 = vpop.permute.xlu0 %2371
      %s2374 = sor.u32 256, 8
      %2375 = vbcast.lane.b32.xlu0 %v2369, %s2374
      %v2376 = vpop.permute.xlu0 %2375
      %v2377 = vmul.f32 %v2361, %v2349
      %v2378 = vmul.f32 %v2365, %v2350
      %v2379 = vmul.f32 %v2372, %v2351
      %v2380 = vmul.f32 %v2376, %v2352
      %v2381 = vsel %vm869, %v2377, 0.0
      %v2382 = vsel %vm869, %v2378, 0.0
      %v2383 = vadd.f32 %v2381, %v2382
      %v2384 = vrot.slane %v2383, 4
      %v2385 = vadd.f32 %v2383, %v2384
      %v2386 = vrot.slane %v2385, 2
      %v2387 = vadd.f32 %v2385, %v2386
      %v2388 = vrot.slane %v2387, 1
      %v2389 = vadd.f32 %v2387, %v2388
      %v2390 = vsel %vm869, %v2379, 0.0
      %v2391 = vsel %vm869, %v2380, 0.0
      %v2392 = vadd.f32 %v2390, %v2391
      %v2393 = vrot.slane %v2392, 4
      %v2394 = vadd.f32 %v2392, %v2393
      %v2395 = vrot.slane %v2394, 2
      %v2396 = vadd.f32 %v2394, %v2395
      %v2397 = vrot.slane %v2396, 1
      %v2398 = vadd.f32 %v2396, %v2397
      %v2401 = vsel %vm1911, %v2398, %v2389
      %s2403 = scalar_lea.vmem [#allocation7], 14
      %2404 = vst.msk [vmem:[%s2403] sm:$0x3] %vm602, %v2401
      %2405 = vst.msk [vmem:[#allocation2] sm:$0xff] %vm869, %v2349
      %2406 = vst.msk [vmem:[#allocation2 + $0x8] sm:$0xff] %vm869, %v2350
      %2407 = vst.msk [vmem:[#allocation2 + $0x10] sm:$0xff] %vm869, %v2351
      %2408 = vst.msk [vmem:[#allocation2 + $0x18] sm:$0xff] %vm869, %v2352
      %v2409 = vld [vmem:[#allocation7] sm:$0x3]
      %v2410 = vld [vmem:[#allocation7 + $0x2] sm:$0x3]
      %v2411 = vld [vmem:[#allocation7 + $0x4] sm:$0x3]
      %v2412 = vld [vmem:[#allocation7 + $0x6] sm:$0x3]
      %v2413 = vld [vmem:[#allocation7 + $0x8] sm:$0x3]
      %v2414 = vld [vmem:[#allocation7 + $0xa] sm:$0x3]
      %v2415 = vld [vmem:[#allocation7 + $0xc] sm:$0x3]
      %v2416 = vld [vmem:[#allocation7 + $0xe] sm:$0x3]
      %v2417 = vld [vmem:[%s7] sm:$0x1]
      %v2419 = vlaneseq
      %v2420 = vshrl.u32 %v2419, 7
      %v2421 = vsub.s32 0, %v2420
      %v2422 = vrot.slane %v2417, %v2421
      %v2423 = vcombine.high %v2422, %v2422
      %v2425 = vunpack.c.l.s4 1983009808
      %v2426 = vunpack.c.0.s8 %v2425
      %v2427 = vlaneseq
      %v2428 = vshrl.u32 %v2427, 7
      %v2429 = vsub.s32 %v2426, %v2428
      %v2430 = vrot.slane %v2422, %v2429
      %v2432 = vunpack.c.l.s4 1983009808
      %v2433 = vunpack.c.0.s8 %v2432
      %v2434 = vlaneseq
      %v2435 = vshrl.u32 %v2434, 7
      %v2436 = vsub.s32 %v2433, %v2435
      %v2437 = vrot.slane %v2423, %v2436
      %v2438 = vcombine.high %v2430, %v2430
      %v2439 = vcombine.high %v2437, %v2437
      %v2444 = vmul.f32 %v784, %v2430
      %v2445 = vmul.f32 %v785, %v2438
      %v2446 = vmul.f32 %v786, %v2437
      %v2447 = vmul.f32 %v787, %v2439
      %v2448 = vmul.f32 %v788, %v2430
      %v2449 = vmul.f32 %v789, %v2438
      %v2450 = vmul.f32 %v790, %v2437
      %v2451 = vmul.f32 %v791, %v2439
      %v2452 = vadd.f32 %v2409, %v2444
      %v2453 = vadd.f32 %v2410, %v2445
      %v2454 = vadd.f32 %v2411, %v2446
      %v2455 = vadd.f32 %v2412, %v2447
      %v2456 = vadd.f32 %v2413, %v2448
      %v2457 = vadd.f32 %v2414, %v2449
      %v2458 = vadd.f32 %v2415, %v2450
      %v2459 = vadd.f32 %v2416, %v2451
      %v2460 = vsub.f32 0.0, %v551
      %v2461 = vsub.f32 0.0, %v554
      %v2462 = vmul.f32 %v2460, 1.442695
      %v2463 = vpow.pop %v2462
      %v2464 = vmul.f32 %v2461, 1.442695
      %v2465 = vpow.pop %v2464
      %v2466 = vadd.f32 %v2463, 1.0
      %v2467 = vadd.f32 %v2465, 1.0
      %v2468 = vrcp.pop %v2466
      %v2469 = vmul.f32 1.0, %v2468
      %v2470 = vrcp.pop %v2467
      %v2471 = vmul.f32 1.0, %v2470
      %v2472 = vmul.f32 %v551, %v2469
      %v2473 = vmul.f32 %v554, %v2471
      %v2476 = vcombine.high %v2472, %v2472
      %v2478 = vunpack.c.l.s4 1983009808
      %v2479 = vunpack.c.0.s8 %v2478
      %v2480 = vlaneseq
      %v2481 = vshrl.u32 %v2480, 7
      %v2482 = vsub.s32 %v2479, %v2481
      %v2483 = vrot.slane %v2472, %v2482
      %v2485 = vunpack.c.l.s4 1983009808
      %v2486 = vunpack.c.0.s8 %v2485
      %v2487 = vlaneseq
      %v2488 = vshrl.u32 %v2487, 7
      %v2489 = vsub.s32 %v2486, %v2488
      %v2490 = vrot.slane %v2476, %v2489
      %v2491 = vcombine.high %v2483, %v2483
      %v2492 = vcombine.high %v2490, %v2490
      %v2493 = vcombine.high %v2473, %v2473
      %v2495 = vunpack.c.l.s4 1983009808
      %v2496 = vunpack.c.0.s8 %v2495
      %v2497 = vlaneseq
      %v2498 = vshrl.u32 %v2497, 7
      %v2499 = vsub.s32 %v2496, %v2498
      %v2500 = vrot.slane %v2473, %v2499
      %v2502 = vunpack.c.l.s4 1983009808
      %v2503 = vunpack.c.0.s8 %v2502
      %v2504 = vlaneseq
      %v2505 = vshrl.u32 %v2504, 7
      %v2506 = vsub.s32 %v2503, %v2505
      %v2507 = vrot.slane %v2493, %v2506
      %v2508 = vcombine.high %v2500, %v2500
      %v2509 = vcombine.high %v2507, %v2507
      %2510 = vrot.lane.b32.xlu0 %v2483, 64
      %v2511 = vpop.permute.xlu0 %2510
      %2512 = vrot.lane.b32.xlu0 %v2491, 64
      %v2513 = vpop.permute.xlu0 %2512
      %2514 = vrot.lane.b32.xlu0 %v2490, 64
      %v2515 = vpop.permute.xlu0 %2514
      %2516 = vrot.lane.b32.xlu0 %v2492, 64
      %v2517 = vpop.permute.xlu0 %2516
      %2518 = vrot.lane.b32.xlu0 %v2500, 64
      %v2519 = vpop.permute.xlu0 %2518
      %2520 = vrot.lane.b32.xlu0 %v2508, 64
      %v2521 = vpop.permute.xlu0 %2520
      %2522 = vrot.lane.b32.xlu0 %v2507, 64
      %v2523 = vpop.permute.xlu0 %2522
      %2524 = vrot.lane.b32.xlu0 %v2509, 64
      %v2525 = vpop.permute.xlu0 %2524
      %v2534 = vmul.f32 %v2452, %v2511
      %v2535 = vmul.f32 %v2453, %v2513
      %v2536 = vmul.f32 %v2454, %v2515
      %v2537 = vmul.f32 %v2455, %v2517
      %v2538 = vmul.f32 %v2456, %v2519
      %v2539 = vmul.f32 %v2457, %v2521
      %v2540 = vmul.f32 %v2458, %v2523
      %v2541 = vmul.f32 %v2459, %v2525
      %v2550 = vcombine.low %v2534, %v2535
      %v2551 = vcombine.low %v2536, %v2537
      %v2553 = vunpack.c.l.s4 1983009808
      %v2554 = vunpack.c.0.s8 %v2553
      %v2555 = vlaneseq
      %v2556 = vshrl.u32 %v2555, 7
      %v2557 = vsub.s32 %v2554, %v2556
      %v2558 = vrot.slane %v2550, %v2557
      %v2560 = vunpack.c.l.s4 1983009808
      %v2561 = vunpack.c.0.s8 %v2560
      %v2562 = vlaneseq
      %v2563 = vshrl.u32 %v2562, 7
      %v2564 = vsub.s32 %v2561, %v2563
      %v2565 = vrot.slane %v2551, %v2564
      %v2566 = vcombine.low %v2558, %v2565
      %v2567 = vcombine.low %v2538, %v2539
      %v2568 = vcombine.low %v2540, %v2541
      %v2570 = vunpack.c.l.s4 1983009808
      %v2571 = vunpack.c.0.s8 %v2570
      %v2572 = vlaneseq
      %v2573 = vshrl.u32 %v2572, 7
      %v2574 = vsub.s32 %v2571, %v2573
      %v2575 = vrot.slane %v2567, %v2574
      %v2577 = vunpack.c.l.s4 1983009808
      %v2578 = vunpack.c.0.s8 %v2577
      %v2579 = vlaneseq
      %v2580 = vshrl.u32 %v2579, 7
      %v2581 = vsub.s32 %v2578, %v2580
      %v2582 = vrot.slane %v2568, %v2581
      %v2583 = vcombine.low %v2575, %v2582
      %v2586 = vpack.c.bf16 %v2583, %v2566
      %v2587 = vld [vmem:[%s8] sm:$0xf]
      %v2588 = vld [vmem:[%s8 + $0x4] sm:$0xf]
      %v2589 = vld [vmem:[%s8 + $0x8] sm:$0xf]
      %v2590 = vld [vmem:[%s8 + $0xc] sm:$0xf]
      %v2591 = vld [vmem:[%s8 + $0x10] sm:$0xf]
      %v2592 = vld [vmem:[%s8 + $0x14] sm:$0xf]
      %v2593 = vld [vmem:[%s8 + $0x18] sm:$0xf]
      %v2594 = vld [vmem:[%s8 + $0x1c] sm:$0xf]
      %v2603 = vunpack.c.l.b16 %v2587
      %v2604 = vunpack.c.l.b16 %v2588
      %v2605 = vunpack.c.l.b16 %v2589
      %v2606 = vunpack.c.l.b16 %v2590
      %v2607 = vunpack.c.l.b16 %v2591
      %v2608 = vunpack.c.l.b16 %v2592
      %v2609 = vunpack.c.l.b16 %v2593
      %v2610 = vunpack.c.l.b16 %v2594
      %v2611 = vpack.c.b16 %v2604, %v2603
      %v2612 = vpack.c.b16 %v2606, %v2605
      %v2613 = vpack.c.b16 %v2608, %v2607
      %v2614 = vpack.c.b16 %v2610, %v2609
      %v2620 = vsel %vm869, %v2586, 0
      %2622 = vmatprep.subr.bf16.mxu0 0
      %2623 = vmatpush1.bf16.msra.mxu0 0
      %2624 = vmatprep.subr.bf16.mxu0 0
      %2625 = vmatpush1.bf16.msra.mxu0 0
      %2626 = vmatprep.subr.bf16.mxu0 0
      %2627 = vmatpush1.bf16.msra.mxu0 0
      %2628 = vmatprep.subr.bf16.mxu0 0
      %2629 = vmatpush1.bf16.msra.mxu0 0
      %2630 = vmatprep.subr.bf16.mxu0 0
      %2631 = vmatpush1.bf16.msra.mxu0 %v2614
      %2632 = vmatprep.subr.bf16.mxu0 0
      %2633 = vmatpush1.bf16.msra.mxu0 %v2613
      %2634 = vmatprep.subr.bf16.mxu0 0
      %2635 = vmatpush1.bf16.msra.mxu0 %v2612
      %2636 = vmatprep.subr.bf16.mxu0 0
      %2637 = vmatpush1.bf16.msra.mxu0 %v2611
      %2638 = vmatprep.subr.bf16.mxu0 0
      %2639 = vmatpush2.bf16.msra.mxu0 0
      %2640 = vmatprep.subr.bf16.mxu0 0
      %2641 = vmatpush2.bf16.msra.mxu0 0
      %2642 = vmatprep.subr.bf16.mxu0 0
      %2643 = vmatpush2.bf16.msra.mxu0 0
      %2644 = vmatprep.subr.bf16.mxu0 0
      %2645 = vmatpush2.bf16.msra.mxu0 0
      %2646 = vmatprep.subr.bf16.mxu0 0
      %2647 = vmatpush2.bf16.msra.mxu0 0
      %2648 = vmatprep.subr.bf16.mxu0 0
      %2649 = vmatpush2.bf16.msra.mxu0 0
      %2650 = vmatprep.subr.bf16.mxu0 0
      %2651 = vmatpush2.bf16.msra.mxu0 0
      %2652 = vmatprep.subr.bf16.mxu0 0
      %2653 = vmatpush2.bf16.msra.mxu0 0
      %2654 = vmatprep.mubr.bf16.mxu0 0
      %2655 = vmatmul.mubr.bf16.gmra.mxu0 %v2620
      %v2656 = vpop.f32.mrf.mxu0
      %v2657 = vadd.f32 0.0, %v2656
      %v2658 = vpop.f32.mrf.mxu0
      %v2659 = vpop.f32.mrf.mxu0
      %v2660 = vadd.f32 0.0, %v2659
      %v2661 = vpop.f32.mrf.mxu0
      %2662 = vdwg.mxu0
      %v2665 = vcombine.high %v2657, %v2657
      %v2667 = vunpack.c.l.s4 1983009808
      %v2668 = vunpack.c.0.s8 %v2667
      %v2669 = vlaneseq
      %v2670 = vshrl.u32 %v2669, 7
      %v2671 = vsub.s32 %v2668, %v2670
      %v2672 = vrot.slane %v2657, %v2671
      %v2674 = vunpack.c.l.s4 1983009808
      %v2675 = vunpack.c.0.s8 %v2674
      %v2676 = vlaneseq
      %v2677 = vshrl.u32 %v2676, 7
      %v2678 = vsub.s32 %v2675, %v2677
      %v2679 = vrot.slane %v2665, %v2678
      %v2680 = vcombine.high %v2672, %v2672
      %v2681 = vcombine.high %v2679, %v2679
      %v2682 = vcombine.high %v2660, %v2660
      %v2684 = vunpack.c.l.s4 1983009808
      %v2685 = vunpack.c.0.s8 %v2684
      %v2686 = vlaneseq
      %v2687 = vshrl.u32 %v2686, 7
      %v2688 = vsub.s32 %v2685, %v2687
      %v2689 = vrot.slane %v2660, %v2688
      %v2691 = vunpack.c.l.s4 1983009808
      %v2692 = vunpack.c.0.s8 %v2691
      %v2693 = vlaneseq
      %v2694 = vshrl.u32 %v2693, 7
      %v2695 = vsub.s32 %v2692, %v2694
      %v2696 = vrot.slane %v2682, %v2695
      %v2697 = vcombine.high %v2689, %v2689
      %v2698 = vcombine.high %v2696, %v2696
      %v2707 = vadd.f32 %v443, %v2672
      %v2708 = vadd.f32 %v444, %v2680
      %v2709 = vadd.f32 %v445, %v2679
      %v2710 = vadd.f32 %v446, %v2681
      %v2711 = vadd.f32 %v447, %v2689
      %v2712 = vadd.f32 %v448, %v2697
      %v2713 = vadd.f32 %v449, %v2696
      %v2714 = vadd.f32 %v450, %v2698
      %v2715 = vmul.f32 %v2707, %v2707
      %v2716 = vmul.f32 %v2708, %v2708
      %v2717 = vmul.f32 %v2709, %v2709
      %v2718 = vmul.f32 %v2710, %v2710
      %v2719 = vmul.f32 %v2711, %v2711
      %v2720 = vmul.f32 %v2712, %v2712
      %v2721 = vmul.f32 %v2713, %v2713
      %v2722 = vmul.f32 %v2714, %v2714
      %v2731 = vcombine.low %v2715, %v2716
      %v2732 = vcombine.low %v2717, %v2718
      %v2734 = vunpack.c.l.s4 1983009808
      %v2735 = vunpack.c.0.s8 %v2734
      %v2736 = vlaneseq
      %v2737 = vshrl.u32 %v2736, 7
      %v2738 = vsub.s32 %v2735, %v2737
      %v2739 = vrot.slane %v2731, %v2738
      %v2741 = vunpack.c.l.s4 1983009808
      %v2742 = vunpack.c.0.s8 %v2741
      %v2743 = vlaneseq
      %v2744 = vshrl.u32 %v2743, 7
      %v2745 = vsub.s32 %v2742, %v2744
      %v2746 = vrot.slane %v2732, %v2745
      %v2747 = vcombine.low %v2739, %v2746
      %v2748 = vcombine.low %v2719, %v2720
      %v2749 = vcombine.low %v2721, %v2722
      %v2751 = vunpack.c.l.s4 1983009808
      %v2752 = vunpack.c.0.s8 %v2751
      %v2753 = vlaneseq
      %v2754 = vshrl.u32 %v2753, 7
      %v2755 = vsub.s32 %v2752, %v2754
      %v2756 = vrot.slane %v2748, %v2755
      %v2758 = vunpack.c.l.s4 1983009808
      %v2759 = vunpack.c.0.s8 %v2758
      %v2760 = vlaneseq
      %v2761 = vshrl.u32 %v2760, 7
      %v2762 = vsub.s32 %v2759, %v2761
      %v2763 = vrot.slane %v2749, %v2762
      %v2764 = vcombine.low %v2756, %v2763
      %v2767 = vsel %vm512, %v2747, 0.0
      %2768 = vadd.xlane.f32.xlu0 %v2767
      %v2769 = vpop.xlane.xlu0 %2768
      %v2770 = vsel %vm512, %v2764, 0.0
      %2771 = vadd.xlane.f32.xlu0 %v2770
      %v2772 = vpop.xlane.xlu0 %2771
      %v2773 = vrcp.pop 32.0
      %v2774 = vmul.f32 %v2769, %v2773
      %v2775 = vmul.f32 %v2772, %v2773
      %v2776 = vadd.f32 %v2774, 1e-05
      %v2777 = vadd.f32 %v2775, 1e-05
      %v2778 = vrsqrt.pop %v2776
      %v2779 = vrsqrt.pop %v2777
      %v2783 = vunpack.c.l.s4 269488144
      %v2784 = vunpack.c.0.s8 %v2783
      %v2785 = vlaneseq
      %v2786 = vshrl.u32 %v2785, 7
      %v2787 = vsub.s32 %v2784, %v2786
      %v2788 = vrot.slane %v2778, %v2787
      %v2790 = vunpack.c.l.s4 842150450
      %v2791 = vunpack.c.0.s8 %v2790
      %v2792 = vlaneseq
      %v2793 = vshrl.u32 %v2792, 7
      %v2794 = vsub.s32 %v2791, %v2793
      %v2795 = vrot.slane %v2778, %v2794
      %v2797 = vunpack.c.l.s4 1414812756
      %v2798 = vunpack.c.0.s8 %v2797
      %v2799 = vlaneseq
      %v2800 = vshrl.u32 %v2799, 7
      %v2801 = vsub.s32 %v2798, %v2800
      %v2802 = vrot.slane %v2778, %v2801
      %v2804 = vunpack.c.l.s4 1987475062
      %v2805 = vunpack.c.0.s8 %v2804
      %v2806 = vlaneseq
      %v2807 = vshrl.u32 %v2806, 7
      %v2808 = vsub.s32 %v2805, %v2807
      %v2809 = vrot.slane %v2778, %v2808
      %v2811 = vunpack.c.l.s4 269488144
      %v2812 = vunpack.c.0.s8 %v2811
      %v2813 = vlaneseq
      %v2814 = vshrl.u32 %v2813, 7
      %v2815 = vsub.s32 %v2812, %v2814
      %v2816 = vrot.slane %v2779, %v2815
      %v2818 = vunpack.c.l.s4 842150450
      %v2819 = vunpack.c.0.s8 %v2818
      %v2820 = vlaneseq
      %v2821 = vshrl.u32 %v2820, 7
      %v2822 = vsub.s32 %v2819, %v2821
      %v2823 = vrot.slane %v2779, %v2822
      %v2825 = vunpack.c.l.s4 1414812756
      %v2826 = vunpack.c.0.s8 %v2825
      %v2827 = vlaneseq
      %v2828 = vshrl.u32 %v2827, 7
      %v2829 = vsub.s32 %v2826, %v2828
      %v2830 = vrot.slane %v2779, %v2829
      %v2832 = vunpack.c.l.s4 1987475062
      %v2833 = vunpack.c.0.s8 %v2832
      %v2834 = vlaneseq
      %v2835 = vshrl.u32 %v2834, 7
      %v2836 = vsub.s32 %v2833, %v2835
      %v2837 = vrot.slane %v2779, %v2836
      %v2846 = vmul.f32 %v2707, %v2788
      %v2847 = vmul.f32 %v2708, %v2795
      %v2848 = vmul.f32 %v2709, %v2802
      %v2849 = vmul.f32 %v2710, %v2809
      %v2850 = vmul.f32 %v2711, %v2816
      %v2851 = vmul.f32 %v2712, %v2823
      %v2852 = vmul.f32 %v2713, %v2830
      %v2853 = vmul.f32 %v2714, %v2837
      %v2854 = vld [vmem:[%s9] sm:$0x1]
      %v2856 = vlaneseq
      %v2857 = vshrl.u32 %v2856, 7
      %v2858 = vsub.s32 0, %v2857
      %v2859 = vrot.slane %v2854, %v2858
      %v2860 = vcombine.high %v2859, %v2859
      %v2862 = vunpack.c.l.s4 1983009808
      %v2863 = vunpack.c.0.s8 %v2862
      %v2864 = vlaneseq
      %v2865 = vshrl.u32 %v2864, 7
      %v2866 = vsub.s32 %v2863, %v2865
      %v2867 = vrot.slane %v2859, %v2866
      %v2869 = vunpack.c.l.s4 1983009808
      %v2870 = vunpack.c.0.s8 %v2869
      %v2871 = vlaneseq
      %v2872 = vshrl.u32 %v2871, 7
      %v2873 = vsub.s32 %v2870, %v2872
      %v2874 = vrot.slane %v2860, %v2873
      %v2875 = vcombine.high %v2867, %v2867
      %v2876 = vcombine.high %v2874, %v2874
      %v2881 = vmul.f32 %v2846, %v2867
      %v2882 = vmul.f32 %v2847, %v2875
      %v2883 = vmul.f32 %v2848, %v2874
      %v2884 = vmul.f32 %v2849, %v2876
      %v2885 = vmul.f32 %v2850, %v2867
      %v2886 = vmul.f32 %v2851, %v2875
      %v2887 = vmul.f32 %v2852, %v2874
      %v2888 = vmul.f32 %v2853, %v2876
      %v2897 = vcombine.low %v2881, %v2882
      %v2898 = vcombine.low %v2883, %v2884
      %v2900 = vunpack.c.l.s4 1983009808
      %v2901 = vunpack.c.0.s8 %v2900
      %v2902 = vlaneseq
      %v2903 = vshrl.u32 %v2902, 7
      %v2904 = vsub.s32 %v2901, %v2903
      %v2905 = vrot.slane %v2897, %v2904
      %v2907 = vunpack.c.l.s4 1983009808
      %v2908 = vunpack.c.0.s8 %v2907
      %v2909 = vlaneseq
      %v2910 = vshrl.u32 %v2909, 7
      %v2911 = vsub.s32 %v2908, %v2910
      %v2912 = vrot.slane %v2898, %v2911
      %v2913 = vcombine.low %v2905, %v2912
      %v2914 = vcombine.low %v2885, %v2886
      %v2915 = vcombine.low %v2887, %v2888
      %v2917 = vunpack.c.l.s4 1983009808
      %v2918 = vunpack.c.0.s8 %v2917
      %v2919 = vlaneseq
      %v2920 = vshrl.u32 %v2919, 7
      %v2921 = vsub.s32 %v2918, %v2920
      %v2922 = vrot.slane %v2914, %v2921
      %v2924 = vunpack.c.l.s4 1983009808
      %v2925 = vunpack.c.0.s8 %v2924
      %v2926 = vlaneseq
      %v2927 = vshrl.u32 %v2926, 7
      %v2928 = vsub.s32 %v2925, %v2927
      %v2929 = vrot.slane %v2915, %v2928
      %v2930 = vcombine.low %v2922, %v2929
      %v2933 = vpack.c.bf16 %v2930, %v2913
      %v2934 = vld [vmem:[%s10] sm:$0xff]
      %v2935 = vld [vmem:[%s10 + $0x8] sm:$0xff]
      %v2936 = vld [vmem:[%s10 + $0x10] sm:$0xff]
      %v2937 = vld [vmem:[%s10 + $0x18] sm:$0xff]
      %v2942 = vunpack.c.l.b16 %v2934
      %v2943 = vunpack.c.h.b16 %v2934
      %v2944 = vunpack.c.l.b16 %v2935
      %v2945 = vunpack.c.h.b16 %v2935
      %v2946 = vunpack.c.l.b16 %v2936
      %v2947 = vunpack.c.h.b16 %v2936
      %v2948 = vunpack.c.l.b16 %v2937
      %v2949 = vunpack.c.h.b16 %v2937
      %v2950 = vpack.c.b16 %v2944, %v2942
      %v2951 = vpack.c.b16 %v2945, %v2943
      %v2952 = vpack.c.b16 %v2948, %v2946
      %v2953 = vpack.c.b16 %v2949, %v2947
      %v2959 = vsel %vm512, %v2933, 0
      %2961 = vmatprep.subr.bf16.mxu0 0
      %2962 = vmatpush1.bf16.msra.mxu0 0
      %2963 = vmatprep.subr.bf16.mxu0 0
      %2964 = vmatpush1.bf16.msra.mxu0 0
      %2965 = vmatprep.subr.bf16.mxu0 0
      %2966 = vmatpush1.bf16.msra.mxu0 0
      %2967 = vmatprep.subr.bf16.mxu0 0
      %2968 = vmatpush1.bf16.msra.mxu0 0
      %2969 = vmatprep.subr.bf16.mxu0 0
      %2970 = vmatpush1.bf16.msra.mxu0 0
      %2971 = vmatprep.subr.bf16.mxu0 0
      %2972 = vmatpush1.bf16.msra.mxu0 0
      %2973 = vmatprep.subr.bf16.mxu0 %v2953
      %2974 = vmatpush1.bf16.msra.mxu0 %v2952
      %2975 = vmatprep.subr.bf16.mxu0 %v2951
      %2976 = vmatpush1.bf16.msra.mxu0 %v2950
      %2977 = vmatprep.subr.bf16.mxu0 0
      %2978 = vmatpush2.bf16.msra.mxu0 0
      %2979 = vmatprep.subr.bf16.mxu0 0
      %2980 = vmatpush2.bf16.msra.mxu0 0
      %2981 = vmatprep.subr.bf16.mxu0 0
      %2982 = vmatpush2.bf16.msra.mxu0 0
      %2983 = vmatprep.subr.bf16.mxu0 0
      %2984 = vmatpush2.bf16.msra.mxu0 0
      %2985 = vmatprep.subr.bf16.mxu0 0
      %2986 = vmatpush2.bf16.msra.mxu0 0
      %2987 = vmatprep.subr.bf16.mxu0 0
      %2988 = vmatpush2.bf16.msra.mxu0 0
      %2989 = vmatprep.subr.bf16.mxu0 0
      %2990 = vmatpush2.bf16.msra.mxu0 0
      %2991 = vmatprep.subr.bf16.mxu0 0
      %2992 = vmatpush2.bf16.msra.mxu0 0
      %2993 = vmatprep.mubr.bf16.mxu0 0
      %2994 = vmatmul.mubr.bf16.gmra.mxu0 %v2959
      %v2995 = vpop.f32.mrf.mxu0
      %v2996 = vadd.f32 0.0, %v2995
      %v2997 = vpop.f32.mrf.mxu0
      %v2998 = vadd.f32 0.0, %v2997
      %v2999 = vpop.f32.mrf.mxu0
      %v3000 = vadd.f32 0.0, %v2999
      %v3001 = vpop.f32.mrf.mxu0
      %v3002 = vadd.f32 0.0, %v3001
      %3003 = vdwg.mxu0
      %v3004 = vsub.f32 0.0, %v2998
      %v3005 = vsub.f32 0.0, %v3002
      %v3006 = vmul.f32 %v3004, 1.442695
      %v3007 = vpow.pop %v3006
      %v3008 = vmul.f32 %v3005, 1.442695
      %v3009 = vpow.pop %v3008
      %v3010 = vadd.f32 %v3007, 1.0
      %v3011 = vadd.f32 %v3009, 1.0
      %v3012 = vrcp.pop %v3010
      %v3013 = vmul.f32 1.0, %v3012
      %v3014 = vrcp.pop %v3011
      %v3015 = vmul.f32 1.0, %v3014
      %v3016 = vmul.f32 %v2998, %v3013
      %v3017 = vmul.f32 %v3002, %v3015
      %v3018 = vmul.f32 %v2996, %v3016
      %v3019 = vmul.f32 %v3000, %v3017
      %v3020 = vpack.c.bf16 %v3019, %v3018
      %v3021 = vld [vmem:[%s11] sm:$0xf]
      %v3022 = vld [vmem:[%s11 + $0x4] sm:$0xf]
      %v3023 = vld [vmem:[%s11 + $0x8] sm:$0xf]
      %v3024 = vld [vmem:[%s11 + $0xc] sm:$0xf]
      %v3025 = vld [vmem:[%s11 + $0x10] sm:$0xf]
      %v3026 = vld [vmem:[%s11 + $0x14] sm:$0xf]
      %v3027 = vld [vmem:[%s11 + $0x18] sm:$0xf]
      %v3028 = vld [vmem:[%s11 + $0x1c] sm:$0xf]
      %v3029 = vld [vmem:[%s11 + $0x20] sm:$0xf]
      %v3030 = vld [vmem:[%s11 + $0x24] sm:$0xf]
      %v3031 = vld [vmem:[%s11 + $0x28] sm:$0xf]
      %v3032 = vld [vmem:[%s11 + $0x2c] sm:$0xf]
      %v3033 = vld [vmem:[%s11 + $0x30] sm:$0xf]
      %v3034 = vld [vmem:[%s11 + $0x34] sm:$0xf]
      %v3035 = vld [vmem:[%s11 + $0x38] sm:$0xf]
      %v3036 = vld [vmem:[%s11 + $0x3c] sm:$0xf]
      %v3053 = vunpack.c.l.b16 %v3021
      %v3054 = vunpack.c.l.b16 %v3022
      %v3055 = vunpack.c.l.b16 %v3023
      %v3056 = vunpack.c.l.b16 %v3024
      %v3057 = vunpack.c.l.b16 %v3025
      %v3058 = vunpack.c.l.b16 %v3026
      %v3059 = vunpack.c.l.b16 %v3027
      %v3060 = vunpack.c.l.b16 %v3028
      %v3061 = vunpack.c.l.b16 %v3029
      %v3062 = vunpack.c.l.b16 %v3030
      %v3063 = vunpack.c.l.b16 %v3031
      %v3064 = vunpack.c.l.b16 %v3032
      %v3065 = vunpack.c.l.b16 %v3033
      %v3066 = vunpack.c.l.b16 %v3034
      %v3067 = vunpack.c.l.b16 %v3035
      %v3068 = vunpack.c.l.b16 %v3036
      %v3069 = vpack.c.b16 %v3054, %v3053
      %v3070 = vpack.c.b16 %v3056, %v3055
      %v3071 = vpack.c.b16 %v3058, %v3057
      %v3072 = vpack.c.b16 %v3060, %v3059
      %v3073 = vpack.c.b16 %v3062, %v3061
      %v3074 = vpack.c.b16 %v3064, %v3063
      %v3075 = vpack.c.b16 %v3066, %v3065
      %v3076 = vpack.c.b16 %v3068, %v3067
      %3085 = vmatprep.subr.bf16.mxu0 0
      %3086 = vmatpush1.bf16.msra.mxu0 %v3076
      %3087 = vmatprep.subr.bf16.mxu0 0
      %3088 = vmatpush1.bf16.msra.mxu0 %v3075
      %3089 = vmatprep.subr.bf16.mxu0 0
      %3090 = vmatpush1.bf16.msra.mxu0 %v3074
      %3091 = vmatprep.subr.bf16.mxu0 0
      %3092 = vmatpush1.bf16.msra.mxu0 %v3073
      %3093 = vmatprep.subr.bf16.mxu0 0
      %3094 = vmatpush1.bf16.msra.mxu0 %v3072
      %3095 = vmatprep.subr.bf16.mxu0 0
      %3096 = vmatpush1.bf16.msra.mxu0 %v3071
      %3097 = vmatprep.subr.bf16.mxu0 0
      %3098 = vmatpush1.bf16.msra.mxu0 %v3070
      %3099 = vmatprep.subr.bf16.mxu0 0
      %3100 = vmatpush1.bf16.msra.mxu0 %v3069
      %3101 = vmatprep.subr.bf16.mxu0 0
      %3102 = vmatpush2.bf16.msra.mxu0 0
      %3103 = vmatprep.subr.bf16.mxu0 0
      %3104 = vmatpush2.bf16.msra.mxu0 0
      %3105 = vmatprep.subr.bf16.mxu0 0
      %3106 = vmatpush2.bf16.msra.mxu0 0
      %3107 = vmatprep.subr.bf16.mxu0 0
      %3108 = vmatpush2.bf16.msra.mxu0 0
      %3109 = vmatprep.subr.bf16.mxu0 0
      %3110 = vmatpush2.bf16.msra.mxu0 0
      %3111 = vmatprep.subr.bf16.mxu0 0
      %3112 = vmatpush2.bf16.msra.mxu0 0
      %3113 = vmatprep.subr.bf16.mxu0 0
      %3114 = vmatpush2.bf16.msra.mxu0 0
      %3115 = vmatprep.subr.bf16.mxu0 0
      %3116 = vmatpush2.bf16.msra.mxu0 0
      %3117 = vmatprep.mubr.bf16.mxu0 0
      %3118 = vmatmul.mubr.bf16.gmra.mxu0 %v3020
      %v3119 = vpop.f32.mrf.mxu0
      %v3120 = vadd.f32 0.0, %v3119
      %v3121 = vpop.f32.mrf.mxu0
      %v3122 = vpop.f32.mrf.mxu0
      %v3123 = vadd.f32 0.0, %v3122
      %v3124 = vpop.f32.mrf.mxu0
      %3125 = vdwg.mxu0
      %v3128 = vcombine.high %v3120, %v3120
      %v3130 = vunpack.c.l.s4 1983009808
      %v3131 = vunpack.c.0.s8 %v3130
      %v3132 = vlaneseq
      %v3133 = vshrl.u32 %v3132, 7
      %v3134 = vsub.s32 %v3131, %v3133
      %v3135 = vrot.slane %v3120, %v3134
      %v3137 = vunpack.c.l.s4 1983009808
      %v3138 = vunpack.c.0.s8 %v3137
      %v3139 = vlaneseq
      %v3140 = vshrl.u32 %v3139, 7
      %v3141 = vsub.s32 %v3138, %v3140
      %v3142 = vrot.slane %v3128, %v3141
      %v3143 = vcombine.high %v3135, %v3135
      %v3144 = vcombine.high %v3142, %v3142
      %v3145 = vcombine.high %v3123, %v3123
      %v3147 = vunpack.c.l.s4 1983009808
      %v3148 = vunpack.c.0.s8 %v3147
      %v3149 = vlaneseq
      %v3150 = vshrl.u32 %v3149, 7
      %v3151 = vsub.s32 %v3148, %v3150
      %v3152 = vrot.slane %v3123, %v3151
      %v3154 = vunpack.c.l.s4 1983009808
      %v3155 = vunpack.c.0.s8 %v3154
      %v3156 = vlaneseq
      %v3157 = vshrl.u32 %v3156, 7
      %v3158 = vsub.s32 %v3155, %v3157
      %v3159 = vrot.slane %v3145, %v3158
      %v3160 = vcombine.high %v3152, %v3152
      %v3161 = vcombine.high %v3159, %v3159
      %v3170 = vadd.f32 %v2707, %v3135
      %v3171 = vadd.f32 %v2708, %v3143
      %v3172 = vadd.f32 %v2709, %v3142
      %v3173 = vadd.f32 %v2710, %v3144
      %v3174 = vadd.f32 %v2711, %v3152
      %v3175 = vadd.f32 %v2712, %v3160
      %v3176 = vadd.f32 %v2713, %v3159
      %v3177 = vadd.f32 %v2714, %v3161
      %vm3178 = vcmask 254976
      %3179 = vst.msk [vmem:[%s415] sm:$0x3] %vm3178, %v3170
      %3180 = vst.msk [vmem:[%s415 + $0x2] sm:$0x3] %vm3178, %v3171
      %3181 = vst.msk [vmem:[%s415 + $0x4] sm:$0x3] %vm3178, %v3172
      %3182 = vst.msk [vmem:[%s415 + $0x6] sm:$0x3] %vm3178, %v3173
      %3183 = vst.msk [vmem:[%s415 + $0x8] sm:$0x3] %vm3178, %v3174
      %3184 = vst.msk [vmem:[%s415 + $0xa] sm:$0x3] %vm3178, %v3175
      %3185 = vst.msk [vmem:[%s415 + $0xc] sm:$0x3] %vm3178, %v3176
      %3186 = vst.msk [vmem:[%s415 + $0xe] sm:$0x3] %vm3178, %v3177
      %s3187 = smul.u32 8, %s23
      %p3188 = scmp.lt.s32.totalorder %s3187, 15
      %s3189 = scalar_select %p3188, %s3187, 15
      %s3190 = smul.addr %s3189, 2
      %s3191 = scalar_lea.vmem %s12, %s3190
      // Predicated region
      $region77: #{mamba_block.1} parent=67 // pred_check
        %p3192 = pneg %p298
      $region78: #{mamba_block.1} parent=67 // pred_check_branch
        %3194 = sbr.rel (%p3192) target = $region80
      $region79: #{mamba_block.1} parent=67 // pred_region
        %s3195 = smul.u32 8, %s23
      $region80: #{mamba_block.1} parent=67 // pred_fallthru
        _
    $region68: #{mamba_block.1} parent=5 // pred_fallthru
      _
    %p3196 = scmp.le.s32.totalorder 2, %s18
    // Predicated region
    $region81: #{mamba_block.1} parent=5 // pred_check
      %p3197 = pneg %p3196
    $region82: #{mamba_block.1} parent=5 // pred_check_branch
      %3199 = sbr.rel (%p3197) target = $region84
    $region83: #{mamba_block.1} parent=5 // pred_region
      %s3200 = ssub.s32 %s18, 2
      // Predicated region
      $region85: #{mamba_block.1} parent=83 // pred_check
        %p3201 = pneg %p304
      $region86: #{mamba_block.1} parent=83 // pred_check_branch
        %3203 = sbr.rel (%p3201) target = $region88
      $region87: #{mamba_block.1} parent=83 // pred_region
        %s3204 = smul.u32 8, %s24
        %p3205 = scmp.lt.s32.totalorder %s3204, 15
        %s3206 = scalar_select %p3205, %s3204, 15
        %s3207 = smul.addr %s3206, 2
        %s3208 = scalar_lea.vmem %s12, %s3207
      $region88: #{mamba_block.1} parent=83 // pred_fallthru
        _
    $region84: #{mamba_block.1} parent=5 // pred_fallthru
      _
  $region6: #{mamba_block.1} parent=0 // loop_footer
    %s22 = sadd.s32 1, %s18
  $region7: #{mamba_block.1} parent=0 // loop_footer_branch
    %17 = sbr.rel target = $region3
  $region8: #{mamba_block.1} parent=0 // loop_exit
    _

</llo_original>
